<compile_context>
chip_gen: v5e
topology: v5e:2x2
jax: 0.10.0
libtpu: 0.0.40
codegen_flags: <defaults>
</compile_context>

<pallas_src>
import functools

import jax
import jax.numpy as jnp
import numpy as np
from jax import lax
from jax.experimental import pallas as pl
from jax.experimental.pallas import tpu as pltpu

NEG_SLOPE = 0.01          # LeakyReLU negative_slope
EPS = 1e-5                # InstanceNorm eps

# Set to jnp.bfloat16 on v6e/v7x for ~2x MXU rate and half the operand VMEM footprint
# (xpad slab + folded weights are cast once; accumulation, bias, stats stay f32).
# Kept f32 by default so numerics match the PyTorch f32 reference exactly.
MXU_INPUT_DTYPE = jnp.float32


def _vmem_limit_bytes():
    # v7x has 64 MiB/TC, v5e/v6e have 128 MiB; cap the scoped limit accordingly so
    # double-buffering stays alive on v7x while bigger tiles are allowed elsewhere.
    try:
        cap = pltpu.get_tpu_info().vmem_capacity_bytes
    except Exception:
        cap = 64 * 1024 * 1024
    return max(32 * 1024 * 1024, min(int(cap * 3 // 4), 96 * 1024 * 1024))


def _pick_td(D, H, W, c, vmem_limit):
    """Largest divisor of D whose per-step working set fits ~60% of the VMEM limit."""
    budget = int(vmem_limit * 0.6)
    f = 4
    best = 1
    for td in range(1, D + 1):
        if D % td:
            continue
        tile_in = td * H * W * c * f * 2          # double-buffered input tile
        tile_out = td * H * W * c * f * 2         # double-buffered output tile
        halos = 2 * H * W * c * f * 2
        xpad = (td + 2) * (H + 2) * W * c * f
        acc = td * H * W * c * f * 3              # local accumulator headroom
        wts = 9 * (W * c) * (W * c) * f
        if tile_in + tile_out + halos + xpad + acc + wts + (2 << 20) <= budget:
            best = td
    return best


# ----------------------------------------------------------------------------
# Host-side weight folding:  Conv3d(3x3x3) ->  9 block-banded matrices that fold
# the kw taps and the W axis (and its zero padding) into a single matmul per
# (kd, kh) tap:  wf[t][wi*Cin + ci, wo*Cout + co] = w[co, ci, kd, kh, kw],
# with wi = wo + kw - 1 and out-of-range wi simply dropped (== zero padding).
# ----------------------------------------------------------------------------
def _fold_conv_weight(w_oidhw, W):
    cin = w_oidhw.shape[1]
    shifts = []
    for kw in range(3):
        p = np.zeros((W, W), np.float32)
        for wo in range(W):
            wi = wo + kw - 1
            if 0 <= wi < W:
                p[wi, wo] = 1.0
        shifts.append(jnp.asarray(p))
    cout = w_oidhw.shape[0]
    mats = []
    for kd in range(3):
        for kh in range(3):
            m = jnp.zeros((W * cin, W * cout), jnp.float32)
            for kw in range(3):
                wk = jnp.transpose(w_oidhw[:, :, kd, kh, kw])     # (Cin, Cout)
                m = m + jnp.kron(shifts[kw], wk)
            mats.append(m)
    return jnp.stack(mats, axis=0)                                # (9, W*Cin, W*Cout)


# ----------------------------------------------------------------------------
# Kernel A: fused [pre-op (style-add OR prev-layer norm+LeakyReLU)] -> D/H zero-pad
#           -> 9 lane-dense MXU matmuls (= Conv3d 3x3x3 with W/kw folded) + bias
#           -> per-tile per-channel sum / sumsq.
# ----------------------------------------------------------------------------
def _conv_stats_kernel(x_ref, xt_ref, xb_ref, scale_ref, shift_ref, w_ref, b_ref,
                       fold_ref, conv_ref, stats_ref, xpad_ref, *, apply_act):
    # x_ref:     (1, TD, H, W*Cin)   center D-tile of previous layer's raw output
    # xt_ref:    (1, 1,  H, W*Cin)   D-row above the tile (clamped at 0)
    # xb_ref:    (1, 1,  H, W*Cin)   D-row below the tile (clamped at D-1)
    # scale/shift_ref: (1, 1, W*Cin) per-(sample, channel) pre-op affine, W-tiled
    # w_ref:     (9, W*Cin, W*Cout)  folded weights, (kd, kh)-major
    # b_ref:     (1, W*Cout)         W-tiled bias
    # fold_ref:  (W*Cout, Cout)      lane-fold matrix for the per-channel reduction
    # conv_ref:  (1, TD, H, W*Cout)  raw conv+bias output (pre-norm)
    # stats_ref: (1, 1, 2, Cout)     this tile's [sum, sumsq]
    # xpad_ref:  VMEM (TD+2, H+2, W*Cin) scratch — D/H padded, pre-processed slab
    d = pl.program_id(1)
    n_dt = pl.num_programs(1)
    _, TD, H, WK = x_ref.shape
    WN = conv_ref.shape[-1]
    Cout = stats_ref.shape[-1]

    scale = scale_ref[...].reshape(1, 1, WK)
    shift = shift_ref[...].reshape(1, 1, WK)

    def pre(v):   # previous layer boundary folded to an elementwise affine (+LeakyReLU)
        y = v * scale + shift
        if apply_act:
            y = jnp.where(y >= 0, y, NEG_SLOPE * y)
        return y

    # Only the two H-pad sublane rows need zeroing (W padding lives in the weights,
    # D-halo rows are rewritten below), so this is cheap and order-independent.
    zrow = jnp.zeros((TD + 2, 1, WK), xpad_ref.dtype)
    xpad_ref[:, 0:1, :] = zrow
    xpad_ref[:, H + 1:H + 2, :] = zrow

    xpad_ref[1:TD + 1, 1:H + 1, :] = pre(x_ref[0]).astype(xpad_ref.dtype)
    # volume-boundary halos are the zero padding of the *activation*, not pre(0)
    top = jnp.where(d == 0, 0.0, pre(xt_ref[0]))
    bot = jnp.where(d == n_dt - 1, 0.0, pre(xb_ref[0]))
    xpad_ref[0:1, 1:H + 1, :] = top.astype(xpad_ref.dtype)
    xpad_ref[TD + 1:TD + 2, 1:H + 1, :] = bot.astype(xpad_ref.dtype)

    # 9 (kd, kh) taps; kw and W are folded into the weight matrix, so each tap is one
    # lane-dense MXU matmul.  Accumulate in a local value — no scratch read-modify-write.
    acc = jnp.zeros((TD * H, WN), jnp.float32)
    for t in range(9):
        kd, kh = divmod(t, 3)
        win = xpad_ref[kd:kd + TD, kh:kh + H, :]
        acc = acc + jnp.dot(win.reshape(TD * H, WK), w_ref[t],
                            preferred_element_type=jnp.float32)
    acc = acc + b_ref[...]                                    # conv bias, f32
    conv_ref[...] = acc.reshape(1, TD, H, WN).astype(conv_ref.dtype)

    # Per-tile raw moments; (w, c) lanes folded to per-channel via a tiny matmul.
    s1 = jnp.dot(jnp.sum(acc, axis=0, keepdims=True), fold_ref[...],
                 preferred_element_type=jnp.float32)
    s2 = jnp.dot(jnp.sum(acc * acc, axis=0, keepdims=True), fold_ref[...],
                 preferred_element_type=jnp.float32)
    stats_ref[0:1, 0:1, 0:1, :] = s1.reshape(1, 1, 1, Cout)
    stats_ref[0:1, 0:1, 1:2, :] = s2.reshape(1, 1, 1, Cout)


# ----------------------------------------------------------------------------
# Kernel B: finalize the LAST layer only: y = LeakyReLU(x * scale + shift)
# (InstanceNorm + affine folded into per-(sample, channel) scale/shift on host).
# ----------------------------------------------------------------------------
def _affine_act_kernel(x_ref, scale_ref, shift_ref, out_ref):
    WC = x_ref.shape[-1]
    s = scale_ref[...].reshape(1, 1, 1, WC)
    t = shift_ref[...].reshape(1, 1, 1, WC)
    y = x_ref[...] * s + t
    out_ref[...] = jnp.where(y >= 0, y, NEG_SLOPE * y).astype(out_ref.dtype)


# ----------------------------------------------------------------------------
# pallas_call wrappers
# ----------------------------------------------------------------------------
def _conv_stats(x, scale3, shift3, wf, bf, foldm, apply_act, td, vmem_limit):
    N, D, H, WK = x.shape
    WN = wf.shape[-1]
    Cout = foldm.shape[-1]
    n_dt = D // td

    kernel = functools.partial(_conv_stats_kernel, apply_act=apply_act)
    conv, stats = pl.pallas_call(
        kernel,
        out_shape=(jax.ShapeDtypeStruct((N, D, H, WN), jnp.float32),
                   jax.ShapeDtypeStruct((N, n_dt, 2, Cout), jnp.float32)),
        grid=(N, n_dt),
        in_specs=[
            pl.BlockSpec((1, td, H, WK), lambda n, d: (n, d, 0, 0)),
            pl.BlockSpec((1, 1, H, WK),
                         lambda n, d: (n, jnp.maximum(d * td - 1, 0), 0, 0)),
            pl.BlockSpec((1, 1, H, WK),
                         lambda n, d: (n, jnp.minimum(d * td + td, D - 1), 0, 0)),
            pl.BlockSpec((1, 1, WK), lambda n, d: (n, 0, 0)),
            pl.BlockSpec((1, 1, WK), lambda n, d: (n, 0, 0)),
            pl.BlockSpec((9, WK, WN), lambda n, d: (0, 0, 0)),
            pl.BlockSpec((1, WN), lambda n, d: (0, 0)),
            pl.BlockSpec((WN, Cout), lambda n, d: (0, 0)),
        ],
        out_specs=(
            pl.BlockSpec((1, td, H, WN), lambda n, d: (n, d, 0, 0)),
            pl.BlockSpec((1, 1, 2, Cout), lambda n, d: (n, d, 0, 0)),
        ),
        scratch_shapes=[pltpu.VMEM((td + 2, H + 2, WK), MXU_INPUT_DTYPE)],
        compiler_params=pltpu.CompilerParams(
            dimension_semantics=("parallel", "parallel"),
            vmem_limit_bytes=vmem_limit),
    )(x, x, x, scale3, shift3, wf, bf, foldm)
    return conv, stats


def _affine_act(x, scale3, shift3, td, vmem_limit):
    N, D, H, WC = x.shape
    n_dt = D // td
    return pl.pallas_call(
        _affine_act_kernel,
        out_shape=jax.ShapeDtypeStruct((N, D, H, WC), jnp.float32),
        grid=(N, n_dt),
        in_specs=[
            pl.BlockSpec((1, td, H, WC), lambda n, d: (n, d, 0, 0)),
            pl.BlockSpec((1, 1, WC), lambda n, d: (n, 0, 0)),
            pl.BlockSpec((1, 1, WC), lambda n, d: (n, 0, 0)),
        ],
        out_specs=pl.BlockSpec((1, td, H, WC), lambda n, d: (n, d, 0, 0)),
        compiler_params=pltpu.CompilerParams(
            dimension_semantics=("parallel", "parallel"),
            vmem_limit_bytes=vmem_limit),
    )(x, scale3, shift3)


def stacked_conv_layers_with_style(x_ncdhw, style, params, td=None):
    """x_ncdhw: (N, Cin, D, H, W) f32; style: (N, S) f32. Returns NCDHW output."""
    N, Cin, D, H, W = x_ncdhw.shape
    vmem_limit = _vmem_limit_bytes()
    if td is None:
        cmax = max([Cin] + [b["w_oidhw"].shape[0] for b in params["blocks"]])
        td = _pick_td(D, H, W, cmax, vmem_limit)

    # NCDHW -> lane-dense folded layout (N, D, H, W*C)
    x = jnp.transpose(x_ncdhw, (0, 2, 3, 4, 1)).reshape(N, D, H, W * Cin)

    # layer-0 boundary pre-op = style broadcast-add:  scale = 1, shift = Linear(style)
    style_vec = style @ params["full_w"] + params["full_b"]       # (N, Cin) tiny GEMV
    scale = jnp.ones_like(style_vec)
    shift = style_vec
    apply_act = False

    conv = x
    cin = Cin
    m = float(td * H * W)                 # elements per D-tile (per sample, channel)
    cnt = float(D * H * W)                # elements per instance
    for blk in params["blocks"]:
        cout = blk["w_oidhw"].shape[0]
        wf = _fold_conv_weight(blk["w_oidhw"], W).astype(MXU_INPUT_DTYPE)
        bf = jnp.tile(blk["b"], (1, W))                                    # (1, W*cout)
        foldm = jnp.kron(jnp.ones((W, 1), jnp.float32),
                         jnp.eye(cout, dtype=jnp.float32))                 # (W*cout, cout)

        conv, stats = _conv_stats(
            conv,
            jnp.tile(scale, (1, W)).reshape(N, 1, W * cin),
            jnp.tile(shift, (1, W)).reshape(N, 1, W * cin),
            wf, bf, foldm, apply_act, td, vmem_limit)

        # Combine per-tile moments with Chan's formula (better conditioned than a
        # single global E[x^2] - E[x]^2), then fold InstanceNorm + affine into a
        # per-(n, c) scale/shift applied by the NEXT kernel (or the finalize kernel).
        s1 = stats[:, :, 0, :]                               # (N, n_dt, cout)
        s2 = stats[:, :, 1, :]
        mean = jnp.sum(s1, axis=1) / cnt                     # (N, cout)
        mu_t = s1 / m
        css_t = s2 - m * mu_t * mu_t                         # per-tile centered sumsq
        css = jnp.sum(css_t, axis=1) + m * jnp.sum(
            (mu_t - mean[:, None, :]) ** 2, axis=1)
        var = css / cnt                                      # biased variance
        inv = lax.rsqrt(var + EPS)
        scale = blk["gamma"] * inv                           # (N, cout)
        shift = blk["beta"] - mean * scale
        apply_act = True
        cin = cout

    y = _affine_act(conv,
                    jnp.tile(scale, (1, W)).reshape(N, 1, W * cin),
                    jnp.tile(shift, (1, W)).reshape(N, 1, W * cin),
                    td, vmem_limit)
    y = y.reshape(N, D, H, W, cin)
    return jnp.transpose(y, (0, 4, 1, 2, 3))                 # -> NCDHW (PyTorch layout)


# ----------------------------------------------------------------------------
# Deterministic parameter init (shapes match the nn.Module __init__)
# ----------------------------------------------------------------------------
def init_params(key, in_ch, style_ch, out_ch, num_convs):
    keys = jax.random.split(key, 2 + num_convs)
    params = {
        # nn.Linear(style_channels, input_feature_channels): weight stored transposed
        "full_w": 0.2 * jax.random.normal(keys[0], (style_ch, in_ch), jnp.float32),
        "full_b": 0.1 * jax.random.normal(keys[1], (1, in_ch), jnp.float32),
        "blocks": [],
    }
    cin = in_ch
    for i in range(num_convs):
        kw, kb, kg, kbt = jax.random.split(keys[2 + i], 4)
        # PyTorch Conv3d weight: (Cout, Cin, 3, 3, 3)
        w_oidhw = jax.random.normal(kw, (out_ch, cin, 3, 3, 3), jnp.float32) / np.sqrt(cin * 27)
        params["blocks"].append({
            "w_oidhw": w_oidhw,
            "b": 0.1 * jax.random.normal(kb, (1, out_ch), jnp.float32),
            "gamma": 1.0 + 0.1 * jax.random.normal(kg, (1, out_ch), jnp.float32),
            "beta": 0.1 * jax.random.normal(kbt, (1, out_ch), jnp.float32),
        })
        cin = out_ch
    return params


# ----------------------------------------------------------------------------
# Pure-JAX reference (same math, XLA conv) for validation
# ----------------------------------------------------------------------------
def reference_forward(x_ncdhw, style, params):
    s = style @ params["full_w"] + params["full_b"]               # (N, Cin)
    x = x_ncdhw + s[:, :, None, None, None]
    for blk in params["blocks"]:
        y = lax.conv_general_dilated(
            x, blk["w_oidhw"], window_strides=(1, 1, 1),
            padding=((1, 1), (1, 1), (1, 1)),
            dimension_numbers=("NCDHW", "OIDHW", "NCDHW"))
        y = y + blk["b"].reshape(1, -1, 1, 1, 1)
        mean = jnp.mean(y, axis=(2, 3, 4), keepdims=True)
        var = jnp.mean((y - mean) ** 2, axis=(2, 3, 4), keepdims=True)
        y = (y - mean) * lax.rsqrt(var + EPS)
        y = y * blk["gamma"].reshape(1, -1, 1, 1, 1) + blk["beta"].reshape(1, -1, 1, 1, 1)
        x = jnp.where(y >= 0, y, NEG_SLOPE * y)
    return x


if __name__ == "__main__":
    N, Cin, Cout, S, D, H, W, NUM_CONVS = 2, 4, 8, 6, 8, 8, 8, 2

    key = jax.random.PRNGKey(0)
    kx, ks, kp = jax.random.split(key, 3)
    x = jax.random.normal(kx, (N, Cin, D, H, W), jnp.float32)     # PyTorch NCDHW
    style = jax.random.normal(ks, (N, S), jnp.float32)
    params = init_params(kp, Cin, S, Cout, NUM_CONVS)

    fwd = jax.jit(stacked_conv_layers_with_style)
    out = jax.block_until_ready(fwd(x, style, params))

    ref = reference_forward(x, style, params)
    np.testing.assert_allclose(np.asarray(out), np.asarray(ref), rtol=2e-2, atol=2e-2)
    print("KERNEL_OK")
</pallas_src>

<mosaic_0001>
module attributes {stable_mosaic.version = 11 : i64} {
  func.func @_conv_stats_kernel(%arg0: i32, %arg1: i32, %arg2: memref<1x8x8x32xf32, #tpu.memory_space<vmem>>, %arg3: memref<1x1x8x32xf32, #tpu.memory_space<vmem>>, %arg4: memref<1x1x8x32xf32, #tpu.memory_space<vmem>>, %arg5: memref<1x1x32xf32, #tpu.memory_space<vmem>>, %arg6: memref<1x1x32xf32, #tpu.memory_space<vmem>>, %arg7: memref<9x32x64xf32, #tpu.memory_space<vmem>>, %arg8: memref<1x64xf32, #tpu.memory_space<vmem>>, %arg9: memref<64x8xf32, #tpu.memory_space<vmem>>, %arg10: memref<1x8x8x64xf32, #tpu.memory_space<vmem>>, %arg11: memref<1x1x2x8xf32, #tpu.memory_space<vmem>>, %arg12: memref<10x10x32xf32, #tpu.memory_space<vmem>>) attributes {dimension_semantics = [#tpu.dimension_semantics<parallel>, #tpu.dimension_semantics<parallel>], iteration_bounds = array<i64: 2, 1>, scalar_prefetch = 0 : i64, scratch_operands = 1 : i64, tpu.core_type = #tpu.core_type<tc>, window_params = [{transform_indices = @transform_0, window_bounds = array<i64: 1, 8, 8, 32>}, {transform_indices = @transform_1, window_bounds = array<i64: 1, 1, 8, 32>}, {transform_indices = @transform_2, window_bounds = array<i64: 1, 1, 8, 32>}, {transform_indices = @transform_3, window_bounds = array<i64: 1, 1, 32>}, {transform_indices = @transform_4, window_bounds = array<i64: 1, 1, 32>}, {pipeline_mode = #tpu.pipeline_mode<synchronous>, transform_indices = @transform_5, window_bounds = array<i64: 9, 32, 64>}, {pipeline_mode = #tpu.pipeline_mode<synchronous>, transform_indices = @transform_6, window_bounds = array<i64: 1, 64>}, {pipeline_mode = #tpu.pipeline_mode<synchronous>, transform_indices = @transform_7, window_bounds = array<i64: 64, 8>}, {transform_indices = @transform_8, window_bounds = array<i64: 1, 8, 8, 64>}, {transform_indices = @transform_9, window_bounds = array<i64: 1, 1, 2, 8>}]} {
    %c0 = arith.constant 0 : index
    %c0_0 = arith.constant 0 : index
    %c0_1 = arith.constant 0 : index
    %0 = vector.load %arg5[%c0, %c0_0, %c0_1] : memref<1x1x32xf32, #tpu.memory_space<vmem>>, vector<1x1x32xf32>
    %c0_2 = arith.constant 0 : index
    %c0_3 = arith.constant 0 : index
    %c0_4 = arith.constant 0 : index
    %1 = vector.load %arg6[%c0_2, %c0_3, %c0_4] : memref<1x1x32xf32, #tpu.memory_space<vmem>>, vector<1x1x32xf32>
    %cst = arith.constant 0.000000e+00 : f32
    %2 = vector.broadcast %cst : f32 to vector<10x1x32xf32>
    %c0_5 = arith.constant 0 : index
    %c0_6 = arith.constant 0 : index
    %c0_7 = arith.constant 0 : index
    %3 = vector.load %arg12[%c0_5, %c0_6, %c0_7] : memref<10x10x32xf32, #tpu.memory_space<vmem>>, vector<10x1x32xf32>
    tpu.vector_store %arg12[%c0_5, %c0_6, %c0_7], %2 {strides = array<i32>} : memref<10x10x32xf32, #tpu.memory_space<vmem>>, vector<10x1x32xf32>,
    %c0_8 = arith.constant 0 : index
    %c9 = arith.constant 9 : index
    %c0_9 = arith.constant 0 : index
    %4 = vector.load %arg12[%c0_8, %c9, %c0_9] : memref<10x10x32xf32, #tpu.memory_space<vmem>>, vector<10x1x32xf32>
    tpu.vector_store %arg12[%c0_8, %c9, %c0_9], %2 {strides = array<i32>} : memref<10x10x32xf32, #tpu.memory_space<vmem>>, vector<10x1x32xf32>,
    %c0_10 = arith.constant 0 : index
    %c0_11 = arith.constant 0 : index
    %c0_12 = arith.constant 0 : index
    %c0_13 = arith.constant 0 : index
    %5 = vector.load %arg2[%c0_10, %c0_11, %c0_12, %c0_13] : memref<1x8x8x32xf32, #tpu.memory_space<vmem>>, vector<1x8x8x32xf32>
    %6 = vector.shape_cast %5 : vector<1x8x8x32xf32> to vector<8x8x32xf32>
    %7 = vector.broadcast %0 : vector<1x1x32xf32> to vector<8x8x32xf32>
    %8 = arith.mulf %6, %7 : vector<8x8x32xf32>
    %9 = vector.broadcast %1 : vector<1x1x32xf32> to vector<8x8x32xf32>
    %10 = arith.addf %8, %9 : vector<8x8x32xf32>
    %c1 = arith.constant 1 : index
    %c1_14 = arith.constant 1 : index
    %c0_15 = arith.constant 0 : index
    %11 = vector.load %arg12[%c1, %c1_14, %c0_15] : memref<10x10x32xf32, #tpu.memory_space<vmem>>, vector<8x8x32xf32>
    tpu.vector_store %arg12[%c1, %c1_14, %c0_15], %10 {strides = array<i32>} : memref<10x10x32xf32, #tpu.memory_space<vmem>>, vector<8x8x32xf32>,
    %c0_i32 = arith.constant 0 : i32
    %12 = arith.cmpi eq, %arg1, %c0_i32 : i32
    %c0_16 = arith.constant 0 : index
    %c0_17 = arith.constant 0 : index
    %c0_18 = arith.constant 0 : index
    %c0_19 = arith.constant 0 : index
    %13 = vector.load %arg3[%c0_16, %c0_17, %c0_18, %c0_19] : memref<1x1x8x32xf32, #tpu.memory_space<vmem>>, vector<1x1x8x32xf32>
    %14 = vector.shape_cast %13 : vector<1x1x8x32xf32> to vector<1x8x32xf32>
    %15 = vector.broadcast %0 : vector<1x1x32xf32> to vector<1x8x32xf32>
    %16 = arith.mulf %14, %15 : vector<1x8x32xf32>
    %17 = vector.broadcast %1 : vector<1x1x32xf32> to vector<1x8x32xf32>
    %18 = arith.addf %16, %17 : vector<1x8x32xf32>
    %cst_20 = arith.constant 0.000000e+00 : f32
    %19 = vector.broadcast %cst_20 : f32 to vector<1x8x32xf32>
    %20 = arith.select %12, %19, %18 : vector<1x8x32xf32>
    %c0_i32_21 = arith.constant 0 : i32
    %21 = arith.cmpi eq, %arg1, %c0_i32_21 : i32
    %c0_22 = arith.constant 0 : index
    %c0_23 = arith.constant 0 : index
    %c0_24 = arith.constant 0 : index
    %c0_25 = arith.constant 0 : index
    %22 = vector.load %arg4[%c0_22, %c0_23, %c0_24, %c0_25] : memref<1x1x8x32xf32, #tpu.memory_space<vmem>>, vector<1x1x8x32xf32>
    %23 = vector.shape_cast %22 : vector<1x1x8x32xf32> to vector<1x8x32xf32>
    %24 = vector.broadcast %0 : vector<1x1x32xf32> to vector<1x8x32xf32>
    %25 = arith.mulf %23, %24 : vector<1x8x32xf32>
    %26 = vector.broadcast %1 : vector<1x1x32xf32> to vector<1x8x32xf32>
    %27 = arith.addf %25, %26 : vector<1x8x32xf32>
    %cst_26 = arith.constant 0.000000e+00 : f32
    %28 = vector.broadcast %cst_26 : f32 to vector<1x8x32xf32>
    %29 = arith.select %21, %28, %27 : vector<1x8x32xf32>
    %c0_27 = arith.constant 0 : index
    %c1_28 = arith.constant 1 : index
    %c0_29 = arith.constant 0 : index
    %30 = vector.load %arg12[%c0_27, %c1_28, %c0_29] : memref<10x10x32xf32, #tpu.memory_space<vmem>>, vector<1x8x32xf32>
    tpu.vector_store %arg12[%c0_27, %c1_28, %c0_29], %20 {strides = array<i32>} : memref<10x10x32xf32, #tpu.memory_space<vmem>>, vector<1x8x32xf32>,
    %c9_30 = arith.constant 9 : index
    %c1_31 = arith.constant 1 : index
    %c0_32 = arith.constant 0 : index
    %31 = vector.load %arg12[%c9_30, %c1_31, %c0_32] : memref<10x10x32xf32, #tpu.memory_space<vmem>>, vector<1x8x32xf32>
    tpu.vector_store %arg12[%c9_30, %c1_31, %c0_32], %29 {strides = array<i32>} : memref<10x10x32xf32, #tpu.memory_space<vmem>>, vector<1x8x32xf32>,
    %cst_33 = arith.constant 0.000000e+00 : f32
    %32 = vector.broadcast %cst_33 : f32 to vector<64x64xf32>
    %c0_34 = arith.constant 0 : index
    %c0_35 = arith.constant 0 : index
    %c0_36 = arith.constant 0 : index
    %33 = vector.load %arg12[%c0_34, %c0_35, %c0_36] : memref<10x10x32xf32, #tpu.memory_space<vmem>>, vector<8x8x32xf32>
    %34 = vector.shape_cast %33 : vector<8x8x32xf32> to vector<64x32xf32>
    %c0_37 = arith.constant 0 : index
    %c0_38 = arith.constant 0 : index
    %c0_39 = arith.constant 0 : index
    %35 = vector.load %arg7[%c0_37, %c0_38, %c0_39] : memref<9x32x64xf32, #tpu.memory_space<vmem>>, vector<1x32x64xf32>
    %36 = vector.shape_cast %35 : vector<1x32x64xf32> to vector<32x64xf32>
    %cst_40 = arith.constant dense<0.000000e+00> : vector<64x64xf32>
    %37 = tpu.matmul %34, %36, %cst_40 {dimension_numbers = #tpu.dot_dimension_numbers<[1], [0], [0], [1], [0, 0, 1, 1], [], []>} : vector<64x32xf32>, vector<32x64xf32>, vector<64x64xf32> -> vector<64x64xf32>
    %38 = arith.addf %32, %37 : vector<64x64xf32>
    %c0_41 = arith.constant 0 : index
    %c1_42 = arith.constant 1 : index
    %c0_43 = arith.constant 0 : index
    %39 = vector.load %arg12[%c0_41, %c1_42, %c0_43] : memref<10x10x32xf32, #tpu.memory_space<vmem>>, vector<8x8x32xf32>
    %40 = vector.shape_cast %39 : vector<8x8x32xf32> to vector<64x32xf32>
    %c1_44 = arith.constant 1 : index
    %c0_45 = arith.constant 0 : index
    %c0_46 = arith.constant 0 : index
    %41 = vector.load %arg7[%c1_44, %c0_45, %c0_46] : memref<9x32x64xf32, #tpu.memory_space<vmem>>, vector<1x32x64xf32>
    %42 = vector.shape_cast %41 : vector<1x32x64xf32> to vector<32x64xf32>
    %cst_47 = arith.constant dense<0.000000e+00> : vector<64x64xf32>
    %43 = tpu.matmul %40, %42, %cst_47 {dimension_numbers = #tpu.dot_dimension_numbers<[1], [0], [0], [1], [0, 0, 1, 1], [], []>} : vector<64x32xf32>, vector<32x64xf32>, vector<64x64xf32> -> vector<64x64xf32>
    %44 = arith.addf %38, %43 : vector<64x64xf32>
    %c0_48 = arith.constant 0 : index
    %c2 = arith.constant 2 : index
    %c0_49 = arith.constant 0 : index
    %45 = vector.load %arg12[%c0_48, %c2, %c0_49] : memref<10x10x32xf32, #tpu.memory_space<vmem>>, vector<8x8x32xf32>
    %46 = vector.shape_cast %45 : vector<8x8x32xf32> to vector<64x32xf32>
    %c2_50 = arith.constant 2 : index
    %c0_51 = arith.constant 0 : index
    %c0_52 = arith.constant 0 : index
    %47 = vector.load %arg7[%c2_50, %c0_51, %c0_52] : memref<9x32x64xf32, #tpu.memory_space<vmem>>, vector<1x32x64xf32>
    %48 = vector.shape_cast %47 : vector<1x32x64xf32> to vector<32x64xf32>
    %cst_53 = arith.constant dense<0.000000e+00> : vector<64x64xf32>
    %49 = tpu.matmul %46, %48, %cst_53 {dimension_numbers = #tpu.dot_dimension_numbers<[1], [0], [0], [1], [0, 0, 1, 1], [], []>} : vector<64x32xf32>, vector<32x64xf32>, vector<64x64xf32> -> vector<64x64xf32>
    %50 = arith.addf %44, %49 : vector<64x64xf32>
    %c1_54 = arith.constant 1 : index
    %c0_55 = arith.constant 0 : index
    %c0_56 = arith.constant 0 : index
    %51 = vector.load %arg12[%c1_54, %c0_55, %c0_56] : memref<10x10x32xf32, #tpu.memory_space<vmem>>, vector<8x8x32xf32>
    %52 = vector.shape_cast %51 : vector<8x8x32xf32> to vector<64x32xf32>
    %c3 = arith.constant 3 : index
    %c0_57 = arith.constant 0 : index
    %c0_58 = arith.constant 0 : index
    %53 = vector.load %arg7[%c3, %c0_57, %c0_58] : memref<9x32x64xf32, #tpu.memory_space<vmem>>, vector<1x32x64xf32>
    %54 = vector.shape_cast %53 : vector<1x32x64xf32> to vector<32x64xf32>
    %cst_59 = arith.constant dense<0.000000e+00> : vector<64x64xf32>
    %55 = tpu.matmul %52, %54, %cst_59 {dimension_numbers = #tpu.dot_dimension_numbers<[1], [0], [0], [1], [0, 0, 1, 1], [], []>} : vector<64x32xf32>, vector<32x64xf32>, vector<64x64xf32> -> vector<64x64xf32>
    %56 = arith.addf %50, %55 : vector<64x64xf32>
    %c1_60 = arith.constant 1 : index
    %c1_61 = arith.constant 1 : index
    %c0_62 = arith.constant 0 : index
    %57 = vector.load %arg12[%c1_60, %c1_61, %c0_62] : memref<10x10x32xf32, #tpu.memory_space<vmem>>, vector<8x8x32xf32>
    %58 = vector.shape_cast %57 : vector<8x8x32xf32> to vector<64x32xf32>
    %c4 = arith.constant 4 : index
    %c0_63 = arith.constant 0 : index
    %c0_64 = arith.constant 0 : index
    %59 = vector.load %arg7[%c4, %c0_63, %c0_64] : memref<9x32x64xf32, #tpu.memory_space<vmem>>, vector<1x32x64xf32>
    %60 = vector.shape_cast %59 : vector<1x32x64xf32> to vector<32x64xf32>
    %cst_65 = arith.constant dense<0.000000e+00> : vector<64x64xf32>
    %61 = tpu.matmul %58, %60, %cst_65 {dimension_numbers = #tpu.dot_dimension_numbers<[1], [0], [0], [1], [0, 0, 1, 1], [], []>} : vector<64x32xf32>, vector<32x64xf32>, vector<64x64xf32> -> vector<64x64xf32>
    %62 = arith.addf %56, %61 : vector<64x64xf32>
    %c1_66 = arith.constant 1 : index
    %c2_67 = arith.constant 2 : index
    %c0_68 = arith.constant 0 : index
    %63 = vector.load %arg12[%c1_66, %c2_67, %c0_68] : memref<10x10x32xf32, #tpu.memory_space<vmem>>, vector<8x8x32xf32>
    %64 = vector.shape_cast %63 : vector<8x8x32xf32> to vector<64x32xf32>
    %c5 = arith.constant 5 : index
    %c0_69 = arith.constant 0 : index
    %c0_70 = arith.constant 0 : index
    %65 = vector.load %arg7[%c5, %c0_69, %c0_70] : memref<9x32x64xf32, #tpu.memory_space<vmem>>, vector<1x32x64xf32>
    %66 = vector.shape_cast %65 : vector<1x32x64xf32> to vector<32x64xf32>
    %cst_71 = arith.constant dense<0.000000e+00> : vector<64x64xf32>
    %67 = tpu.matmul %64, %66, %cst_71 {dimension_numbers = #tpu.dot_dimension_numbers<[1], [0], [0], [1], [0, 0, 1, 1], [], []>} : vector<64x32xf32>, vector<32x64xf32>, vector<64x64xf32> -> vector<64x64xf32>
    %68 = arith.addf %62, %67 : vector<64x64xf32>
    %c2_72 = arith.constant 2 : index
    %c0_73 = arith.constant 0 : index
    %c0_74 = arith.constant 0 : index
    %69 = vector.load %arg12[%c2_72, %c0_73, %c0_74] : memref<10x10x32xf32, #tpu.memory_space<vmem>>, vector<8x8x32xf32>
    %70 = vector.shape_cast %69 : vector<8x8x32xf32> to vector<64x32xf32>
    %c6 = arith.constant 6 : index
    %c0_75 = arith.constant 0 : index
    %c0_76 = arith.constant 0 : index
    %71 = vector.load %arg7[%c6, %c0_75, %c0_76] : memref<9x32x64xf32, #tpu.memory_space<vmem>>, vector<1x32x64xf32>
    %72 = vector.shape_cast %71 : vector<1x32x64xf32> to vector<32x64xf32>
    %cst_77 = arith.constant dense<0.000000e+00> : vector<64x64xf32>
    %73 = tpu.matmul %70, %72, %cst_77 {dimension_numbers = #tpu.dot_dimension_numbers<[1], [0], [0], [1], [0, 0, 1, 1], [], []>} : vector<64x32xf32>, vector<32x64xf32>, vector<64x64xf32> -> vector<64x64xf32>
    %74 = arith.addf %68, %73 : vector<64x64xf32>
    %c2_78 = arith.constant 2 : index
    %c1_79 = arith.constant 1 : index
    %c0_80 = arith.constant 0 : index
    %75 = vector.load %arg12[%c2_78, %c1_79, %c0_80] : memref<10x10x32xf32, #tpu.memory_space<vmem>>, vector<8x8x32xf32>
    %76 = vector.shape_cast %75 : vector<8x8x32xf32> to vector<64x32xf32>
    %c7 = arith.constant 7 : index
    %c0_81 = arith.constant 0 : index
    %c0_82 = arith.constant 0 : index
    %77 = vector.load %arg7[%c7, %c0_81, %c0_82] : memref<9x32x64xf32, #tpu.memory_space<vmem>>, vector<1x32x64xf32>
    %78 = vector.shape_cast %77 : vector<1x32x64xf32> to vector<32x64xf32>
    %cst_83 = arith.constant dense<0.000000e+00> : vector<64x64xf32>
    %79 = tpu.matmul %76, %78, %cst_83 {dimension_numbers = #tpu.dot_dimension_numbers<[1], [0], [0], [1], [0, 0, 1, 1], [], []>} : vector<64x32xf32>, vector<32x64xf32>, vector<64x64xf32> -> vector<64x64xf32>
    %80 = arith.addf %74, %79 : vector<64x64xf32>
    %c2_84 = arith.constant 2 : index
    %c2_85 = arith.constant 2 : index
    %c0_86 = arith.constant 0 : index
    %81 = vector.load %arg12[%c2_84, %c2_85, %c0_86] : memref<10x10x32xf32, #tpu.memory_space<vmem>>, vector<8x8x32xf32>
    %82 = vector.shape_cast %81 : vector<8x8x32xf32> to vector<64x32xf32>
    %c8 = arith.constant 8 : index
    %c0_87 = arith.constant 0 : index
    %c0_88 = arith.constant 0 : index
    %83 = vector.load %arg7[%c8, %c0_87, %c0_88] : memref<9x32x64xf32, #tpu.memory_space<vmem>>, vector<1x32x64xf32>
    %84 = vector.shape_cast %83 : vector<1x32x64xf32> to vector<32x64xf32>
    %cst_89 = arith.constant dense<0.000000e+00> : vector<64x64xf32>
    %85 = tpu.matmul %82, %84, %cst_89 {dimension_numbers = #tpu.dot_dimension_numbers<[1], [0], [0], [1], [0, 0, 1, 1], [], []>} : vector<64x32xf32>, vector<32x64xf32>, vector<64x64xf32> -> vector<64x64xf32>
    %86 = arith.addf %80, %85 : vector<64x64xf32>
    %c0_90 = arith.constant 0 : index
    %c0_91 = arith.constant 0 : index
    %87 = vector.load %arg8[%c0_90, %c0_91] : memref<1x64xf32, #tpu.memory_space<vmem>>, vector<1x64xf32>
    %88 = vector.broadcast %87 : vector<1x64xf32> to vector<64x64xf32>
    %89 = arith.addf %86, %88 : vector<64x64xf32>
    %90 = vector.shape_cast %89 : vector<64x64xf32> to vector<1x8x8x64xf32>
    %c0_92 = arith.constant 0 : index
    %c0_93 = arith.constant 0 : index
    %c0_94 = arith.constant 0 : index
    %c0_95 = arith.constant 0 : index
    %91 = vector.load %arg10[%c0_92, %c0_93, %c0_94, %c0_95] : memref<1x8x8x64xf32, #tpu.memory_space<vmem>>, vector<1x8x8x64xf32>
    tpu.vector_store %arg10[%c0_92, %c0_93, %c0_94, %c0_95], %90 {strides = array<i32>} : memref<1x8x8x64xf32, #tpu.memory_space<vmem>>, vector<1x8x8x64xf32>,
    %cst_96 = arith.constant dense<0.000000e+00> : vector<64xf32>
    %92 = vector.multi_reduction <add>, %89, %cst_96 [0] : vector<64x64xf32> to vector<64xf32>
    %93 = vector.shape_cast %92 : vector<64xf32> to vector<1x64xf32>
    %c0_97 = arith.constant 0 : index
    %c0_98 = arith.constant 0 : index
    %94 = vector.load %arg9[%c0_97, %c0_98] : memref<64x8xf32, #tpu.memory_space<vmem>>, vector<64x8xf32>
    %cst_99 = arith.constant dense<0.000000e+00> : vector<1x8xf32>
    %95 = tpu.matmul %93, %94, %cst_99 {dimension_numbers = #tpu.dot_dimension_numbers<[1], [0], [0], [1], [0, 0, 1, 1], [], []>} : vector<1x64xf32>, vector<64x8xf32>, vector<1x8xf32> -> vector<1x8xf32>
    %96 = arith.mulf %89, %89 : vector<64x64xf32>
    %cst_100 = arith.constant dense<0.000000e+00> : vector<64xf32>
    %97 = vector.multi_reduction <add>, %96, %cst_100 [0] : vector<64x64xf32> to vector<64xf32>
    %98 = vector.shape_cast %97 : vector<64xf32> to vector<1x64xf32>
    %c0_101 = arith.constant 0 : index
    %c0_102 = arith.constant 0 : index
    %99 = vector.load %arg9[%c0_101, %c0_102] : memref<64x8xf32, #tpu.memory_space<vmem>>, vector<64x8xf32>
    %cst_103 = arith.constant dense<0.000000e+00> : vector<1x8xf32>
    %100 = tpu.matmul %98, %99, %cst_103 {dimension_numbers = #tpu.dot_dimension_numbers<[1], [0], [0], [1], [0, 0, 1, 1], [], []>} : vector<1x64xf32>, vector<64x8xf32>, vector<1x8xf32> -> vector<1x8xf32>
    %101 = vector.shape_cast %95 : vector<1x8xf32> to vector<1x1x1x8xf32>
    %c0_104 = arith.constant 0 : index
    %c0_105 = arith.constant 0 : index
    %c0_106 = arith.constant 0 : index
    %c0_107 = arith.constant 0 : index
    %102 = vector.load %arg11[%c0_104, %c0_105, %c0_106, %c0_107] : memref<1x1x2x8xf32, #tpu.memory_space<vmem>>, vector<1x1x1x8xf32>
    tpu.vector_store %arg11[%c0_104, %c0_105, %c0_106, %c0_107], %101 {strides = array<i32>} : memref<1x1x2x8xf32, #tpu.memory_space<vmem>>, vector<1x1x1x8xf32>,
    %103 = vector.shape_cast %100 : vector<1x8xf32> to vector<1x1x1x8xf32>
    %c0_108 = arith.constant 0 : index
    %c0_109 = arith.constant 0 : index
    %c1_110 = arith.constant 1 : index
    %c0_111 = arith.constant 0 : index
    %104 = vector.load %arg11[%c0_108, %c0_109, %c1_110, %c0_111] : memref<1x1x2x8xf32, #tpu.memory_space<vmem>>, vector<1x1x1x8xf32>
    tpu.vector_store %arg11[%c0_108, %c0_109, %c1_110, %c0_111], %103 {strides = array<i32>} : memref<1x1x2x8xf32, #tpu.memory_space<vmem>>, vector<1x1x1x8xf32>,
    return
  }
  func.func @transform_0(%arg0: i32, %arg1: i32) -> (i32, i32, i32, i32) {
    %c0_i32 = arith.constant 0 : i32
    %c0_i32_0 = arith.constant 0 : i32
    %c0_i32_1 = arith.constant 0 : i32
    return %arg0, %arg1, %c0_i32, %c0_i32_0 : i32, i32, i32, i32
  }
  func.func @transform_1(%arg0: i32, %arg1: i32) -> (i32, i32, i32, i32) {
    %c8_i32 = arith.constant 8 : i32
    %0 = arith.muli %arg1, %c8_i32 : i32
    %c1_i32 = arith.constant 1 : i32
    %1 = arith.subi %0, %c1_i32 : i32
    %c0_i32 = arith.constant 0 : i32
    %2 = arith.maxsi %1, %c0_i32 : i32
    %c0_i32_0 = arith.constant 0 : i32
    %c0_i32_1 = arith.constant 0 : i32
    %c0_i32_2 = arith.constant 0 : i32
    return %arg0, %2, %c0_i32_0, %c0_i32_1 : i32, i32, i32, i32
  }
  func.func @transform_2(%arg0: i32, %arg1: i32) -> (i32, i32, i32, i32) {
    %c8_i32 = arith.constant 8 : i32
    %0 = arith.muli %arg1, %c8_i32 : i32
    %c8_i32_0 = arith.constant 8 : i32
    %1 = arith.addi %0, %c8_i32_0 : i32
    %c7_i32 = arith.constant 7 : i32
    %2 = arith.minsi %1, %c7_i32 : i32
    %c0_i32 = arith.constant 0 : i32
    %c0_i32_1 = arith.constant 0 : i32
    %c0_i32_2 = arith.constant 0 : i32
    return %arg0, %2, %c0_i32, %c0_i32_1 : i32, i32, i32, i32
  }
  func.func @transform_3(%arg0: i32, %arg1: i32) -> (i32, i32, i32) {
    %c0_i32 = arith.constant 0 : i32
    %c0_i32_0 = arith.constant 0 : i32
    %c0_i32_1 = arith.constant 0 : i32
    return %arg0, %c0_i32, %c0_i32_0 : i32, i32, i32
  }
  func.func @transform_4(%arg0: i32, %arg1: i32) -> (i32, i32, i32) {
    %c0_i32 = arith.constant 0 : i32
    %c0_i32_0 = arith.constant 0 : i32
    %c0_i32_1 = arith.constant 0 : i32
    return %arg0, %c0_i32, %c0_i32_0 : i32, i32, i32
  }
  func.func @transform_5(%arg0: i32, %arg1: i32) -> (i32, i32, i32) {
    %c0_i32 = arith.constant 0 : i32
    %c0_i32_0 = arith.constant 0 : i32
    %c0_i32_1 = arith.constant 0 : i32
    %c0_i32_2 = arith.constant 0 : i32
    return %c0_i32, %c0_i32_0, %c0_i32_1 : i32, i32, i32
  }
  func.func @transform_6(%arg0: i32, %arg1: i32) -> (i32, i32) {
    %c0_i32 = arith.constant 0 : i32
    %c0_i32_0 = arith.constant 0 : i32
    %c0_i32_1 = arith.constant 0 : i32
    return %c0_i32, %c0_i32_0 : i32, i32
  }
  func.func @transform_7(%arg0: i32, %arg1: i32) -> (i32, i32) {
    %c0_i32 = arith.constant 0 : i32
    %c0_i32_0 = arith.constant 0 : i32
    %c0_i32_1 = arith.constant 0 : i32
    return %c0_i32, %c0_i32_0 : i32, i32
  }
  func.func @transform_8(%arg0: i32, %arg1: i32) -> (i32, i32, i32, i32) {
    %c0_i32 = arith.constant 0 : i32
    %c0_i32_0 = arith.constant 0 : i32
    %c0_i32_1 = arith.constant 0 : i32
    return %arg0, %arg1, %c0_i32, %c0_i32_0 : i32, i32, i32, i32
  }
  func.func @transform_9(%arg0: i32, %arg1: i32) -> (i32, i32, i32, i32) {
    %c0_i32 = arith.constant 0 : i32
    %c0_i32_0 = arith.constant 0 : i32
    %c0_i32_1 = arith.constant 0 : i32
    return %arg0, %arg1, %c0_i32, %c0_i32_0 : i32, i32, i32, i32
  }
}

module attributes {stable_mosaic.version = 11 : i64} {
  func.func @_affine_act_kernel(%arg0: i32, %arg1: i32, %arg2: memref<1x8x8x64xf32, #tpu.memory_space<vmem>>, %arg3: memref<1x1x64xf32, #tpu.memory_space<vmem>>, %arg4: memref<1x1x64xf32, #tpu.memory_space<vmem>>, %arg5: memref<1x8x8x64xf32, #tpu.memory_space<vmem>>) attributes {dimension_semantics = [#tpu.dimension_semantics<parallel>, #tpu.dimension_semantics<parallel>], iteration_bounds = array<i64: 2, 1>, scalar_prefetch = 0 : i64, scratch_operands = 0 : i64, tpu.core_type = #tpu.core_type<tc>, window_params = [{transform_indices = @transform_0, window_bounds = array<i64: 1, 8, 8, 64>}, {transform_indices = @transform_1, window_bounds = array<i64: 1, 1, 64>}, {transform_indices = @transform_2, window_bounds = array<i64: 1, 1, 64>}, {transform_indices = @transform_3, window_bounds = array<i64: 1, 8, 8, 64>}]} {
    %c0 = arith.constant 0 : index
    %c0_0 = arith.constant 0 : index
    %c0_1 = arith.constant 0 : index
    %0 = vector.load %arg3[%c0, %c0_0, %c0_1] : memref<1x1x64xf32, #tpu.memory_space<vmem>>, vector<1x1x64xf32>
    %1 = vector.shape_cast %0 : vector<1x1x64xf32> to vector<1x1x1x64xf32>
    %c0_2 = arith.constant 0 : index
    %c0_3 = arith.constant 0 : index
    %c0_4 = arith.constant 0 : index
    %2 = vector.load %arg4[%c0_2, %c0_3, %c0_4] : memref<1x1x64xf32, #tpu.memory_space<vmem>>, vector<1x1x64xf32>
    %3 = vector.shape_cast %2 : vector<1x1x64xf32> to vector<1x1x1x64xf32>
    %c0_5 = arith.constant 0 : index
    %c0_6 = arith.constant 0 : index
    %c0_7 = arith.constant 0 : index
    %c0_8 = arith.constant 0 : index
    %4 = vector.load %arg2[%c0_5, %c0_6, %c0_7, %c0_8] : memref<1x8x8x64xf32, #tpu.memory_space<vmem>>, vector<1x8x8x64xf32>
    %5 = vector.broadcast %1 : vector<1x1x1x64xf32> to vector<1x8x8x64xf32>
    %6 = arith.mulf %4, %5 : vector<1x8x8x64xf32>
    %7 = vector.broadcast %3 : vector<1x1x1x64xf32> to vector<1x8x8x64xf32>
    %8 = arith.addf %6, %7 : vector<1x8x8x64xf32>
    %cst = arith.constant 0.000000e+00 : f32
    %9 = vector.broadcast %cst : f32 to vector<1x8x8x64xf32>
    %10 = arith.cmpf oge, %8, %9 : vector<1x8x8x64xf32>
    %cst_9 = arith.constant 0.00999999977 : f32
    %11 = vector.broadcast %cst_9 : f32 to vector<1x8x8x64xf32>
    %12 = arith.mulf %11, %8 : vector<1x8x8x64xf32>
    %13 = arith.select %10, %8, %12 : vector<1x8x8x64xi1>, vector<1x8x8x64xf32>
    %c0_10 = arith.constant 0 : index
    %c0_11 = arith.constant 0 : index
    %c0_12 = arith.constant 0 : index
    %c0_13 = arith.constant 0 : index
    %14 = vector.load %arg5[%c0_10, %c0_11, %c0_12, %c0_13] : memref<1x8x8x64xf32, #tpu.memory_space<vmem>>, vector<1x8x8x64xf32>
    tpu.vector_store %arg5[%c0_10, %c0_11, %c0_12, %c0_13], %13 {strides = array<i32>} : memref<1x8x8x64xf32, #tpu.memory_space<vmem>>, vector<1x8x8x64xf32>,
    return
  }
  func.func @transform_0(%arg0: i32, %arg1: i32) -> (i32, i32, i32, i32) {
    %c0_i32 = arith.constant 0 : i32
    %c0_i32_0 = arith.constant 0 : i32
    %c0_i32_1 = arith.constant 0 : i32
    return %arg0, %arg1, %c0_i32, %c0_i32_0 : i32, i32, i32, i32
  }
  func.func @transform_1(%arg0: i32, %arg1: i32) -> (i32, i32, i32) {
    %c0_i32 = arith.constant 0 : i32
    %c0_i32_0 = arith.constant 0 : i32
    %c0_i32_1 = arith.constant 0 : i32
    return %arg0, %c0_i32, %c0_i32_0 : i32, i32, i32
  }
  func.func @transform_2(%arg0: i32, %arg1: i32) -> (i32, i32, i32) {
    %c0_i32 = arith.constant 0 : i32
    %c0_i32_0 = arith.constant 0 : i32
    %c0_i32_1 = arith.constant 0 : i32
    return %arg0, %c0_i32, %c0_i32_0 : i32, i32, i32
  }
  func.func @transform_3(%arg0: i32, %arg1: i32) -> (i32, i32, i32, i32) {
    %c0_i32 = arith.constant 0 : i32
    %c0_i32_0 = arith.constant 0 : i32
    %c0_i32_1 = arith.constant 0 : i32
    return %arg0, %arg1, %c0_i32, %c0_i32_0 : i32, i32, i32, i32
  }
}

module attributes {stable_mosaic.version = 11 : i64} {
  func.func @_conv_stats_kernel(%arg0: i32, %arg1: i32, %arg2: memref<1x8x8x64xf32, #tpu.memory_space<vmem>>, %arg3: memref<1x1x8x64xf32, #tpu.memory_space<vmem>>, %arg4: memref<1x1x8x64xf32, #tpu.memory_space<vmem>>, %arg5: memref<1x1x64xf32, #tpu.memory_space<vmem>>, %arg6: memref<1x1x64xf32, #tpu.memory_space<vmem>>, %arg7: memref<9x64x64xf32, #tpu.memory_space<vmem>>, %arg8: memref<1x64xf32, #tpu.memory_space<vmem>>, %arg9: memref<64x8xf32, #tpu.memory_space<vmem>>, %arg10: memref<1x8x8x64xf32, #tpu.memory_space<vmem>>, %arg11: memref<1x1x2x8xf32, #tpu.memory_space<vmem>>, %arg12: memref<10x10x64xf32, #tpu.memory_space<vmem>>) attributes {dimension_semantics = [#tpu.dimension_semantics<parallel>, #tpu.dimension_semantics<parallel>], iteration_bounds = array<i64: 2, 1>, scalar_prefetch = 0 : i64, scratch_operands = 1 : i64, tpu.core_type = #tpu.core_type<tc>, window_params = [{transform_indices = @transform_0, window_bounds = array<i64: 1, 8, 8, 64>}, {transform_indices = @transform_1, window_bounds = array<i64: 1, 1, 8, 64>}, {transform_indices = @transform_2, window_bounds = array<i64: 1, 1, 8, 64>}, {transform_indices = @transform_3, window_bounds = array<i64: 1, 1, 64>}, {transform_indices = @transform_4, window_bounds = array<i64: 1, 1, 64>}, {pipeline_mode = #tpu.pipeline_mode<synchronous>, transform_indices = @transform_5, window_bounds = array<i64: 9, 64, 64>}, {pipeline_mode = #tpu.pipeline_mode<synchronous>, transform_indices = @transform_6, window_bounds = array<i64: 1, 64>}, {pipeline_mode = #tpu.pipeline_mode<synchronous>, transform_indices = @transform_7, window_bounds = array<i64: 64, 8>}, {transform_indices = @transform_8, window_bounds = array<i64: 1, 8, 8, 64>}, {transform_indices = @transform_9, window_bounds = array<i64: 1, 1, 2, 8>}]} {
    %c0 = arith.constant 0 : index
    %c0_0 = arith.constant 0 : index
    %c0_1 = arith.constant 0 : index
    %0 = vector.load %arg5[%c0, %c0_0, %c0_1] : memref<1x1x64xf32, #tpu.memory_space<vmem>>, vector<1x1x64xf32>
    %c0_2 = arith.constant 0 : index
    %c0_3 = arith.constant 0 : index
    %c0_4 = arith.constant 0 : index
    %1 = vector.load %arg6[%c0_2, %c0_3, %c0_4] : memref<1x1x64xf32, #tpu.memory_space<vmem>>, vector<1x1x64xf32>
    %cst = arith.constant 0.000000e+00 : f32
    %2 = vector.broadcast %cst : f32 to vector<10x1x64xf32>
    %c0_5 = arith.constant 0 : index
    %c0_6 = arith.constant 0 : index
    %c0_7 = arith.constant 0 : index
    %3 = vector.load %arg12[%c0_5, %c0_6, %c0_7] : memref<10x10x64xf32, #tpu.memory_space<vmem>>, vector<10x1x64xf32>
    tpu.vector_store %arg12[%c0_5, %c0_6, %c0_7], %2 {strides = array<i32>} : memref<10x10x64xf32, #tpu.memory_space<vmem>>, vector<10x1x64xf32>,
    %c0_8 = arith.constant 0 : index
    %c9 = arith.constant 9 : index
    %c0_9 = arith.constant 0 : index
    %4 = vector.load %arg12[%c0_8, %c9, %c0_9] : memref<10x10x64xf32, #tpu.memory_space<vmem>>, vector<10x1x64xf32>
    tpu.vector_store %arg12[%c0_8, %c9, %c0_9], %2 {strides = array<i32>} : memref<10x10x64xf32, #tpu.memory_space<vmem>>, vector<10x1x64xf32>,
    %c0_10 = arith.constant 0 : index
    %c0_11 = arith.constant 0 : index
    %c0_12 = arith.constant 0 : index
    %c0_13 = arith.constant 0 : index
    %5 = vector.load %arg2[%c0_10, %c0_11, %c0_12, %c0_13] : memref<1x8x8x64xf32, #tpu.memory_space<vmem>>, vector<1x8x8x64xf32>
    %6 = vector.shape_cast %5 : vector<1x8x8x64xf32> to vector<8x8x64xf32>
    %7 = vector.broadcast %0 : vector<1x1x64xf32> to vector<8x8x64xf32>
    %8 = arith.mulf %6, %7 : vector<8x8x64xf32>
    %9 = vector.broadcast %1 : vector<1x1x64xf32> to vector<8x8x64xf32>
    %10 = arith.addf %8, %9 : vector<8x8x64xf32>
    %cst_14 = arith.constant 0.000000e+00 : f32
    %11 = vector.broadcast %cst_14 : f32 to vector<8x8x64xf32>
    %12 = arith.cmpf oge, %10, %11 : vector<8x8x64xf32>
    %cst_15 = arith.constant 0.00999999977 : f32
    %13 = vector.broadcast %cst_15 : f32 to vector<8x8x64xf32>
    %14 = arith.mulf %13, %10 : vector<8x8x64xf32>
    %15 = arith.select %12, %10, %14 : vector<8x8x64xi1>, vector<8x8x64xf32>
    %c1 = arith.constant 1 : index
    %c1_16 = arith.constant 1 : index
    %c0_17 = arith.constant 0 : index
    %16 = vector.load %arg12[%c1, %c1_16, %c0_17] : memref<10x10x64xf32, #tpu.memory_space<vmem>>, vector<8x8x64xf32>
    tpu.vector_store %arg12[%c1, %c1_16, %c0_17], %15 {strides = array<i32>} : memref<10x10x64xf32, #tpu.memory_space<vmem>>, vector<8x8x64xf32>,
    %c0_i32 = arith.constant 0 : i32
    %17 = arith.cmpi eq, %arg1, %c0_i32 : i32
    %c0_18 = arith.constant 0 : index
    %c0_19 = arith.constant 0 : index
    %c0_20 = arith.constant 0 : index
    %c0_21 = arith.constant 0 : index
    %18 = vector.load %arg3[%c0_18, %c0_19, %c0_20, %c0_21] : memref<1x1x8x64xf32, #tpu.memory_space<vmem>>, vector<1x1x8x64xf32>
    %19 = vector.shape_cast %18 : vector<1x1x8x64xf32> to vector<1x8x64xf32>
    %20 = vector.broadcast %0 : vector<1x1x64xf32> to vector<1x8x64xf32>
    %21 = arith.mulf %19, %20 : vector<1x8x64xf32>
    %22 = vector.broadcast %1 : vector<1x1x64xf32> to vector<1x8x64xf32>
    %23 = arith.addf %21, %22 : vector<1x8x64xf32>
    %cst_22 = arith.constant 0.000000e+00 : f32
    %24 = vector.broadcast %cst_22 : f32 to vector<1x8x64xf32>
    %25 = arith.cmpf oge, %23, %24 : vector<1x8x64xf32>
    %cst_23 = arith.constant 0.00999999977 : f32
    %26 = vector.broadcast %cst_23 : f32 to vector<1x8x64xf32>
    %27 = arith.mulf %26, %23 : vector<1x8x64xf32>
    %28 = arith.select %25, %23, %27 : vector<1x8x64xi1>, vector<1x8x64xf32>
    %cst_24 = arith.constant 0.000000e+00 : f32
    %29 = vector.broadcast %cst_24 : f32 to vector<1x8x64xf32>
    %30 = arith.select %17, %29, %28 : vector<1x8x64xf32>
    %c0_i32_25 = arith.constant 0 : i32
    %31 = arith.cmpi eq, %arg1, %c0_i32_25 : i32
    %c0_26 = arith.constant 0 : index
    %c0_27 = arith.constant 0 : index
    %c0_28 = arith.constant 0 : index
    %c0_29 = arith.constant 0 : index
    %32 = vector.load %arg4[%c0_26, %c0_27, %c0_28, %c0_29] : memref<1x1x8x64xf32, #tpu.memory_space<vmem>>, vector<1x1x8x64xf32>
    %33 = vector.shape_cast %32 : vector<1x1x8x64xf32> to vector<1x8x64xf32>
    %34 = vector.broadcast %0 : vector<1x1x64xf32> to vector<1x8x64xf32>
    %35 = arith.mulf %33, %34 : vector<1x8x64xf32>
    %36 = vector.broadcast %1 : vector<1x1x64xf32> to vector<1x8x64xf32>
    %37 = arith.addf %35, %36 : vector<1x8x64xf32>
    %cst_30 = arith.constant 0.000000e+00 : f32
    %38 = vector.broadcast %cst_30 : f32 to vector<1x8x64xf32>
    %39 = arith.cmpf oge, %37, %38 : vector<1x8x64xf32>
    %cst_31 = arith.constant 0.00999999977 : f32
    %40 = vector.broadcast %cst_31 : f32 to vector<1x8x64xf32>
    %41 = arith.mulf %40, %37 : vector<1x8x64xf32>
    %42 = arith.select %39, %37, %41 : vector<1x8x64xi1>, vector<1x8x64xf32>
    %cst_32 = arith.constant 0.000000e+00 : f32
    %43 = vector.broadcast %cst_32 : f32 to vector<1x8x64xf32>
    %44 = arith.select %31, %43, %42 : vector<1x8x64xf32>
    %c0_33 = arith.constant 0 : index
    %c1_34 = arith.constant 1 : index
    %c0_35 = arith.constant 0 : index
    %45 = vector.load %arg12[%c0_33, %c1_34, %c0_35] : memref<10x10x64xf32, #tpu.memory_space<vmem>>, vector<1x8x64xf32>
    tpu.vector_store %arg12[%c0_33, %c1_34, %c0_35], %30 {strides = array<i32>} : memref<10x10x64xf32, #tpu.memory_space<vmem>>, vector<1x8x64xf32>,
    %c9_36 = arith.constant 9 : index
    %c1_37 = arith.constant 1 : index
    %c0_38 = arith.constant 0 : index
    %46 = vector.load %arg12[%c9_36, %c1_37, %c0_38] : memref<10x10x64xf32, #tpu.memory_space<vmem>>, vector<1x8x64xf32>
    tpu.vector_store %arg12[%c9_36, %c1_37, %c0_38], %44 {strides = array<i32>} : memref<10x10x64xf32, #tpu.memory_space<vmem>>, vector<1x8x64xf32>,
    %cst_39 = arith.constant 0.000000e+00 : f32
    %47 = vector.broadcast %cst_39 : f32 to vector<64x64xf32>
    %c0_40 = arith.constant 0 : index
    %c0_41 = arith.constant 0 : index
    %c0_42 = arith.constant 0 : index
    %48 = vector.load %arg12[%c0_40, %c0_41, %c0_42] : memref<10x10x64xf32, #tpu.memory_space<vmem>>, vector<8x8x64xf32>
    %49 = vector.shape_cast %48 : vector<8x8x64xf32> to vector<64x64xf32>
    %c0_43 = arith.constant 0 : index
    %c0_44 = arith.constant 0 : index
    %c0_45 = arith.constant 0 : index
    %50 = vector.load %arg7[%c0_43, %c0_44, %c0_45] : memref<9x64x64xf32, #tpu.memory_space<vmem>>, vector<1x64x64xf32>
    %51 = vector.shape_cast %50 : vector<1x64x64xf32> to vector<64x64xf32>
    %cst_46 = arith.constant dense<0.000000e+00> : vector<64x64xf32>
    %52 = tpu.matmul %49, %51, %cst_46 {dimension_numbers = #tpu.dot_dimension_numbers<[1], [0], [0], [1], [0, 0, 1, 1], [], []>} : vector<64x64xf32>, vector<64x64xf32>, vector<64x64xf32> -> vector<64x64xf32>
    %53 = arith.addf %47, %52 : vector<64x64xf32>
    %c0_47 = arith.constant 0 : index
    %c1_48 = arith.constant 1 : index
    %c0_49 = arith.constant 0 : index
    %54 = vector.load %arg12[%c0_47, %c1_48, %c0_49] : memref<10x10x64xf32, #tpu.memory_space<vmem>>, vector<8x8x64xf32>
    %55 = vector.shape_cast %54 : vector<8x8x64xf32> to vector<64x64xf32>
    %c1_50 = arith.constant 1 : index
    %c0_51 = arith.constant 0 : index
    %c0_52 = arith.constant 0 : index
    %56 = vector.load %arg7[%c1_50, %c0_51, %c0_52] : memref<9x64x64xf32, #tpu.memory_space<vmem>>, vector<1x64x64xf32>
    %57 = vector.shape_cast %56 : vector<1x64x64xf32> to vector<64x64xf32>
    %cst_53 = arith.constant dense<0.000000e+00> : vector<64x64xf32>
    %58 = tpu.matmul %55, %57, %cst_53 {dimension_numbers = #tpu.dot_dimension_numbers<[1], [0], [0], [1], [0, 0, 1, 1], [], []>} : vector<64x64xf32>, vector<64x64xf32>, vector<64x64xf32> -> vector<64x64xf32>
    %59 = arith.addf %53, %58 : vector<64x64xf32>
    %c0_54 = arith.constant 0 : index
    %c2 = arith.constant 2 : index
    %c0_55 = arith.constant 0 : index
    %60 = vector.load %arg12[%c0_54, %c2, %c0_55] : memref<10x10x64xf32, #tpu.memory_space<vmem>>, vector<8x8x64xf32>
    %61 = vector.shape_cast %60 : vector<8x8x64xf32> to vector<64x64xf32>
    %c2_56 = arith.constant 2 : index
    %c0_57 = arith.constant 0 : index
    %c0_58 = arith.constant 0 : index
    %62 = vector.load %arg7[%c2_56, %c0_57, %c0_58] : memref<9x64x64xf32, #tpu.memory_space<vmem>>, vector<1x64x64xf32>
    %63 = vector.shape_cast %62 : vector<1x64x64xf32> to vector<64x64xf32>
    %cst_59 = arith.constant dense<0.000000e+00> : vector<64x64xf32>
    %64 = tpu.matmul %61, %63, %cst_59 {dimension_numbers = #tpu.dot_dimension_numbers<[1], [0], [0], [1], [0, 0, 1, 1], [], []>} : vector<64x64xf32>, vector<64x64xf32>, vector<64x64xf32> -> vector<64x64xf32>
    %65 = arith.addf %59, %64 : vector<64x64xf32>
    %c1_60 = arith.constant 1 : index
    %c0_61 = arith.constant 0 : index
    %c0_62 = arith.constant 0 : index
    %66 = vector.load %arg12[%c1_60, %c0_61, %c0_62] : memref<10x10x64xf32, #tpu.memory_space<vmem>>, vector<8x8x64xf32>
    %67 = vector.shape_cast %66 : vector<8x8x64xf32> to vector<64x64xf32>
    %c3 = arith.constant 3 : index
    %c0_63 = arith.constant 0 : index
    %c0_64 = arith.constant 0 : index
    %68 = vector.load %arg7[%c3, %c0_63, %c0_64] : memref<9x64x64xf32, #tpu.memory_space<vmem>>, vector<1x64x64xf32>
    %69 = vector.shape_cast %68 : vector<1x64x64xf32> to vector<64x64xf32>
    %cst_65 = arith.constant dense<0.000000e+00> : vector<64x64xf32>
    %70 = tpu.matmul %67, %69, %cst_65 {dimension_numbers = #tpu.dot_dimension_numbers<[1], [0], [0], [1], [0, 0, 1, 1], [], []>} : vector<64x64xf32>, vector<64x64xf32>, vector<64x64xf32> -> vector<64x64xf32>
    %71 = arith.addf %65, %70 : vector<64x64xf32>
    %c1_66 = arith.constant 1 : index
    %c1_67 = arith.constant 1 : index
    %c0_68 = arith.constant 0 : index
    %72 = vector.load %arg12[%c1_66, %c1_67, %c0_68] : memref<10x10x64xf32, #tpu.memory_space<vmem>>, vector<8x8x64xf32>
    %73 = vector.shape_cast %72 : vector<8x8x64xf32> to vector<64x64xf32>
    %c4 = arith.constant 4 : index
    %c0_69 = arith.constant 0 : index
    %c0_70 = arith.constant 0 : index
    %74 = vector.load %arg7[%c4, %c0_69, %c0_70] : memref<9x64x64xf32, #tpu.memory_space<vmem>>, vector<1x64x64xf32>
    %75 = vector.shape_cast %74 : vector<1x64x64xf32> to vector<64x64xf32>
    %cst_71 = arith.constant dense<0.000000e+00> : vector<64x64xf32>
    %76 = tpu.matmul %73, %75, %cst_71 {dimension_numbers = #tpu.dot_dimension_numbers<[1], [0], [0], [1], [0, 0, 1, 1], [], []>} : vector<64x64xf32>, vector<64x64xf32>, vector<64x64xf32> -> vector<64x64xf32>
    %77 = arith.addf %71, %76 : vector<64x64xf32>
    %c1_72 = arith.constant 1 : index
    %c2_73 = arith.constant 2 : index
    %c0_74 = arith.constant 0 : index
    %78 = vector.load %arg12[%c1_72, %c2_73, %c0_74] : memref<10x10x64xf32, #tpu.memory_space<vmem>>, vector<8x8x64xf32>
    %79 = vector.shape_cast %78 : vector<8x8x64xf32> to vector<64x64xf32>
    %c5 = arith.constant 5 : index
    %c0_75 = arith.constant 0 : index
    %c0_76 = arith.constant 0 : index
    %80 = vector.load %arg7[%c5, %c0_75, %c0_76] : memref<9x64x64xf32, #tpu.memory_space<vmem>>, vector<1x64x64xf32>
    %81 = vector.shape_cast %80 : vector<1x64x64xf32> to vector<64x64xf32>
    %cst_77 = arith.constant dense<0.000000e+00> : vector<64x64xf32>
    %82 = tpu.matmul %79, %81, %cst_77 {dimension_numbers = #tpu.dot_dimension_numbers<[1], [0], [0], [1], [0, 0, 1, 1], [], []>} : vector<64x64xf32>, vector<64x64xf32>, vector<64x64xf32> -> vector<64x64xf32>
    %83 = arith.addf %77, %82 : vector<64x64xf32>
    %c2_78 = arith.constant 2 : index
    %c0_79 = arith.constant 0 : index
    %c0_80 = arith.constant 0 : index
    %84 = vector.load %arg12[%c2_78, %c0_79, %c0_80] : memref<10x10x64xf32, #tpu.memory_space<vmem>>, vector<8x8x64xf32>
    %85 = vector.shape_cast %84 : vector<8x8x64xf32> to vector<64x64xf32>
    %c6 = arith.constant 6 : index
    %c0_81 = arith.constant 0 : index
    %c0_82 = arith.constant 0 : index
    %86 = vector.load %arg7[%c6, %c0_81, %c0_82] : memref<9x64x64xf32, #tpu.memory_space<vmem>>, vector<1x64x64xf32>
    %87 = vector.shape_cast %86 : vector<1x64x64xf32> to vector<64x64xf32>
    %cst_83 = arith.constant dense<0.000000e+00> : vector<64x64xf32>
    %88 = tpu.matmul %85, %87, %cst_83 {dimension_numbers = #tpu.dot_dimension_numbers<[1], [0], [0], [1], [0, 0, 1, 1], [], []>} : vector<64x64xf32>, vector<64x64xf32>, vector<64x64xf32> -> vector<64x64xf32>
    %89 = arith.addf %83, %88 : vector<64x64xf32>
    %c2_84 = arith.constant 2 : index
    %c1_85 = arith.constant 1 : index
    %c0_86 = arith.constant 0 : index
    %90 = vector.load %arg12[%c2_84, %c1_85, %c0_86] : memref<10x10x64xf32, #tpu.memory_space<vmem>>, vector<8x8x64xf32>
    %91 = vector.shape_cast %90 : vector<8x8x64xf32> to vector<64x64xf32>
    %c7 = arith.constant 7 : index
    %c0_87 = arith.constant 0 : index
    %c0_88 = arith.constant 0 : index
    %92 = vector.load %arg7[%c7, %c0_87, %c0_88] : memref<9x64x64xf32, #tpu.memory_space<vmem>>, vector<1x64x64xf32>
    %93 = vector.shape_cast %92 : vector<1x64x64xf32> to vector<64x64xf32>
    %cst_89 = arith.constant dense<0.000000e+00> : vector<64x64xf32>
    %94 = tpu.matmul %91, %93, %cst_89 {dimension_numbers = #tpu.dot_dimension_numbers<[1], [0], [0], [1], [0, 0, 1, 1], [], []>} : vector<64x64xf32>, vector<64x64xf32>, vector<64x64xf32> -> vector<64x64xf32>
    %95 = arith.addf %89, %94 : vector<64x64xf32>
    %c2_90 = arith.constant 2 : index
    %c2_91 = arith.constant 2 : index
    %c0_92 = arith.constant 0 : index
    %96 = vector.load %arg12[%c2_90, %c2_91, %c0_92] : memref<10x10x64xf32, #tpu.memory_space<vmem>>, vector<8x8x64xf32>
    %97 = vector.shape_cast %96 : vector<8x8x64xf32> to vector<64x64xf32>
    %c8 = arith.constant 8 : index
    %c0_93 = arith.constant 0 : index
    %c0_94 = arith.constant 0 : index
    %98 = vector.load %arg7[%c8, %c0_93, %c0_94] : memref<9x64x64xf32, #tpu.memory_space<vmem>>, vector<1x64x64xf32>
    %99 = vector.shape_cast %98 : vector<1x64x64xf32> to vector<64x64xf32>
    %cst_95 = arith.constant dense<0.000000e+00> : vector<64x64xf32>
    %100 = tpu.matmul %97, %99, %cst_95 {dimension_numbers = #tpu.dot_dimension_numbers<[1], [0], [0], [1], [0, 0, 1, 1], [], []>} : vector<64x64xf32>, vector<64x64xf32>, vector<64x64xf32> -> vector<64x64xf32>
    %101 = arith.addf %95, %100 : vector<64x64xf32>
    %c0_96 = arith.constant 0 : index
    %c0_97 = arith.constant 0 : index
    %102 = vector.load %arg8[%c0_96, %c0_97] : memref<1x64xf32, #tpu.memory_space<vmem>>, vector<1x64xf32>
    %103 = vector.broadcast %102 : vector<1x64xf32> to vector<64x64xf32>
    %104 = arith.addf %101, %103 : vector<64x64xf32>
    %105 = vector.shape_cast %104 : vector<64x64xf32> to vector<1x8x8x64xf32>
    %c0_98 = arith.constant 0 : index
    %c0_99 = arith.constant 0 : index
    %c0_100 = arith.constant 0 : index
    %c0_101 = arith.constant 0 : index
    %106 = vector.load %arg10[%c0_98, %c0_99, %c0_100, %c0_101] : memref<1x8x8x64xf32, #tpu.memory_space<vmem>>, vector<1x8x8x64xf32>
    tpu.vector_store %arg10[%c0_98, %c0_99, %c0_100, %c0_101], %105 {strides = array<i32>} : memref<1x8x8x64xf32, #tpu.memory_space<vmem>>, vector<1x8x8x64xf32>,
    %cst_102 = arith.constant dense<0.000000e+00> : vector<64xf32>
    %107 = vector.multi_reduction <add>, %104, %cst_102 [0] : vector<64x64xf32> to vector<64xf32>
    %108 = vector.shape_cast %107 : vector<64xf32> to vector<1x64xf32>
    %c0_103 = arith.constant 0 : index
    %c0_104 = arith.constant 0 : index
    %109 = vector.load %arg9[%c0_103, %c0_104] : memref<64x8xf32, #tpu.memory_space<vmem>>, vector<64x8xf32>
    %cst_105 = arith.constant dense<0.000000e+00> : vector<1x8xf32>
    %110 = tpu.matmul %108, %109, %cst_105 {dimension_numbers = #tpu.dot_dimension_numbers<[1], [0], [0], [1], [0, 0, 1, 1], [], []>} : vector<1x64xf32>, vector<64x8xf32>, vector<1x8xf32> -> vector<1x8xf32>
    %111 = arith.mulf %104, %104 : vector<64x64xf32>
    %cst_106 = arith.constant dense<0.000000e+00> : vector<64xf32>
    %112 = vector.multi_reduction <add>, %111, %cst_106 [0] : vector<64x64xf32> to vector<64xf32>
    %113 = vector.shape_cast %112 : vector<64xf32> to vector<1x64xf32>
    %c0_107 = arith.constant 0 : index
    %c0_108 = arith.constant 0 : index
    %114 = vector.load %arg9[%c0_107, %c0_108] : memref<64x8xf32, #tpu.memory_space<vmem>>, vector<64x8xf32>
    %cst_109 = arith.constant dense<0.000000e+00> : vector<1x8xf32>
    %115 = tpu.matmul %113, %114, %cst_109 {dimension_numbers = #tpu.dot_dimension_numbers<[1], [0], [0], [1], [0, 0, 1, 1], [], []>} : vector<1x64xf32>, vector<64x8xf32>, vector<1x8xf32> -> vector<1x8xf32>
    %116 = vector.shape_cast %110 : vector<1x8xf32> to vector<1x1x1x8xf32>
    %c0_110 = arith.constant 0 : index
    %c0_111 = arith.constant 0 : index
    %c0_112 = arith.constant 0 : index
    %c0_113 = arith.constant 0 : index
    %117 = vector.load %arg11[%c0_110, %c0_111, %c0_112, %c0_113] : memref<1x1x2x8xf32, #tpu.memory_space<vmem>>, vector<1x1x1x8xf32>
    tpu.vector_store %arg11[%c0_110, %c0_111, %c0_112, %c0_113], %116 {strides = array<i32>} : memref<1x1x2x8xf32, #tpu.memory_space<vmem>>, vector<1x1x1x8xf32>,
    %118 = vector.shape_cast %115 : vector<1x8xf32> to vector<1x1x1x8xf32>
    %c0_114 = arith.constant 0 : index
    %c0_115 = arith.constant 0 : index
    %c1_116 = arith.constant 1 : index
    %c0_117 = arith.constant 0 : index
    %119 = vector.load %arg11[%c0_114, %c0_115, %c1_116, %c0_117] : memref<1x1x2x8xf32, #tpu.memory_space<vmem>>, vector<1x1x1x8xf32>
    tpu.vector_store %arg11[%c0_114, %c0_115, %c1_116, %c0_117], %118 {strides = array<i32>} : memref<1x1x2x8xf32, #tpu.memory_space<vmem>>, vector<1x1x1x8xf32>,
    return
  }
  func.func @transform_0(%arg0: i32, %arg1: i32) -> (i32, i32, i32, i32) {
    %c0_i32 = arith.constant 0 : i32
    %c0_i32_0 = arith.constant 0 : i32
    %c0_i32_1 = arith.constant 0 : i32
    return %arg0, %arg1, %c0_i32, %c0_i32_0 : i32, i32, i32, i32
  }
  func.func @transform_1(%arg0: i32, %arg1: i32) -> (i32, i32, i32, i32) {
    %c8_i32 = arith.constant 8 : i32
    %0 = arith.muli %arg1, %c8_i32 : i32
    %c1_i32 = arith.constant 1 : i32
    %1 = arith.subi %0, %c1_i32 : i32
    %c0_i32 = arith.constant 0 : i32
    %2 = arith.maxsi %1, %c0_i32 : i32
    %c0_i32_0 = arith.constant 0 : i32
    %c0_i32_1 = arith.constant 0 : i32
    %c0_i32_2 = arith.constant 0 : i32
    return %arg0, %2, %c0_i32_0, %c0_i32_1 : i32, i32, i32, i32
  }
  func.func @transform_2(%arg0: i32, %arg1: i32) -> (i32, i32, i32, i32) {
    %c8_i32 = arith.constant 8 : i32
    %0 = arith.muli %arg1, %c8_i32 : i32
    %c8_i32_0 = arith.constant 8 : i32
    %1 = arith.addi %0, %c8_i32_0 : i32
    %c7_i32 = arith.constant 7 : i32
    %2 = arith.minsi %1, %c7_i32 : i32
    %c0_i32 = arith.constant 0 : i32
    %c0_i32_1 = arith.constant 0 : i32
    %c0_i32_2 = arith.constant 0 : i32
    return %arg0, %2, %c0_i32, %c0_i32_1 : i32, i32, i32, i32
  }
  func.func @transform_3(%arg0: i32, %arg1: i32) -> (i32, i32, i32) {
    %c0_i32 = arith.constant 0 : i32
    %c0_i32_0 = arith.constant 0 : i32
    %c0_i32_1 = arith.constant 0 : i32
    return %arg0, %c0_i32, %c0_i32_0 : i32, i32, i32
  }
  func.func @transform_4(%arg0: i32, %arg1: i32) -> (i32, i32, i32) {
    %c0_i32 = arith.constant 0 : i32
    %c0_i32_0 = arith.constant 0 : i32
    %c0_i32_1 = arith.constant 0 : i32
    return %arg0, %c0_i32, %c0_i32_0 : i32, i32, i32
  }
  func.func @transform_5(%arg0: i32, %arg1: i32) -> (i32, i32, i32) {
    %c0_i32 = arith.constant 0 : i32
    %c0_i32_0 = arith.constant 0 : i32
    %c0_i32_1 = arith.constant 0 : i32
    %c0_i32_2 = arith.constant 0 : i32
    return %c0_i32, %c0_i32_0, %c0_i32_1 : i32, i32, i32
  }
  func.func @transform_6(%arg0: i32, %arg1: i32) -> (i32, i32) {
    %c0_i32 = arith.constant 0 : i32
    %c0_i32_0 = arith.constant 0 : i32
    %c0_i32_1 = arith.constant 0 : i32
    return %c0_i32, %c0_i32_0 : i32, i32
  }
  func.func @transform_7(%arg0: i32, %arg1: i32) -> (i32, i32) {
    %c0_i32 = arith.constant 0 : i32
    %c0_i32_0 = arith.constant 0 : i32
    %c0_i32_1 = arith.constant 0 : i32
    return %c0_i32, %c0_i32_0 : i32, i32
  }
  func.func @transform_8(%arg0: i32, %arg1: i32) -> (i32, i32, i32, i32) {
    %c0_i32 = arith.constant 0 : i32
    %c0_i32_0 = arith.constant 0 : i32
    %c0_i32_1 = arith.constant 0 : i32
    return %arg0, %arg1, %c0_i32, %c0_i32_0 : i32, i32, i32, i32
  }
  func.func @transform_9(%arg0: i32, %arg1: i32) -> (i32, i32, i32, i32) {
    %c0_i32 = arith.constant 0 : i32
    %c0_i32_0 = arith.constant 0 : i32
    %c0_i32_1 = arith.constant 0 : i32
    return %arg0, %arg1, %c0_i32, %c0_i32_0 : i32, i32, i32, i32
  }
}

</mosaic_0001>

<llo_original>
// kernel: tile.36
$region0: #{tile.36}
  #allocation0 [shape = 's32[1]{0}', space=sflag, size = 0x4, scoped, tag = 'scoped memory for tile.36']
  %s0 = inlined_call_operand.<no memory space> [shape: f32[], index: 0, kind: input, shape index: {}]
  %s1 = inlined_call_operand.vmem [shape: f32[2,1,32], index: 1, kind: output, shape index: {}]
  %v2 = vstv %s0
  %3 = vst [vmem:[%s1] sm:$0x1] %v2
  %s4 = scalar_lea.vmem %s1, 1
  %5 = vst [vmem:[%s4] sm:$0x1] %v2

// kernel: stacked_conv_layers_with_style.5
$region0: #{stacked_conv_layers_with_style.5}
  #allocation0 [shape = 'u32[]', space=smem, size = 0x4, offset = 0x4, fixed_abs, tag = 'smem constant byte address 0x4 - core index']
  #allocation1 [shape = 'u32[72,128]{1,0:T(1,128)}', space=vmem, size = 0x9000, scoped, tag = 'internal scratch']
  %s0 = inlined_call_operand.vmem [shape: f32[2,8,8,64], index: 0, kind: input, shape index: {}]
  %s1 = inlined_call_operand.vmem [shape: f32[2,1,64], index: 1, kind: input, shape index: {}]
  %s2 = inlined_call_operand.vmem [shape: f32[2,1,64], index: 2, kind: input, shape index: {}]
  %s3 = inlined_call_operand.vmem [shape: f32[2,8,8,64], index: 3, kind: output, shape index: {}]
  %s4 = sld [smem:[#allocation0]]
  $region45: #{stacked_conv_layers_with_style.5} parent=0
    _
  %s6 = ssub.s32 1, %s4
  %s7 = scalar_select 0, %s6, %s4
  loop: start=0, step=1, limit=4
  $region2: #{stacked_conv_layers_with_style.5} parent=0 // loop_pre_header
    _
  $region3: #{stacked_conv_layers_with_style.5} parent=0 // loop_header
    %s9 = sphi 0, %s13
    %p10 = scmp.ge.s32.totalorder %s9, 4
    %s16 = sphi 0, %s28
    %s17 = sphi 0, %s24
    %s18 = sphi 0, %s16
    %s19 = sphi 0, %s17
    %s20 = sphi 0, %s18
    %s21 = sphi 0, %s19
    %s33 = sphi 0, %s35
    %s36 = sphi 0, %s33
    %s37 = sphi 0, %s36
    %s53 = sphi 0, %s37
    %s59 = sphi 0, %s61
    %s62 = sphi 0, %s59
    %s63 = sphi 0, %s62
    %s79 = sphi 0, %s63
    %s85 = sphi 0, %s87
    %s88 = sphi 0, %s85
    %s89 = sphi 0, %s88
    %s105 = sphi 0, %s89
    %s113 = sphi 0, %s115
    %s116 = sphi 0, %s113
    %s117 = sphi 0, %s116
    %s133 = sphi 0, %s117
  $region4: #{stacked_conv_layers_with_style.5} parent=0 // loop_header_branch
    %12 = sbr.rel (%p10) target = $region8
  $region5: #{stacked_conv_layers_with_style.5} parent=0 // loop_body
    %s14 = ssub.s32 %s9, 1
    %s15 = ssub.s32 %s9, 2
    %s22 = sadd.s32 1, %s17
    %p23 = scmp.ge.s32.totalorder %s22, 1
    %s24 = scalar_select %p23, 0, %s22
    %s25 = sadd.s32 1, %s16
    %s26 = scalar_select %p23, %s25, %s16
    %p27 = scmp.ge.s32.totalorder %s26, 2
    %s28 = scalar_select %p27, 0, %s26
    %s29 = ssub.s32 %s16, %s28
    %s30 = ssub.s32 %s17, %s24
    %s31 = sor.u32 %s29, %s30
    %p32 = scmp.eq.s32.totalorder %s31, 0
    %s34 = sadd.s32 %s33, 1
    %s35 = scalar_select %p32, %s33, %s34
    %p38 = pneg %p32
    %p39 = scmp.eq.s32.totalorder %s9, 1
    %p40 = por %p38, %p39
    %p41 = scmp.ne.s32.totalorder %s33, %s36
    %p42 = scmp.eq.s32.totalorder %s9, 0
    %p43 = por %p41, %p42
    %p44 = scmp.ne.s32.totalorder %s33, %s36
    %p45 = scmp.eq.s32.totalorder %s14, 1
    %p46 = por %p44, %p45
    %p47 = scmp.ne.s32.totalorder %s36, %s37
    %p48 = scmp.eq.s32.totalorder %s14, 0
    %p49 = por %p47, %p48
    %p50 = scmp.ne.s32.totalorder %s36, %s37
    %p51 = scmp.eq.s32.totalorder %s15, 1
    %p52 = por %p50, %p51
    %p54 = scmp.ne.s32.totalorder %s37, %s53
    %p55 = scmp.eq.s32.totalorder %s15, 0
    %p56 = por %p54, %p55
    %s57 = ssub.s32 %s16, %s28
    %p58 = scmp.eq.s32.totalorder %s57, 0
    %s60 = sadd.s32 %s59, 1
    %s61 = scalar_select %p58, %s59, %s60
    %p64 = pneg %p58
    %p65 = scmp.eq.s32.totalorder %s9, 1
    %p66 = por %p64, %p65
    %p67 = scmp.ne.s32.totalorder %s59, %s62
    %p68 = scmp.eq.s32.totalorder %s9, 0
    %p69 = por %p67, %p68
    %p70 = scmp.ne.s32.totalorder %s59, %s62
    %p71 = scmp.eq.s32.totalorder %s14, 1
    %p72 = por %p70, %p71
    %p73 = scmp.ne.s32.totalorder %s62, %s63
    %p74 = scmp.eq.s32.totalorder %s14, 0
    %p75 = por %p73, %p74
    %p76 = scmp.ne.s32.totalorder %s62, %s63
    %p77 = scmp.eq.s32.totalorder %s15, 1
    %p78 = por %p76, %p77
    %p80 = scmp.ne.s32.totalorder %s63, %s79
    %p81 = scmp.eq.s32.totalorder %s15, 0
    %p82 = por %p80, %p81
    %s83 = ssub.s32 %s16, %s28
    %p84 = scmp.eq.s32.totalorder %s83, 0
    %s86 = sadd.s32 %s85, 1
    %s87 = scalar_select %p84, %s85, %s86
    %p90 = pneg %p84
    %p91 = scmp.eq.s32.totalorder %s9, 1
    %p92 = por %p90, %p91
    %p93 = scmp.ne.s32.totalorder %s85, %s88
    %p94 = scmp.eq.s32.totalorder %s9, 0
    %p95 = por %p93, %p94
    %p96 = scmp.ne.s32.totalorder %s85, %s88
    %p97 = scmp.eq.s32.totalorder %s14, 1
    %p98 = por %p96, %p97
    %p99 = scmp.ne.s32.totalorder %s88, %s89
    %p100 = scmp.eq.s32.totalorder %s14, 0
    %p101 = por %p99, %p100
    %p102 = scmp.ne.s32.totalorder %s88, %s89
    %p103 = scmp.eq.s32.totalorder %s15, 1
    %p104 = por %p102, %p103
    %p106 = scmp.ne.s32.totalorder %s89, %s105
    %p107 = scmp.eq.s32.totalorder %s15, 0
    %p108 = por %p106, %p107
    %s109 = ssub.s32 %s16, %s28
    %s110 = ssub.s32 %s17, %s24
    %s111 = sor.u32 %s109, %s110
    %p112 = scmp.eq.s32.totalorder %s111, 0
    %s114 = sadd.s32 %s113, 1
    %s115 = scalar_select %p112, %s113, %s114
    %p118 = pneg %p112
    %p119 = scmp.eq.s32.totalorder %s9, 1
    %p120 = por %p118, %p119
    %p121 = scmp.ne.s32.totalorder %s113, %s116
    %p122 = scmp.eq.s32.totalorder %s9, 0
    %p123 = por %p121, %p122
    %p124 = scmp.ne.s32.totalorder %s113, %s116
    %p125 = scmp.eq.s32.totalorder %s14, 1
    %p126 = por %p124, %p125
    %p127 = scmp.ne.s32.totalorder %s116, %s117
    %p128 = scmp.eq.s32.totalorder %s14, 0
    %p129 = por %p127, %p128
    %p130 = scmp.ne.s32.totalorder %s116, %s117
    %p131 = scmp.eq.s32.totalorder %s15, 1
    %p132 = por %p130, %p131
    %p134 = scmp.ne.s32.totalorder %s117, %s133
    %p135 = scmp.eq.s32.totalorder %s15, 0
    %p136 = por %p134, %p135
    %p137 = scmp.le.s32.totalorder 1, %s9
    %p138 = scmp.lt.s32.totalorder %s9, 3
    %p139 = pnand %p137, %p138
    %p140 = pneg %p139
    // Predicated region
    $region9: #{stacked_conv_layers_with_style.5} parent=5 // pred_check
      _
    $region10: #{stacked_conv_layers_with_style.5} parent=5 // pred_check_branch
      %142 = sbr.rel (%p139) target = $region12
    $region11: #{stacked_conv_layers_with_style.5} parent=5 // pred_region
      %s143 = ssub.s32 %s9, 1
    $region12: #{stacked_conv_layers_with_style.5} parent=5 // pred_fallthru
      _
    %p144 = scmp.lt.s32.totalorder %s9, 2
    // Predicated region
    $region13: #{stacked_conv_layers_with_style.5} parent=5 // pred_check
      %p145 = pneg %p144
    $region14: #{stacked_conv_layers_with_style.5} parent=5 // pred_check_branch
      %147 = sbr.rel (%p145) target = $region16
    $region15: #{stacked_conv_layers_with_style.5} parent=5 // pred_region
      // Predicated region
      $region17: #{stacked_conv_layers_with_style.5} parent=15 // pred_check
        %p148 = pneg %p43
      $region18: #{stacked_conv_layers_with_style.5} parent=15 // pred_check_branch
        %150 = sbr.rel (%p148) target = $region20
      $region19: #{stacked_conv_layers_with_style.5} parent=15 // pred_region
        %s151 = smul.u32 8, %s17
        %p152 = scmp.lt.s32.totalorder %s16, 1
        %s153 = scalar_select %p152, %s16, 1
        %p154 = scmp.lt.s32.totalorder %s151, 7
        %s155 = scalar_select %p154, %s151, 7
        %s156 = smul.addr %s153, 8
        %s157 = sadd.s32 %s155, %s156
        %s158 = smul.addr %s157, 8
        %s159 = scalar_lea.vmem %s0, %s158
        %s160 = smul.u32 8, %s17
      $region20: #{stacked_conv_layers_with_style.5} parent=15 // pred_fallthru
        _
      // Predicated region
      $region21: #{stacked_conv_layers_with_style.5} parent=15 // pred_check
        %p161 = pneg %p69
      $region22: #{stacked_conv_layers_with_style.5} parent=15 // pred_check_branch
        %163 = sbr.rel (%p161) target = $region24
      $region23: #{stacked_conv_layers_with_style.5} parent=15 // pred_region
        %p164 = scmp.lt.s32.totalorder %s16, 1
        %s165 = scalar_select %p164, %s16, 1
        %s166 = scalar_lea.vmem %s1, %s165
      $region24: #{stacked_conv_layers_with_style.5} parent=15 // pred_fallthru
        _
      // Predicated region
      $region25: #{stacked_conv_layers_with_style.5} parent=15 // pred_check
        %p167 = pneg %p95
      $region26: #{stacked_conv_layers_with_style.5} parent=15 // pred_check_branch
        %169 = sbr.rel (%p167) target = $region28
      $region27: #{stacked_conv_layers_with_style.5} parent=15 // pred_region
        %p170 = scmp.lt.s32.totalorder %s16, 1
        %s171 = scalar_select %p170, %s16, 1
        %s172 = scalar_lea.vmem %s2, %s171
      $region28: #{stacked_conv_layers_with_style.5} parent=15 // pred_fallthru
        _
    $region16: #{stacked_conv_layers_with_style.5} parent=5 // pred_fallthru
      _
    %p173 = scmp.le.s32.totalorder 1, %s9
    %p174 = scmp.lt.s32.totalorder %s9, 3
    %p175 = pnand %p173, %p174
    %p176 = pneg %p175
    // Predicated region
    $region29: #{stacked_conv_layers_with_style.5} parent=5 // pred_check
      _
    $region30: #{stacked_conv_layers_with_style.5} parent=5 // pred_check_branch
      %178 = sbr.rel (%p175) target = $region32
    $region31: #{stacked_conv_layers_with_style.5} parent=5 // pred_region
      %s179 = ssub.s32 %s9, 1
      %s180 = smul.u32 8, %s19
      %p181 = scmp.lt.s32.totalorder %s18, 1
      %s182 = scalar_select %p181, %s18, 1
      %p183 = scmp.lt.s32.totalorder %s180, 7
      %s184 = scalar_select %p183, %s180, 7
      %s185 = smul.addr %s182, 8
      %s186 = sadd.s32 %s184, %s185
      %s187 = smul.addr %s186, 8
      %s188 = scalar_lea.vmem %s0, %s187
      %p189 = pneg %p49
      %p190 = pneg %p46
      %p191 = scmp.lt.s32.totalorder %s18, 1
      %s192 = scalar_select %p191, %s18, 1
      %s193 = scalar_lea.vmem %s1, %s192
      %p194 = pneg %p75
      %p195 = pneg %p72
      %p196 = scmp.lt.s32.totalorder %s18, 1
      %s197 = scalar_select %p196, %s18, 1
      %s198 = scalar_lea.vmem %s2, %s197
      %p199 = pneg %p101
      %p200 = pneg %p98
      %p201 = pneg %p129
      %p202 = pneg %p126
      %s203 = smul.u32 8, %s19
      %p204 = scmp.lt.s32.totalorder %s18, 1
      %s205 = scalar_select %p204, %s18, 1
      %p206 = scmp.lt.s32.totalorder %s203, 7
      %s207 = scalar_select %p206, %s203, 7
      %s208 = smul.addr %s205, 8
      %s209 = sadd.s32 %s207, %s208
      %s210 = smul.addr %s209, 8
      %s211 = scalar_lea.vmem %s3, %s210
      %s212 = smul.u32 8, %s19
      %p213 = scmp.lt.s32.totalorder %s18, 1
      %s214 = scalar_select %p213, %s18, 1
      %p215 = scmp.lt.s32.totalorder %s212, 7
      %s216 = scalar_select %p215, %s212, 7
      %s217 = smul.addr %s214, 8
      %s218 = sadd.s32 %s216, %s217
      %s219 = smul.addr %s218, 8
      %s220 = scalar_lea.vmem %s0, %s219
      %s221 = smul.u32 8, %s19
      %p222 = scmp.lt.s32.totalorder %s18, 1
      %s223 = scalar_select %p222, %s18, 1
      %s224 = scalar_lea.vmem %s1, %s223
      %p225 = scmp.lt.s32.totalorder %s18, 1
      %s226 = scalar_select %p225, %s18, 1
      %s227 = scalar_lea.vmem %s2, %s226
      %s228 = smul.u32 8, %s19
      %p229 = scmp.lt.s32.totalorder %s18, 1
      %s230 = scalar_select %p229, %s18, 1
      %p231 = scmp.lt.s32.totalorder %s228, 7
      %s232 = scalar_select %p231, %s228, 7
      %s233 = smul.addr %s230, 8
      %s234 = sadd.s32 %s232, %s233
      %s235 = smul.addr %s234, 8
      %s236 = scalar_lea.vmem %s3, %s235
      %s237 = smul.u32 8, %s19
      %v238 = vld [vmem:[%s224] sm:$0x1]
      %v239 = vld [vmem:[%s227] sm:$0x1]
      %v240 = vld [vmem:[%s220] sm:$0xff]
      %v241 = vld [vmem:[%s220 + $0x8] sm:$0xff]
      %v242 = vld [vmem:[%s220 + $0x10] sm:$0xff]
      %v243 = vld [vmem:[%s220 + $0x18] sm:$0xff]
      %v244 = vld [vmem:[%s220 + $0x20] sm:$0xff]
      %v245 = vld [vmem:[%s220 + $0x28] sm:$0xff]
      %v246 = vld [vmem:[%s220 + $0x30] sm:$0xff]
      %v247 = vld [vmem:[%s220 + $0x38] sm:$0xff]
      %v249 = vperm.slane %v238, 0
      %v251 = vmul.f32 %v240, %v249
      %v252 = vmul.f32 %v241, %v249
      %v253 = vmul.f32 %v242, %v249
      %v254 = vmul.f32 %v243, %v249
      %v255 = vmul.f32 %v244, %v249
      %v256 = vmul.f32 %v245, %v249
      %v257 = vmul.f32 %v246, %v249
      %v258 = vmul.f32 %v247, %v249
      %v260 = vperm.slane %v239, 0
      %v262 = vadd.f32 %v251, %v260
      %v263 = vadd.f32 %v252, %v260
      %v264 = vadd.f32 %v253, %v260
      %v265 = vadd.f32 %v254, %v260
      %v266 = vadd.f32 %v255, %v260
      %v267 = vadd.f32 %v256, %v260
      %v268 = vadd.f32 %v257, %v260
      %v269 = vadd.f32 %v258, %v260
      %vm270 = vcmp.ge.f32.partialorder %v262, 0.0
      %vm271 = vcmp.ge.f32.partialorder %v263, 0.0
      %vm272 = vcmp.ge.f32.partialorder %v264, 0.0
      %vm273 = vcmp.ge.f32.partialorder %v265, 0.0
      %vm274 = vcmp.ge.f32.partialorder %v266, 0.0
      %vm275 = vcmp.ge.f32.partialorder %v267, 0.0
      %vm276 = vcmp.ge.f32.partialorder %v268, 0.0
      %vm277 = vcmp.ge.f32.partialorder %v269, 0.0
      %v278 = vmul.f32 %v262, 0.01
      %v279 = vmul.f32 %v263, 0.01
      %v280 = vmul.f32 %v264, 0.01
      %v281 = vmul.f32 %v265, 0.01
      %v282 = vmul.f32 %v266, 0.01
      %v283 = vmul.f32 %v267, 0.01
      %v284 = vmul.f32 %v268, 0.01
      %v285 = vmul.f32 %v269, 0.01
      %v286 = vsel %vm270, %v262, %v278
      %v287 = vsel %vm271, %v263, %v279
      %v288 = vsel %vm272, %v264, %v280
      %v289 = vsel %vm273, %v265, %v281
      %v290 = vsel %vm274, %v266, %v282
      %v291 = vsel %vm275, %v267, %v283
      %v292 = vsel %vm276, %v268, %v284
      %v293 = vsel %vm277, %v269, %v285
      %vm294 = vcmask 523264
      %295 = vst.msk [vmem:[%s236] sm:$0xff] %vm294, %v286
      %296 = vst.msk [vmem:[%s236 + $0x8] sm:$0xff] %vm294, %v287
      %297 = vst.msk [vmem:[%s236 + $0x10] sm:$0xff] %vm294, %v288
      %298 = vst.msk [vmem:[%s236 + $0x18] sm:$0xff] %vm294, %v289
      %299 = vst.msk [vmem:[%s236 + $0x20] sm:$0xff] %vm294, %v290
      %300 = vst.msk [vmem:[%s236 + $0x28] sm:$0xff] %vm294, %v291
      %301 = vst.msk [vmem:[%s236 + $0x30] sm:$0xff] %vm294, %v292
      %302 = vst.msk [vmem:[%s236 + $0x38] sm:$0xff] %vm294, %v293
      %s303 = smul.u32 8, %s19
      %p304 = scmp.lt.s32.totalorder %s18, 1
      %s305 = scalar_select %p304, %s18, 1
      %p306 = scmp.lt.s32.totalorder %s303, 7
      %s307 = scalar_select %p306, %s303, 7
      %s308 = smul.addr %s305, 8
      %s309 = sadd.s32 %s307, %s308
      %s310 = smul.addr %s309, 8
      %s311 = scalar_lea.vmem %s3, %s310
      // Predicated region
      $region33: #{stacked_conv_layers_with_style.5} parent=31 // pred_check
        %p312 = pneg %p126
      $region34: #{stacked_conv_layers_with_style.5} parent=31 // pred_check_branch
        %314 = sbr.rel (%p312) target = $region36
      $region35: #{stacked_conv_layers_with_style.5} parent=31 // pred_region
        %s315 = smul.u32 8, %s19
      $region36: #{stacked_conv_layers_with_style.5} parent=31 // pred_fallthru
        _
    $region32: #{stacked_conv_layers_with_style.5} parent=5 // pred_fallthru
      _
    %p316 = scmp.le.s32.totalorder 2, %s9
    // Predicated region
    $region37: #{stacked_conv_layers_with_style.5} parent=5 // pred_check
      %p317 = pneg %p316
    $region38: #{stacked_conv_layers_with_style.5} parent=5 // pred_check_branch
      %319 = sbr.rel (%p317) target = $region40
    $region39: #{stacked_conv_layers_with_style.5} parent=5 // pred_region
      %s320 = ssub.s32 %s9, 2
      // Predicated region
      $region41: #{stacked_conv_layers_with_style.5} parent=39 // pred_check
        %p321 = pneg %p132
      $region42: #{stacked_conv_layers_with_style.5} parent=39 // pred_check_branch
        %323 = sbr.rel (%p321) target = $region44
      $region43: #{stacked_conv_layers_with_style.5} parent=39 // pred_region
        %s324 = smul.u32 8, %s21
        %p325 = scmp.lt.s32.totalorder %s20, 1
        %s326 = scalar_select %p325, %s20, 1
        %p327 = scmp.lt.s32.totalorder %s324, 7
        %s328 = scalar_select %p327, %s324, 7
        %s329 = smul.addr %s326, 8
        %s330 = sadd.s32 %s328, %s329
        %s331 = smul.addr %s330, 8
        %s332 = scalar_lea.vmem %s3, %s331
      $region44: #{stacked_conv_layers_with_style.5} parent=39 // pred_fallthru
        _
    $region40: #{stacked_conv_layers_with_style.5} parent=5 // pred_fallthru
      _
  $region6: #{stacked_conv_layers_with_style.5} parent=0 // loop_footer
    %s13 = sadd.s32 1, %s9
  $region7: #{stacked_conv_layers_with_style.5} parent=0 // loop_footer_branch
    %8 = sbr.rel target = $region3
  $region8: #{stacked_conv_layers_with_style.5} parent=0 // loop_exit
    _

// kernel: stacked_conv_layers_with_style.3
$region0: #{stacked_conv_layers_with_style.3}
  #allocation0 [shape = 'u32[]', space=smem, size = 0x4, offset = 0x4, fixed_abs, tag = 'smem constant byte address 0x4 - core index']
  #allocation1 [shape = 'u32[72,128]{1,0:T(1,128)}', space=vmem, size = 0x9000, scoped, tag = 'internal scratch']
  #allocation2 [shape = 'f32[10,10,32]{2,1,0:T(8,128)}', space=vmem, size = 0x14000, scoped, tag = 'scratch operand']
  %s0 = inlined_call_operand.vmem [shape: f32[2,8,8,32], index: 0, kind: input, shape index: {}, may-alias: {0,1,2}]
  %s1 = inlined_call_operand.vmem [shape: f32[2,8,8,32], index: 1, kind: input, shape index: {}, may-alias: {0,1,2}]
  %s2 = inlined_call_operand.vmem [shape: f32[2,8,8,32], index: 2, kind: input, shape index: {}, may-alias: {0,1,2}]
  %s3 = inlined_call_operand.vmem [shape: f32[2,1,32], index: 3, kind: input, shape index: {}]
  %s4 = inlined_call_operand.vmem [shape: f32[2,1,32], index: 4, kind: input, shape index: {}]
  %s5 = inlined_call_operand.vmem [shape: f32[9,32,64], index: 5, kind: input, shape index: {}]
  %s6 = inlined_call_operand.vmem [shape: f32[1,64], index: 6, kind: input, shape index: {}]
  %s7 = inlined_call_operand.vmem [shape: f32[64,8], index: 7, kind: input, shape index: {}]
  %s8 = inlined_call_operand.vmem [shape: f32[2,8,8,64], index: 8, kind: output, shape index: {0}]
  %s9 = inlined_call_operand.vmem [shape: f32[2,1,2,8], index: 9, kind: output, shape index: {1}]
  %10 = xla_tuple %s8, %s9
  %s11 = sld [smem:[#allocation0]]
  $region73: #{stacked_conv_layers_with_style.3} parent=0
    _
  %s13 = ssub.s32 1, %s11
  %s14 = scalar_select 0, %s13, %s11
  loop: start=0, step=1, limit=4
  $region2: #{stacked_conv_layers_with_style.3} parent=0 // loop_pre_header
    _
  $region3: #{stacked_conv_layers_with_style.3} parent=0 // loop_header
    %s16 = sphi 0, %s20
    %p17 = scmp.ge.s32.totalorder %s16, 4
    %s23 = sphi 0, %s35
    %s24 = sphi 0, %s31
    %s25 = sphi 0, %s23
    %s26 = sphi 0, %s24
    %s27 = sphi 0, %s25
    %s28 = sphi 0, %s26
    %s40 = sphi 0, %s42
    %s43 = sphi 0, %s40
    %s44 = sphi 0, %s43
    %s60 = sphi 0, %s44
    %s76 = sphi 0, %s78
    %s79 = sphi 0, %s76
    %s80 = sphi 0, %s79
    %s96 = sphi 0, %s80
    %s112 = sphi 0, %s114
    %s115 = sphi 0, %s112
    %s116 = sphi 0, %s115
    %s132 = sphi 0, %s116
    %s138 = sphi 0, %s140
    %s141 = sphi 0, %s138
    %s142 = sphi 0, %s141
    %s158 = sphi 0, %s142
    %s164 = sphi 0, %s166
    %s167 = sphi 0, %s164
    %s168 = sphi 0, %s167
    %s184 = sphi 0, %s168
    %s188 = sphi 0, %s188
    %s190 = sphi 0, %s188
    %s191 = sphi 0, %s190
    %s205 = sphi 0, %s191
    %s209 = sphi 0, %s209
    %s211 = sphi 0, %s209
    %s212 = sphi 0, %s211
    %s226 = sphi 0, %s212
    %s230 = sphi 0, %s230
    %s232 = sphi 0, %s230
    %s233 = sphi 0, %s232
    %s247 = sphi 0, %s233
    %s255 = sphi 0, %s257
    %s258 = sphi 0, %s255
    %s259 = sphi 0, %s258
    %s275 = sphi 0, %s259
    %s283 = sphi 0, %s285
    %s286 = sphi 0, %s283
    %s287 = sphi 0, %s286
    %s303 = sphi 0, %s287
  $region4: #{stacked_conv_layers_with_style.3} parent=0 // loop_header_branch
    %19 = sbr.rel (%p17) target = $region8
  $region5: #{stacked_conv_layers_with_style.3} parent=0 // loop_body
    %s21 = ssub.s32 %s16, 1
    %s22 = ssub.s32 %s16, 2
    %s29 = sadd.s32 1, %s24
    %p30 = scmp.ge.s32.totalorder %s29, 1
    %s31 = scalar_select %p30, 0, %s29
    %s32 = sadd.s32 1, %s23
    %s33 = scalar_select %p30, %s32, %s23
    %p34 = scmp.ge.s32.totalorder %s33, 2
    %s35 = scalar_select %p34, 0, %s33
    %s36 = ssub.s32 %s23, %s35
    %s37 = ssub.s32 %s24, %s31
    %s38 = sor.u32 %s36, %s37
    %p39 = scmp.eq.s32.totalorder %s38, 0
    %s41 = sadd.s32 %s40, 1
    %s42 = scalar_select %p39, %s40, %s41
    %p45 = pneg %p39
    %p46 = scmp.eq.s32.totalorder %s16, 1
    %p47 = por %p45, %p46
    %p48 = scmp.ne.s32.totalorder %s40, %s43
    %p49 = scmp.eq.s32.totalorder %s16, 0
    %p50 = por %p48, %p49
    %p51 = scmp.ne.s32.totalorder %s40, %s43
    %p52 = scmp.eq.s32.totalorder %s21, 1
    %p53 = por %p51, %p52
    %p54 = scmp.ne.s32.totalorder %s43, %s44
    %p55 = scmp.eq.s32.totalorder %s21, 0
    %p56 = por %p54, %p55
    %p57 = scmp.ne.s32.totalorder %s43, %s44
    %p58 = scmp.eq.s32.totalorder %s22, 1
    %p59 = por %p57, %p58
    %p61 = scmp.ne.s32.totalorder %s44, %s60
    %p62 = scmp.eq.s32.totalorder %s22, 0
    %p63 = por %p61, %p62
    %s64 = smul.u32 %s24, 8
    %s65 = ssub.s32 %s64, 1
    %p66 = scmp.gt.s32.totalorder %s65, 0
    %s67 = scalar_select %p66, %s65, 0
    %s68 = smul.u32 %s31, 8
    %s69 = ssub.s32 %s68, 1
    %p70 = scmp.gt.s32.totalorder %s69, 0
    %s71 = scalar_select %p70, %s69, 0
    %s72 = ssub.s32 %s23, %s35
    %s73 = ssub.s32 %s67, %s71
    %s74 = sor.u32 %s72, %s73
    %p75 = scmp.eq.s32.totalorder %s74, 0
    %s77 = sadd.s32 %s76, 1
    %s78 = scalar_select %p75, %s76, %s77
    %p81 = pneg %p75
    %p82 = scmp.eq.s32.totalorder %s16, 1
    %p83 = por %p81, %p82
    %p84 = scmp.ne.s32.totalorder %s76, %s79
    %p85 = scmp.eq.s32.totalorder %s16, 0
    %p86 = por %p84, %p85
    %p87 = scmp.ne.s32.totalorder %s76, %s79
    %p88 = scmp.eq.s32.totalorder %s21, 1
    %p89 = por %p87, %p88
    %p90 = scmp.ne.s32.totalorder %s79, %s80
    %p91 = scmp.eq.s32.totalorder %s21, 0
    %p92 = por %p90, %p91
    %p93 = scmp.ne.s32.totalorder %s79, %s80
    %p94 = scmp.eq.s32.totalorder %s22, 1
    %p95 = por %p93, %p94
    %p97 = scmp.ne.s32.totalorder %s80, %s96
    %p98 = scmp.eq.s32.totalorder %s22, 0
    %p99 = por %p97, %p98
    %s100 = smul.u32 %s24, 8
    %s101 = sadd.s32 %s100, 8
    %p102 = scmp.lt.s32.totalorder %s101, 7
    %s103 = scalar_select %p102, %s101, 7
    %s104 = smul.u32 %s31, 8
    %s105 = sadd.s32 %s104, 8
    %p106 = scmp.lt.s32.totalorder %s105, 7
    %s107 = scalar_select %p106, %s105, 7
    %s108 = ssub.s32 %s23, %s35
    %s109 = ssub.s32 %s103, %s107
    %s110 = sor.u32 %s108, %s109
    %p111 = scmp.eq.s32.totalorder %s110, 0
    %s113 = sadd.s32 %s112, 1
    %s114 = scalar_select %p111, %s112, %s113
    %p117 = pneg %p111
    %p118 = scmp.eq.s32.totalorder %s16, 1
    %p119 = por %p117, %p118
    %p120 = scmp.ne.s32.totalorder %s112, %s115
    %p121 = scmp.eq.s32.totalorder %s16, 0
    %p122 = por %p120, %p121
    %p123 = scmp.ne.s32.totalorder %s112, %s115
    %p124 = scmp.eq.s32.totalorder %s21, 1
    %p125 = por %p123, %p124
    %p126 = scmp.ne.s32.totalorder %s115, %s116
    %p127 = scmp.eq.s32.totalorder %s21, 0
    %p128 = por %p126, %p127
    %p129 = scmp.ne.s32.totalorder %s115, %s116
    %p130 = scmp.eq.s32.totalorder %s22, 1
    %p131 = por %p129, %p130
    %p133 = scmp.ne.s32.totalorder %s116, %s132
    %p134 = scmp.eq.s32.totalorder %s22, 0
    %p135 = por %p133, %p134
    %s136 = ssub.s32 %s23, %s35
    %p137 = scmp.eq.s32.totalorder %s136, 0
    %s139 = sadd.s32 %s138, 1
    %s140 = scalar_select %p137, %s138, %s139
    %p143 = pneg %p137
    %p144 = scmp.eq.s32.totalorder %s16, 1
    %p145 = por %p143, %p144
    %p146 = scmp.ne.s32.totalorder %s138, %s141
    %p147 = scmp.eq.s32.totalorder %s16, 0
    %p148 = por %p146, %p147
    %p149 = scmp.ne.s32.totalorder %s138, %s141
    %p150 = scmp.eq.s32.totalorder %s21, 1
    %p151 = por %p149, %p150
    %p152 = scmp.ne.s32.totalorder %s141, %s142
    %p153 = scmp.eq.s32.totalorder %s21, 0
    %p154 = por %p152, %p153
    %p155 = scmp.ne.s32.totalorder %s141, %s142
    %p156 = scmp.eq.s32.totalorder %s22, 1
    %p157 = por %p155, %p156
    %p159 = scmp.ne.s32.totalorder %s142, %s158
    %p160 = scmp.eq.s32.totalorder %s22, 0
    %p161 = por %p159, %p160
    %s162 = ssub.s32 %s23, %s35
    %p163 = scmp.eq.s32.totalorder %s162, 0
    %s165 = sadd.s32 %s164, 1
    %s166 = scalar_select %p163, %s164, %s165
    %p169 = pneg %p163
    %p170 = scmp.eq.s32.totalorder %s16, 1
    %p171 = por %p169, %p170
    %p172 = scmp.ne.s32.totalorder %s164, %s167
    %p173 = scmp.eq.s32.totalorder %s16, 0
    %p174 = por %p172, %p173
    %p175 = scmp.ne.s32.totalorder %s164, %s167
    %p176 = scmp.eq.s32.totalorder %s21, 1
    %p177 = por %p175, %p176
    %p178 = scmp.ne.s32.totalorder %s167, %s168
    %p179 = scmp.eq.s32.totalorder %s21, 0
    %p180 = por %p178, %p179
    %p181 = scmp.ne.s32.totalorder %s167, %s168
    %p182 = scmp.eq.s32.totalorder %s22, 1
    %p183 = por %p181, %p182
    %p185 = scmp.ne.s32.totalorder %s168, %s184
    %p186 = scmp.eq.s32.totalorder %s22, 0
    %p187 = por %p185, %p186
    %s189 = sadd.s32 %s188, 1
    %p192 = scmp.eq.s32.totalorder %s16, 1
    %p193 = scmp.ne.s32.totalorder %s188, %s190
    %p194 = scmp.eq.s32.totalorder %s16, 0
    %p195 = por %p193, %p194
    %p196 = scmp.ne.s32.totalorder %s188, %s190
    %p197 = scmp.eq.s32.totalorder %s21, 1
    %p198 = por %p196, %p197
    %p199 = scmp.ne.s32.totalorder %s190, %s191
    %p200 = scmp.eq.s32.totalorder %s21, 0
    %p201 = por %p199, %p200
    %p202 = scmp.ne.s32.totalorder %s190, %s191
    %p203 = scmp.eq.s32.totalorder %s22, 1
    %p204 = por %p202, %p203
    %p206 = scmp.ne.s32.totalorder %s191, %s205
    %p207 = scmp.eq.s32.totalorder %s22, 0
    %p208 = por %p206, %p207
    %s210 = sadd.s32 %s209, 1
    %p213 = scmp.eq.s32.totalorder %s16, 1
    %p214 = scmp.ne.s32.totalorder %s209, %s211
    %p215 = scmp.eq.s32.totalorder %s16, 0
    %p216 = por %p214, %p215
    %p217 = scmp.ne.s32.totalorder %s209, %s211
    %p218 = scmp.eq.s32.totalorder %s21, 1
    %p219 = por %p217, %p218
    %p220 = scmp.ne.s32.totalorder %s211, %s212
    %p221 = scmp.eq.s32.totalorder %s21, 0
    %p222 = por %p220, %p221
    %p223 = scmp.ne.s32.totalorder %s211, %s212
    %p224 = scmp.eq.s32.totalorder %s22, 1
    %p225 = por %p223, %p224
    %p227 = scmp.ne.s32.totalorder %s212, %s226
    %p228 = scmp.eq.s32.totalorder %s22, 0
    %p229 = por %p227, %p228
    %s231 = sadd.s32 %s230, 1
    %p234 = scmp.eq.s32.totalorder %s16, 1
    %p235 = scmp.ne.s32.totalorder %s230, %s232
    %p236 = scmp.eq.s32.totalorder %s16, 0
    %p237 = por %p235, %p236
    %p238 = scmp.ne.s32.totalorder %s230, %s232
    %p239 = scmp.eq.s32.totalorder %s21, 1
    %p240 = por %p238, %p239
    %p241 = scmp.ne.s32.totalorder %s232, %s233
    %p242 = scmp.eq.s32.totalorder %s21, 0
    %p243 = por %p241, %p242
    %p244 = scmp.ne.s32.totalorder %s232, %s233
    %p245 = scmp.eq.s32.totalorder %s22, 1
    %p246 = por %p244, %p245
    %p248 = scmp.ne.s32.totalorder %s233, %s247
    %p249 = scmp.eq.s32.totalorder %s22, 0
    %p250 = por %p248, %p249
    %s251 = ssub.s32 %s23, %s35
    %s252 = ssub.s32 %s24, %s31
    %s253 = sor.u32 %s251, %s252
    %p254 = scmp.eq.s32.totalorder %s253, 0
    %s256 = sadd.s32 %s255, 1
    %s257 = scalar_select %p254, %s255, %s256
    %p260 = pneg %p254
    %p261 = scmp.eq.s32.totalorder %s16, 1
    %p262 = por %p260, %p261
    %p263 = scmp.ne.s32.totalorder %s255, %s258
    %p264 = scmp.eq.s32.totalorder %s16, 0
    %p265 = por %p263, %p264
    %p266 = scmp.ne.s32.totalorder %s255, %s258
    %p267 = scmp.eq.s32.totalorder %s21, 1
    %p268 = por %p266, %p267
    %p269 = scmp.ne.s32.totalorder %s258, %s259
    %p270 = scmp.eq.s32.totalorder %s21, 0
    %p271 = por %p269, %p270
    %p272 = scmp.ne.s32.totalorder %s258, %s259
    %p273 = scmp.eq.s32.totalorder %s22, 1
    %p274 = por %p272, %p273
    %p276 = scmp.ne.s32.totalorder %s259, %s275
    %p277 = scmp.eq.s32.totalorder %s22, 0
    %p278 = por %p276, %p277
    %s279 = ssub.s32 %s23, %s35
    %s280 = ssub.s32 %s24, %s31
    %s281 = sor.u32 %s279, %s280
    %p282 = scmp.eq.s32.totalorder %s281, 0
    %s284 = sadd.s32 %s283, 1
    %s285 = scalar_select %p282, %s283, %s284
    %p288 = pneg %p282
    %p289 = scmp.eq.s32.totalorder %s16, 1
    %p290 = por %p288, %p289
    %p291 = scmp.ne.s32.totalorder %s283, %s286
    %p292 = scmp.eq.s32.totalorder %s16, 0
    %p293 = por %p291, %p292
    %p294 = scmp.ne.s32.totalorder %s283, %s286
    %p295 = scmp.eq.s32.totalorder %s21, 1
    %p296 = por %p294, %p295
    %p297 = scmp.ne.s32.totalorder %s286, %s287
    %p298 = scmp.eq.s32.totalorder %s21, 0
    %p299 = por %p297, %p298
    %p300 = scmp.ne.s32.totalorder %s286, %s287
    %p301 = scmp.eq.s32.totalorder %s22, 1
    %p302 = por %p300, %p301
    %p304 = scmp.ne.s32.totalorder %s287, %s303
    %p305 = scmp.eq.s32.totalorder %s22, 0
    %p306 = por %p304, %p305
    %p307 = scmp.le.s32.totalorder 1, %s16
    %p308 = scmp.lt.s32.totalorder %s16, 3
    %p309 = pnand %p307, %p308
    %p310 = pneg %p309
    // Predicated region
    $region9: #{stacked_conv_layers_with_style.3} parent=5 // pred_check
      _
    $region10: #{stacked_conv_layers_with_style.3} parent=5 // pred_check_branch
      %312 = sbr.rel (%p309) target = $region12
    $region11: #{stacked_conv_layers_with_style.3} parent=5 // pred_region
      %s313 = ssub.s32 %s16, 1
      // Predicated region
      $region13: #{stacked_conv_layers_with_style.3} parent=11 // pred_check
        %p314 = pneg %p201
      $region14: #{stacked_conv_layers_with_style.3} parent=11 // pred_check_branch
        %316 = sbr.rel (%p314) target = $region16
      $region15: #{stacked_conv_layers_with_style.3} parent=11 // pred_region
        _
      $region16: #{stacked_conv_layers_with_style.3} parent=11 // pred_fallthru
        _
      // Predicated region
      $region17: #{stacked_conv_layers_with_style.3} parent=11 // pred_check
        %p317 = pneg %p222
      $region18: #{stacked_conv_layers_with_style.3} parent=11 // pred_check_branch
        %319 = sbr.rel (%p317) target = $region20
      $region19: #{stacked_conv_layers_with_style.3} parent=11 // pred_region
        _
      $region20: #{stacked_conv_layers_with_style.3} parent=11 // pred_fallthru
        _
      // Predicated region
      $region21: #{stacked_conv_layers_with_style.3} parent=11 // pred_check
        %p320 = pneg %p243
      $region22: #{stacked_conv_layers_with_style.3} parent=11 // pred_check_branch
        %322 = sbr.rel (%p320) target = $region24
      $region23: #{stacked_conv_layers_with_style.3} parent=11 // pred_region
        _
      $region24: #{stacked_conv_layers_with_style.3} parent=11 // pred_fallthru
        _
    $region12: #{stacked_conv_layers_with_style.3} parent=5 // pred_fallthru
      _
    %p323 = scmp.lt.s32.totalorder %s16, 2
    // Predicated region
    $region25: #{stacked_conv_layers_with_style.3} parent=5 // pred_check
      %p324 = pneg %p323
    $region26: #{stacked_conv_layers_with_style.3} parent=5 // pred_check_branch
      %326 = sbr.rel (%p324) target = $region28
    $region27: #{stacked_conv_layers_with_style.3} parent=5 // pred_region
      // Predicated region
      $region29: #{stacked_conv_layers_with_style.3} parent=27 // pred_check
        %p327 = pneg %p50
      $region30: #{stacked_conv_layers_with_style.3} parent=27 // pred_check_branch
        %329 = sbr.rel (%p327) target = $region32
      $region31: #{stacked_conv_layers_with_style.3} parent=27 // pred_region
        %s330 = smul.u32 8, %s24
        %p331 = scmp.lt.s32.totalorder %s23, 1
        %s332 = scalar_select %p331, %s23, 1
        %p333 = scmp.lt.s32.totalorder %s330, 7
        %s334 = scalar_select %p333, %s330, 7
        %s335 = smul.addr %s332, 8
        %s336 = sadd.s32 %s334, %s335
        %s337 = smul.addr %s336, 8
        %s338 = scalar_lea.vmem %s0, %s337
        %s339 = smul.u32 8, %s24
      $region32: #{stacked_conv_layers_with_style.3} parent=27 // pred_fallthru
        _
      // Predicated region
      $region33: #{stacked_conv_layers_with_style.3} parent=27 // pred_check
        %p340 = pneg %p86
      $region34: #{stacked_conv_layers_with_style.3} parent=27 // pred_check_branch
        %342 = sbr.rel (%p340) target = $region36
      $region35: #{stacked_conv_layers_with_style.3} parent=27 // pred_region
        %s343 = smul.u32 %s24, 8
        %s344 = ssub.s32 %s343, 1
        %p345 = scmp.gt.s32.totalorder %s344, 0
        %s346 = scalar_select %p345, %s344, 0
        %p347 = scmp.lt.s32.totalorder %s23, 1
        %s348 = scalar_select %p347, %s23, 1
        %p349 = scmp.lt.s32.totalorder %s346, 7
        %s350 = scalar_select %p349, %s346, 7
        %s351 = smul.addr %s348, 8
        %s352 = sadd.s32 %s350, %s351
        %s353 = smul.addr %s352, 8
        %s354 = scalar_lea.vmem %s1, %s353
        %s355 = smul.u32 %s24, 8
        %s356 = ssub.s32 %s355, 1
        %p357 = scmp.gt.s32.totalorder %s356, 0
        %s358 = scalar_select %p357, %s356, 0
      $region36: #{stacked_conv_layers_with_style.3} parent=27 // pred_fallthru
        _
      // Predicated region
      $region37: #{stacked_conv_layers_with_style.3} parent=27 // pred_check
        %p359 = pneg %p122
      $region38: #{stacked_conv_layers_with_style.3} parent=27 // pred_check_branch
        %361 = sbr.rel (%p359) target = $region40
      $region39: #{stacked_conv_layers_with_style.3} parent=27 // pred_region
        %s362 = smul.u32 %s24, 8
        %s363 = sadd.s32 %s362, 8
        %p364 = scmp.lt.s32.totalorder %s363, 7
        %s365 = scalar_select %p364, %s363, 7
        %p366 = scmp.lt.s32.totalorder %s23, 1
        %s367 = scalar_select %p366, %s23, 1
        %p368 = scmp.lt.s32.totalorder %s365, 7
        %s369 = scalar_select %p368, %s365, 7
        %s370 = smul.addr %s367, 8
        %s371 = sadd.s32 %s369, %s370
        %s372 = smul.addr %s371, 8
        %s373 = scalar_lea.vmem %s2, %s372
        %s374 = smul.u32 %s24, 8
        %s375 = sadd.s32 %s374, 8
        %p376 = scmp.lt.s32.totalorder %s375, 7
        %s377 = scalar_select %p376, %s375, 7
      $region40: #{stacked_conv_layers_with_style.3} parent=27 // pred_fallthru
        _
      // Predicated region
      $region41: #{stacked_conv_layers_with_style.3} parent=27 // pred_check
        %p378 = pneg %p148
      $region42: #{stacked_conv_layers_with_style.3} parent=27 // pred_check_branch
        %380 = sbr.rel (%p378) target = $region44
      $region43: #{stacked_conv_layers_with_style.3} parent=27 // pred_region
        %p381 = scmp.lt.s32.totalorder %s23, 1
        %s382 = scalar_select %p381, %s23, 1
        %s383 = scalar_lea.vmem %s3, %s382
      $region44: #{stacked_conv_layers_with_style.3} parent=27 // pred_fallthru
        _
      // Predicated region
      $region45: #{stacked_conv_layers_with_style.3} parent=27 // pred_check
        %p384 = pneg %p174
      $region46: #{stacked_conv_layers_with_style.3} parent=27 // pred_check_branch
        %386 = sbr.rel (%p384) target = $region48
      $region47: #{stacked_conv_layers_with_style.3} parent=27 // pred_region
        %p387 = scmp.lt.s32.totalorder %s23, 1
        %s388 = scalar_select %p387, %s23, 1
        %s389 = scalar_lea.vmem %s4, %s388
      $region48: #{stacked_conv_layers_with_style.3} parent=27 // pred_fallthru
        _
    $region28: #{stacked_conv_layers_with_style.3} parent=5 // pred_fallthru
      _
    %p390 = scmp.le.s32.totalorder 1, %s16
    %p391 = scmp.lt.s32.totalorder %s16, 3
    %p392 = pnand %p390, %p391
    %p393 = pneg %p392
    // Predicated region
    $region49: #{stacked_conv_layers_with_style.3} parent=5 // pred_check
      _
    $region50: #{stacked_conv_layers_with_style.3} parent=5 // pred_check_branch
      %395 = sbr.rel (%p392) target = $region52
    $region51: #{stacked_conv_layers_with_style.3} parent=5 // pred_region
      %s396 = ssub.s32 %s16, 1
      %s397 = smul.u32 8, %s26
      %p398 = scmp.lt.s32.totalorder %s25, 1
      %s399 = scalar_select %p398, %s25, 1
      %p400 = scmp.lt.s32.totalorder %s397, 7
      %s401 = scalar_select %p400, %s397, 7
      %s402 = smul.addr %s399, 8
      %s403 = sadd.s32 %s401, %s402
      %s404 = smul.addr %s403, 8
      %s405 = scalar_lea.vmem %s0, %s404
      %p406 = pneg %p56
      %p407 = pneg %p53
      %s408 = smul.u32 %s26, 8
      %s409 = ssub.s32 %s408, 1
      %p410 = scmp.gt.s32.totalorder %s409, 0
      %s411 = scalar_select %p410, %s409, 0
      %p412 = scmp.lt.s32.totalorder %s25, 1
      %s413 = scalar_select %p412, %s25, 1
      %p414 = scmp.lt.s32.totalorder %s411, 7
      %s415 = scalar_select %p414, %s411, 7
      %s416 = smul.addr %s413, 8
      %s417 = sadd.s32 %s415, %s416
      %s418 = smul.addr %s417, 8
      %s419 = scalar_lea.vmem %s1, %s418
      %p420 = pneg %p92
      %p421 = pneg %p89
      %s422 = smul.u32 %s26, 8
      %s423 = sadd.s32 %s422, 8
      %p424 = scmp.lt.s32.totalorder %s423, 7
      %s425 = scalar_select %p424, %s423, 7
      %p426 = scmp.lt.s32.totalorder %s25, 1
      %s427 = scalar_select %p426, %s25, 1
      %p428 = scmp.lt.s32.totalorder %s425, 7
      %s429 = scalar_select %p428, %s425, 7
      %s430 = smul.addr %s427, 8
      %s431 = sadd.s32 %s429, %s430
      %s432 = smul.addr %s431, 8
      %s433 = scalar_lea.vmem %s2, %s432
      %p434 = pneg %p128
      %p435 = pneg %p125
      %p436 = scmp.lt.s32.totalorder %s25, 1
      %s437 = scalar_select %p436, %s25, 1
      %s438 = scalar_lea.vmem %s3, %s437
      %p439 = pneg %p154
      %p440 = pneg %p151
      %p441 = scmp.lt.s32.totalorder %s25, 1
      %s442 = scalar_select %p441, %s25, 1
      %s443 = scalar_lea.vmem %s4, %s442
      %p444 = pneg %p180
      %p445 = pneg %p177
      %p446 = pneg %p201
      %p447 = pneg %p198
      %p448 = pneg %p222
      %p449 = pneg %p219
      %p450 = pneg %p243
      %p451 = pneg %p240
      %p452 = pneg %p271
      %p453 = pneg %p268
      %s454 = smul.u32 8, %s26
      %p455 = scmp.lt.s32.totalorder %s25, 1
      %s456 = scalar_select %p455, %s25, 1
      %p457 = scmp.lt.s32.totalorder %s454, 7
      %s458 = scalar_select %p457, %s454, 7
      %s459 = smul.addr %s456, 8
      %s460 = sadd.s32 %s458, %s459
      %s461 = smul.addr %s460, 8
      %s462 = scalar_lea.vmem %s8, %s461
      %p463 = pneg %p299
      %p464 = pneg %p296
      %p465 = scmp.lt.s32.totalorder %s25, 1
      %s466 = scalar_select %p465, %s25, 1
      %p467 = scmp.lt.s32.totalorder %s26, 0
      %s468 = scalar_select %p467, %s26, 0
      %s469 = sadd.s32 %s468, %s466
      %s470 = smul.addr %s469, 2
      %s471 = scalar_lea.vmem %s9, %s470
      %s472 = smul.u32 8, %s26
      %p473 = scmp.lt.s32.totalorder %s25, 1
      %s474 = scalar_select %p473, %s25, 1
      %p475 = scmp.lt.s32.totalorder %s472, 7
      %s476 = scalar_select %p475, %s472, 7
      %s477 = smul.addr %s474, 8
      %s478 = sadd.s32 %s476, %s477
      %s479 = smul.addr %s478, 8
      %s480 = scalar_lea.vmem %s0, %s479
      %s481 = smul.u32 8, %s26
      %s482 = smul.u32 %s26, 8
      %s483 = ssub.s32 %s482, 1
      %p484 = scmp.gt.s32.totalorder %s483, 0
      %s485 = scalar_select %p484, %s483, 0
      %p486 = scmp.lt.s32.totalorder %s25, 1
      %s487 = scalar_select %p486, %s25, 1
      %p488 = scmp.lt.s32.totalorder %s485, 7
      %s489 = scalar_select %p488, %s485, 7
      %s490 = smul.addr %s487, 8
      %s491 = sadd.s32 %s489, %s490
      %s492 = smul.addr %s491, 8
      %s493 = scalar_lea.vmem %s1, %s492
      %s494 = smul.u32 %s26, 8
      %s495 = ssub.s32 %s494, 1
      %p496 = scmp.gt.s32.totalorder %s495, 0
      %s497 = scalar_select %p496, %s495, 0
      %s498 = smul.u32 %s26, 8
      %s499 = sadd.s32 %s498, 8
      %p500 = scmp.lt.s32.totalorder %s499, 7
      %s501 = scalar_select %p500, %s499, 7
      %p502 = scmp.lt.s32.totalorder %s25, 1
      %s503 = scalar_select %p502, %s25, 1
      %p504 = scmp.lt.s32.totalorder %s501, 7
      %s505 = scalar_select %p504, %s501, 7
      %s506 = smul.addr %s503, 8
      %s507 = sadd.s32 %s505, %s506
      %s508 = smul.addr %s507, 8
      %s509 = scalar_lea.vmem %s2, %s508
      %s510 = smul.u32 %s26, 8
      %s511 = sadd.s32 %s510, 8
      %p512 = scmp.lt.s32.totalorder %s511, 7
      %s513 = scalar_select %p512, %s511, 7
      %p514 = scmp.lt.s32.totalorder %s25, 1
      %s515 = scalar_select %p514, %s25, 1
      %s516 = scalar_lea.vmem %s3, %s515
      %p517 = scmp.lt.s32.totalorder %s25, 1
      %s518 = scalar_select %p517, %s25, 1
      %s519 = scalar_lea.vmem %s4, %s518
      %s520 = smul.u32 8, %s26
      %p521 = scmp.lt.s32.totalorder %s25, 1
      %s522 = scalar_select %p521, %s25, 1
      %p523 = scmp.lt.s32.totalorder %s520, 7
      %s524 = scalar_select %p523, %s520, 7
      %s525 = smul.addr %s522, 8
      %s526 = sadd.s32 %s524, %s525
      %s527 = smul.addr %s526, 8
      %s528 = scalar_lea.vmem %s8, %s527
      %s529 = smul.u32 8, %s26
      %p530 = scmp.lt.s32.totalorder %s25, 1
      %s531 = scalar_select %p530, %s25, 1
      %p532 = scmp.lt.s32.totalorder %s26, 0
      %s533 = scalar_select %p532, %s26, 0
      %s534 = sadd.s32 %s533, %s531
      %s535 = smul.addr %s534, 2
      %s536 = scalar_lea.vmem %s9, %s535
      %v537 = vld [vmem:[%s516] sm:$0x1]
      %v538 = vld [vmem:[%s519] sm:$0x1]
      %vm539 = vcmask 253952
      %540 = vst.msk [vmem:[#allocation2] sm:$0x1] %vm539, 0.0
      %541 = vst.msk [vmem:[#allocation2 + $0x10] sm:$0x1] %vm539, 0.0
      %542 = vst.msk [vmem:[#allocation2 + $0x20] sm:$0x1] %vm539, 0.0
      %543 = vst.msk [vmem:[#allocation2 + $0x30] sm:$0x1] %vm539, 0.0
      %544 = vst.msk [vmem:[#allocation2 + $0x40] sm:$0x1] %vm539, 0.0
      %545 = vst.msk [vmem:[#allocation2 + $0x50] sm:$0x1] %vm539, 0.0
      %546 = vst.msk [vmem:[#allocation2 + $0x60] sm:$0x1] %vm539, 0.0
      %547 = vst.msk [vmem:[#allocation2 + $0x70] sm:$0x1] %vm539, 0.0
      %548 = vst.msk [vmem:[#allocation2 + $0x80] sm:$0x1] %vm539, 0.0
      %549 = vst.msk [vmem:[#allocation2 + $0x90] sm:$0x1] %vm539, 0.0
      %550 = vst.msk [vmem:[#allocation2 + $0x9] sm:$0x1] %vm539, 0.0
      %551 = vst.msk [vmem:[#allocation2 + $0x19] sm:$0x1] %vm539, 0.0
      %552 = vst.msk [vmem:[#allocation2 + $0x29] sm:$0x1] %vm539, 0.0
      %553 = vst.msk [vmem:[#allocation2 + $0x39] sm:$0x1] %vm539, 0.0
      %554 = vst.msk [vmem:[#allocation2 + $0x49] sm:$0x1] %vm539, 0.0
      %555 = vst.msk [vmem:[#allocation2 + $0x59] sm:$0x1] %vm539, 0.0
      %556 = vst.msk [vmem:[#allocation2 + $0x69] sm:$0x1] %vm539, 0.0
      %557 = vst.msk [vmem:[#allocation2 + $0x79] sm:$0x1] %vm539, 0.0
      %558 = vst.msk [vmem:[#allocation2 + $0x89] sm:$0x1] %vm539, 0.0
      %559 = vst.msk [vmem:[#allocation2 + $0x99] sm:$0x1] %vm539, 0.0
      %v560 = vld [vmem:[%s480] sm:$0xff]
      %v561 = vld [vmem:[%s480 + $0x8] sm:$0xff]
      %v562 = vld [vmem:[%s480 + $0x10] sm:$0xff]
      %v563 = vld [vmem:[%s480 + $0x18] sm:$0xff]
      %v564 = vld [vmem:[%s480 + $0x20] sm:$0xff]
      %v565 = vld [vmem:[%s480 + $0x28] sm:$0xff]
      %v566 = vld [vmem:[%s480 + $0x30] sm:$0xff]
      %v567 = vld [vmem:[%s480 + $0x38] sm:$0xff]
      %v569 = vperm.slane %v537, 0
      %v571 = vmul.f32 %v560, %v569
      %v572 = vmul.f32 %v561, %v569
      %v573 = vmul.f32 %v562, %v569
      %v574 = vmul.f32 %v563, %v569
      %v575 = vmul.f32 %v564, %v569
      %v576 = vmul.f32 %v565, %v569
      %v577 = vmul.f32 %v566, %v569
      %v578 = vmul.f32 %v567, %v569
      %v580 = vperm.slane %v538, 0
      %v582 = vadd.f32 %v571, %v580
      %v583 = vadd.f32 %v572, %v580
      %v584 = vadd.f32 %v573, %v580
      %v585 = vadd.f32 %v574, %v580
      %v586 = vadd.f32 %v575, %v580
      %v587 = vadd.f32 %v576, %v580
      %v588 = vadd.f32 %v577, %v580
      %v589 = vadd.f32 %v578, %v580
      %s590 = scalar_lea.vmem [#allocation2], 16
      %vm591 = vcmask 261120
      %592 = vst.msk [vmem:[%s590 + $0x1] sm:$0xff] %vm591, %v582
      %593 = vst.msk [vmem:[%s590 + $0x11] sm:$0xff] %vm591, %v583
      %594 = vst.msk [vmem:[%s590 + $0x21] sm:$0xff] %vm591, %v584
      %595 = vst.msk [vmem:[%s590 + $0x31] sm:$0xff] %vm591, %v585
      %596 = vst.msk [vmem:[%s590 + $0x41] sm:$0xff] %vm591, %v586
      %597 = vst.msk [vmem:[%s590 + $0x51] sm:$0xff] %vm591, %v587
      %598 = vst.msk [vmem:[%s590 + $0x61] sm:$0xff] %vm591, %v588
      %599 = vst.msk [vmem:[%s590 + $0x71] sm:$0xff] %vm591, %v589
      %p600 = scmp.eq.s32.totalorder %s26, 0
      %v601 = vld [vmem:[%s493] sm:$0xff]
      %v602 = vmul.f32 %v601, %v569
      %v603 = vadd.f32 %v602, %v580
      %s604 = scalar_select %p600, 1, 0
      %v605 = vstv %s604
      %vm606 = vcmp.eq.s32.totalorder %v605, 1
      %v607 = vsel %vm606, 0.0, %v603
      %v608 = vld [vmem:[%s509] sm:$0xff]
      %v609 = vmul.f32 %v608, %v569
      %v610 = vadd.f32 %v609, %v580
      %v611 = vsel %vm606, 0.0, %v610
      %612 = vst.msk [vmem:[#allocation2 + $0x1] sm:$0xff] %vm591, %v607
      %s613 = scalar_lea.vmem [#allocation2], 144
      %614 = vst.msk [vmem:[%s613 + $0x1] sm:$0xff] %vm591, %v611
      %v615 = vld [vmem:[#allocation2] sm:$0xff]
      %v616 = vld [vmem:[#allocation2 + $0x10] sm:$0xff]
      %v617 = vld [vmem:[#allocation2 + $0x20] sm:$0xff]
      %v618 = vld [vmem:[#allocation2 + $0x30] sm:$0xff]
      %v619 = vld [vmem:[#allocation2 + $0x40] sm:$0xff]
      %v620 = vld [vmem:[#allocation2 + $0x50] sm:$0xff]
      %v621 = vld [vmem:[#allocation2 + $0x60] sm:$0xff]
      %v622 = vld [vmem:[#allocation2 + $0x70] sm:$0xff]
      %v623 = vld [vmem:[%s5] sm:$0xff]
      %v624 = vld [vmem:[%s5 + $0x8] sm:$0xff]
      %v625 = vld [vmem:[%s5 + $0x10] sm:$0xff]
      %v626 = vld [vmem:[%s5 + $0x18] sm:$0xff]
      %v627 = vld [vmem:[#allocation2 + $0x1] sm:$0xff]
      %v628 = vld [vmem:[#allocation2 + $0x11] sm:$0xff]
      %v629 = vld [vmem:[#allocation2 + $0x21] sm:$0xff]
      %v630 = vld [vmem:[#allocation2 + $0x31] sm:$0xff]
      %v631 = vld [vmem:[#allocation2 + $0x41] sm:$0xff]
      %v632 = vld [vmem:[#allocation2 + $0x51] sm:$0xff]
      %v633 = vld [vmem:[#allocation2 + $0x61] sm:$0xff]
      %v634 = vld [vmem:[#allocation2 + $0x71] sm:$0xff]
      %s635 = scalar_lea.vmem %s5, 32
      %v636 = vld [vmem:[%s635] sm:$0xff]
      %v637 = vld [vmem:[%s635 + $0x8] sm:$0xff]
      %v638 = vld [vmem:[%s635 + $0x10] sm:$0xff]
      %v639 = vld [vmem:[%s635 + $0x18] sm:$0xff]
      %v641 = vsel %vm591, %v627, 0
      %v644 = vsel %vm591, %v628, 0
      %v647 = vsel %vm591, %v629, 0
      %v650 = vsel %vm591, %v630, 0
      %v653 = vsel %vm591, %v631, 0
      %v656 = vsel %vm591, %v632, 0
      %v659 = vsel %vm591, %v633, 0
      %v662 = vsel %vm591, %v634, 0
      %664 = vmatpush.msra.mxu0 0.0
      %665 = vmatpush.msra.mxu0 0.0
      %666 = vmatpush.msra.mxu0 0.0
      %667 = vmatpush.msra.mxu0 0.0
      %668 = vmatpush.msra.mxu0 0.0
      %669 = vmatpush.msra.mxu0 0.0
      %670 = vmatpush.msra.mxu0 0.0
      %671 = vmatpush.msra.mxu0 0.0
      %672 = vmatpush.msra.mxu0 0.0
      %673 = vmatpush.msra.mxu0 0.0
      %674 = vmatpush.msra.mxu0 0.0
      %675 = vmatpush.msra.mxu0 0.0
      %676 = vmatpush.msra.mxu0 %v639
      %677 = vmatpush.msra.mxu0 %v638
      %678 = vmatpush.msra.mxu0 %v637
      %679 = vmatpush.msra.mxu0 %v636
      %680 = vmatmul.f32.gmra.mxu0 %v641
      %v681 = vpop.f32.mrf.mxu0
      %v682 = vadd.f32 0.0, %v681
      %683 = vmatmul.f32.gmra.mxu0 %v644
      %v684 = vpop.f32.mrf.mxu0
      %v685 = vadd.f32 0.0, %v684
      %686 = vmatmul.f32.gmra.mxu0 %v647
      %v687 = vpop.f32.mrf.mxu0
      %v688 = vadd.f32 0.0, %v687
      %689 = vmatmul.f32.gmra.mxu0 %v650
      %v690 = vpop.f32.mrf.mxu0
      %v691 = vadd.f32 0.0, %v690
      %692 = vmatmul.f32.gmra.mxu0 %v653
      %v693 = vpop.f32.mrf.mxu0
      %v694 = vadd.f32 0.0, %v693
      %695 = vmatmul.f32.gmra.mxu0 %v656
      %v696 = vpop.f32.mrf.mxu0
      %v697 = vadd.f32 0.0, %v696
      %698 = vmatmul.f32.gmra.mxu0 %v659
      %v699 = vpop.f32.mrf.mxu0
      %v700 = vadd.f32 0.0, %v699
      %701 = vmatmul.f32.gmra.mxu0 %v662
      %v702 = vpop.f32.mrf.mxu0
      %v703 = vadd.f32 0.0, %v702
      %704 = vdwg.mxu0
      %v706 = vsel %vm591, %v615, 0
      %v709 = vsel %vm591, %v616, 0
      %v712 = vsel %vm591, %v617, 0
      %v715 = vsel %vm591, %v618, 0
      %v718 = vsel %vm591, %v619, 0
      %v721 = vsel %vm591, %v620, 0
      %v724 = vsel %vm591, %v621, 0
      %v727 = vsel %vm591, %v622, 0
      %729 = vmatpush.msra.mxu0 0.0
      %730 = vmatpush.msra.mxu0 0.0
      %731 = vmatpush.msra.mxu0 0.0
      %732 = vmatpush.msra.mxu0 0.0
      %733 = vmatpush.msra.mxu0 0.0
      %734 = vmatpush.msra.mxu0 0.0
      %735 = vmatpush.msra.mxu0 0.0
      %736 = vmatpush.msra.mxu0 0.0
      %737 = vmatpush.msra.mxu0 0.0
      %738 = vmatpush.msra.mxu0 0.0
      %739 = vmatpush.msra.mxu0 0.0
      %740 = vmatpush.msra.mxu0 0.0
      %741 = vmatpush.msra.mxu0 %v626
      %742 = vmatpush.msra.mxu0 %v625
      %743 = vmatpush.msra.mxu0 %v624
      %744 = vmatpush.msra.mxu0 %v623
      %745 = vmatmul.f32.gmra.mxu0 %v706
      %v746 = vpop.f32.mrf.mxu0
      %v747 = vadd.f32 %v682, %v746
      %748 = vmatmul.f32.gmra.mxu0 %v709
      %v749 = vpop.f32.mrf.mxu0
      %v750 = vadd.f32 %v685, %v749
      %751 = vmatmul.f32.gmra.mxu0 %v712
      %v752 = vpop.f32.mrf.mxu0
      %v753 = vadd.f32 %v688, %v752
      %754 = vmatmul.f32.gmra.mxu0 %v715
      %v755 = vpop.f32.mrf.mxu0
      %v756 = vadd.f32 %v691, %v755
      %757 = vmatmul.f32.gmra.mxu0 %v718
      %v758 = vpop.f32.mrf.mxu0
      %v759 = vadd.f32 %v694, %v758
      %760 = vmatmul.f32.gmra.mxu0 %v721
      %v761 = vpop.f32.mrf.mxu0
      %v762 = vadd.f32 %v697, %v761
      %763 = vmatmul.f32.gmra.mxu0 %v724
      %v764 = vpop.f32.mrf.mxu0
      %v765 = vadd.f32 %v700, %v764
      %766 = vmatmul.f32.gmra.mxu0 %v727
      %v767 = vpop.f32.mrf.mxu0
      %v768 = vadd.f32 %v703, %v767
      %769 = vdwg.mxu0
      %v770 = vld [vmem:[#allocation2 + $0x2] sm:$0xff]
      %v771 = vld [vmem:[#allocation2 + $0x12] sm:$0xff]
      %v772 = vld [vmem:[#allocation2 + $0x22] sm:$0xff]
      %v773 = vld [vmem:[#allocation2 + $0x32] sm:$0xff]
      %v774 = vld [vmem:[#allocation2 + $0x42] sm:$0xff]
      %v775 = vld [vmem:[#allocation2 + $0x52] sm:$0xff]
      %v776 = vld [vmem:[#allocation2 + $0x62] sm:$0xff]
      %v777 = vld [vmem:[#allocation2 + $0x72] sm:$0xff]
      %s778 = scalar_lea.vmem %s5, 64
      %v779 = vld [vmem:[%s778] sm:$0xff]
      %v780 = vld [vmem:[%s778 + $0x8] sm:$0xff]
      %v781 = vld [vmem:[%s778 + $0x10] sm:$0xff]
      %v782 = vld [vmem:[%s778 + $0x18] sm:$0xff]
      %v784 = vsel %vm591, %v770, 0
      %v787 = vsel %vm591, %v771, 0
      %v790 = vsel %vm591, %v772, 0
      %v793 = vsel %vm591, %v773, 0
      %v796 = vsel %vm591, %v774, 0
      %v799 = vsel %vm591, %v775, 0
      %v802 = vsel %vm591, %v776, 0
      %v805 = vsel %vm591, %v777, 0
      %807 = vmatpush.msra.mxu0 0.0
      %808 = vmatpush.msra.mxu0 0.0
      %809 = vmatpush.msra.mxu0 0.0
      %810 = vmatpush.msra.mxu0 0.0
      %811 = vmatpush.msra.mxu0 0.0
      %812 = vmatpush.msra.mxu0 0.0
      %813 = vmatpush.msra.mxu0 0.0
      %814 = vmatpush.msra.mxu0 0.0
      %815 = vmatpush.msra.mxu0 0.0
      %816 = vmatpush.msra.mxu0 0.0
      %817 = vmatpush.msra.mxu0 0.0
      %818 = vmatpush.msra.mxu0 0.0
      %819 = vmatpush.msra.mxu0 %v782
      %820 = vmatpush.msra.mxu0 %v781
      %821 = vmatpush.msra.mxu0 %v780
      %822 = vmatpush.msra.mxu0 %v779
      %823 = vmatmul.f32.gmra.mxu0 %v784
      %v824 = vpop.f32.mrf.mxu0
      %v825 = vadd.f32 0.0, %v824
      %826 = vmatmul.f32.gmra.mxu0 %v787
      %v827 = vpop.f32.mrf.mxu0
      %v828 = vadd.f32 0.0, %v827
      %829 = vmatmul.f32.gmra.mxu0 %v790
      %v830 = vpop.f32.mrf.mxu0
      %v831 = vadd.f32 0.0, %v830
      %832 = vmatmul.f32.gmra.mxu0 %v793
      %v833 = vpop.f32.mrf.mxu0
      %v834 = vadd.f32 0.0, %v833
      %835 = vmatmul.f32.gmra.mxu0 %v796
      %v836 = vpop.f32.mrf.mxu0
      %v837 = vadd.f32 0.0, %v836
      %838 = vmatmul.f32.gmra.mxu0 %v799
      %v839 = vpop.f32.mrf.mxu0
      %v840 = vadd.f32 0.0, %v839
      %841 = vmatmul.f32.gmra.mxu0 %v802
      %v842 = vpop.f32.mrf.mxu0
      %v843 = vadd.f32 0.0, %v842
      %844 = vmatmul.f32.gmra.mxu0 %v805
      %v845 = vpop.f32.mrf.mxu0
      %v846 = vadd.f32 0.0, %v845
      %847 = vdwg.mxu0
      %v848 = vadd.f32 %v747, %v825
      %v849 = vadd.f32 %v750, %v828
      %v850 = vadd.f32 %v753, %v831
      %v851 = vadd.f32 %v756, %v834
      %v852 = vadd.f32 %v759, %v837
      %v853 = vadd.f32 %v762, %v840
      %v854 = vadd.f32 %v765, %v843
      %v855 = vadd.f32 %v768, %v846
      %v856 = vld [vmem:[%s590] sm:$0xff]
      %v857 = vld [vmem:[%s590 + $0x10] sm:$0xff]
      %v858 = vld [vmem:[%s590 + $0x20] sm:$0xff]
      %v859 = vld [vmem:[%s590 + $0x30] sm:$0xff]
      %v860 = vld [vmem:[%s590 + $0x40] sm:$0xff]
      %v861 = vld [vmem:[%s590 + $0x50] sm:$0xff]
      %v862 = vld [vmem:[%s590 + $0x60] sm:$0xff]
      %v863 = vld [vmem:[%s590 + $0x70] sm:$0xff]
      %s864 = scalar_lea.vmem %s5, 96
      %v865 = vld [vmem:[%s864] sm:$0xff]
      %v866 = vld [vmem:[%s864 + $0x8] sm:$0xff]
      %v867 = vld [vmem:[%s864 + $0x10] sm:$0xff]
      %v868 = vld [vmem:[%s864 + $0x18] sm:$0xff]
      %v870 = vsel %vm591, %v856, 0
      %v873 = vsel %vm591, %v857, 0
      %v876 = vsel %vm591, %v858, 0
      %v879 = vsel %vm591, %v859, 0
      %v882 = vsel %vm591, %v860, 0
      %v885 = vsel %vm591, %v861, 0
      %v888 = vsel %vm591, %v862, 0
      %v891 = vsel %vm591, %v863, 0
      %893 = vmatpush.msra.mxu0 0.0
      %894 = vmatpush.msra.mxu0 0.0
      %895 = vmatpush.msra.mxu0 0.0
      %896 = vmatpush.msra.mxu0 0.0
      %897 = vmatpush.msra.mxu0 0.0
      %898 = vmatpush.msra.mxu0 0.0
      %899 = vmatpush.msra.mxu0 0.0
      %900 = vmatpush.msra.mxu0 0.0
      %901 = vmatpush.msra.mxu0 0.0
      %902 = vmatpush.msra.mxu0 0.0
      %903 = vmatpush.msra.mxu0 0.0
      %904 = vmatpush.msra.mxu0 0.0
      %905 = vmatpush.msra.mxu0 %v868
      %906 = vmatpush.msra.mxu0 %v867
      %907 = vmatpush.msra.mxu0 %v866
      %908 = vmatpush.msra.mxu0 %v865
      %909 = vmatmul.f32.gmra.mxu0 %v870
      %v910 = vpop.f32.mrf.mxu0
      %v911 = vadd.f32 0.0, %v910
      %912 = vmatmul.f32.gmra.mxu0 %v873
      %v913 = vpop.f32.mrf.mxu0
      %v914 = vadd.f32 0.0, %v913
      %915 = vmatmul.f32.gmra.mxu0 %v876
      %v916 = vpop.f32.mrf.mxu0
      %v917 = vadd.f32 0.0, %v916
      %918 = vmatmul.f32.gmra.mxu0 %v879
      %v919 = vpop.f32.mrf.mxu0
      %v920 = vadd.f32 0.0, %v919
      %921 = vmatmul.f32.gmra.mxu0 %v882
      %v922 = vpop.f32.mrf.mxu0
      %v923 = vadd.f32 0.0, %v922
      %924 = vmatmul.f32.gmra.mxu0 %v885
      %v925 = vpop.f32.mrf.mxu0
      %v926 = vadd.f32 0.0, %v925
      %927 = vmatmul.f32.gmra.mxu0 %v888
      %v928 = vpop.f32.mrf.mxu0
      %v929 = vadd.f32 0.0, %v928
      %930 = vmatmul.f32.gmra.mxu0 %v891
      %v931 = vpop.f32.mrf.mxu0
      %v932 = vadd.f32 0.0, %v931
      %933 = vdwg.mxu0
      %v934 = vadd.f32 %v848, %v911
      %v935 = vadd.f32 %v849, %v914
      %v936 = vadd.f32 %v850, %v917
      %v937 = vadd.f32 %v851, %v920
      %v938 = vadd.f32 %v852, %v923
      %v939 = vadd.f32 %v853, %v926
      %v940 = vadd.f32 %v854, %v929
      %v941 = vadd.f32 %v855, %v932
      %v942 = vld [vmem:[%s590 + $0x1] sm:$0xff]
      %v943 = vld [vmem:[%s590 + $0x11] sm:$0xff]
      %v944 = vld [vmem:[%s590 + $0x21] sm:$0xff]
      %v945 = vld [vmem:[%s590 + $0x31] sm:$0xff]
      %v946 = vld [vmem:[%s590 + $0x41] sm:$0xff]
      %v947 = vld [vmem:[%s590 + $0x51] sm:$0xff]
      %v948 = vld [vmem:[%s590 + $0x61] sm:$0xff]
      %v949 = vld [vmem:[%s590 + $0x71] sm:$0xff]
      %s950 = scalar_lea.vmem %s5, 128
      %v951 = vld [vmem:[%s950] sm:$0xff]
      %v952 = vld [vmem:[%s950 + $0x8] sm:$0xff]
      %v953 = vld [vmem:[%s950 + $0x10] sm:$0xff]
      %v954 = vld [vmem:[%s950 + $0x18] sm:$0xff]
      %v956 = vsel %vm591, %v942, 0
      %v959 = vsel %vm591, %v943, 0
      %v962 = vsel %vm591, %v944, 0
      %v965 = vsel %vm591, %v945, 0
      %v968 = vsel %vm591, %v946, 0
      %v971 = vsel %vm591, %v947, 0
      %v974 = vsel %vm591, %v948, 0
      %v977 = vsel %vm591, %v949, 0
      %979 = vmatpush.msra.mxu0 0.0
      %980 = vmatpush.msra.mxu0 0.0
      %981 = vmatpush.msra.mxu0 0.0
      %982 = vmatpush.msra.mxu0 0.0
      %983 = vmatpush.msra.mxu0 0.0
      %984 = vmatpush.msra.mxu0 0.0
      %985 = vmatpush.msra.mxu0 0.0
      %986 = vmatpush.msra.mxu0 0.0
      %987 = vmatpush.msra.mxu0 0.0
      %988 = vmatpush.msra.mxu0 0.0
      %989 = vmatpush.msra.mxu0 0.0
      %990 = vmatpush.msra.mxu0 0.0
      %991 = vmatpush.msra.mxu0 %v954
      %992 = vmatpush.msra.mxu0 %v953
      %993 = vmatpush.msra.mxu0 %v952
      %994 = vmatpush.msra.mxu0 %v951
      %995 = vmatmul.f32.gmra.mxu0 %v956
      %v996 = vpop.f32.mrf.mxu0
      %v997 = vadd.f32 0.0, %v996
      %998 = vmatmul.f32.gmra.mxu0 %v959
      %v999 = vpop.f32.mrf.mxu0
      %v1000 = vadd.f32 0.0, %v999
      %1001 = vmatmul.f32.gmra.mxu0 %v962
      %v1002 = vpop.f32.mrf.mxu0
      %v1003 = vadd.f32 0.0, %v1002
      %1004 = vmatmul.f32.gmra.mxu0 %v965
      %v1005 = vpop.f32.mrf.mxu0
      %v1006 = vadd.f32 0.0, %v1005
      %1007 = vmatmul.f32.gmra.mxu0 %v968
      %v1008 = vpop.f32.mrf.mxu0
      %v1009 = vadd.f32 0.0, %v1008
      %1010 = vmatmul.f32.gmra.mxu0 %v971
      %v1011 = vpop.f32.mrf.mxu0
      %v1012 = vadd.f32 0.0, %v1011
      %1013 = vmatmul.f32.gmra.mxu0 %v974
      %v1014 = vpop.f32.mrf.mxu0
      %v1015 = vadd.f32 0.0, %v1014
      %1016 = vmatmul.f32.gmra.mxu0 %v977
      %v1017 = vpop.f32.mrf.mxu0
      %v1018 = vadd.f32 0.0, %v1017
      %1019 = vdwg.mxu0
      %v1020 = vadd.f32 %v934, %v997
      %v1021 = vadd.f32 %v935, %v1000
      %v1022 = vadd.f32 %v936, %v1003
      %v1023 = vadd.f32 %v937, %v1006
      %v1024 = vadd.f32 %v938, %v1009
      %v1025 = vadd.f32 %v939, %v1012
      %v1026 = vadd.f32 %v940, %v1015
      %v1027 = vadd.f32 %v941, %v1018
      %v1028 = vld [vmem:[%s590 + $0x2] sm:$0xff]
      %v1029 = vld [vmem:[%s590 + $0x12] sm:$0xff]
      %v1030 = vld [vmem:[%s590 + $0x22] sm:$0xff]
      %v1031 = vld [vmem:[%s590 + $0x32] sm:$0xff]
      %v1032 = vld [vmem:[%s590 + $0x42] sm:$0xff]
      %v1033 = vld [vmem:[%s590 + $0x52] sm:$0xff]
      %v1034 = vld [vmem:[%s590 + $0x62] sm:$0xff]
      %v1035 = vld [vmem:[%s590 + $0x72] sm:$0xff]
      %s1036 = scalar_lea.vmem %s5, 160
      %v1037 = vld [vmem:[%s1036] sm:$0xff]
      %v1038 = vld [vmem:[%s1036 + $0x8] sm:$0xff]
      %v1039 = vld [vmem:[%s1036 + $0x10] sm:$0xff]
      %v1040 = vld [vmem:[%s1036 + $0x18] sm:$0xff]
      %v1042 = vsel %vm591, %v1028, 0
      %v1045 = vsel %vm591, %v1029, 0
      %v1048 = vsel %vm591, %v1030, 0
      %v1051 = vsel %vm591, %v1031, 0
      %v1054 = vsel %vm591, %v1032, 0
      %v1057 = vsel %vm591, %v1033, 0
      %v1060 = vsel %vm591, %v1034, 0
      %v1063 = vsel %vm591, %v1035, 0
      %1065 = vmatpush.msra.mxu0 0.0
      %1066 = vmatpush.msra.mxu0 0.0
      %1067 = vmatpush.msra.mxu0 0.0
      %1068 = vmatpush.msra.mxu0 0.0
      %1069 = vmatpush.msra.mxu0 0.0
      %1070 = vmatpush.msra.mxu0 0.0
      %1071 = vmatpush.msra.mxu0 0.0
      %1072 = vmatpush.msra.mxu0 0.0
      %1073 = vmatpush.msra.mxu0 0.0
      %1074 = vmatpush.msra.mxu0 0.0
      %1075 = vmatpush.msra.mxu0 0.0
      %1076 = vmatpush.msra.mxu0 0.0
      %1077 = vmatpush.msra.mxu0 %v1040
      %1078 = vmatpush.msra.mxu0 %v1039
      %1079 = vmatpush.msra.mxu0 %v1038
      %1080 = vmatpush.msra.mxu0 %v1037
      %1081 = vmatmul.f32.gmra.mxu0 %v1042
      %v1082 = vpop.f32.mrf.mxu0
      %v1083 = vadd.f32 0.0, %v1082
      %1084 = vmatmul.f32.gmra.mxu0 %v1045
      %v1085 = vpop.f32.mrf.mxu0
      %v1086 = vadd.f32 0.0, %v1085
      %1087 = vmatmul.f32.gmra.mxu0 %v1048
      %v1088 = vpop.f32.mrf.mxu0
      %v1089 = vadd.f32 0.0, %v1088
      %1090 = vmatmul.f32.gmra.mxu0 %v1051
      %v1091 = vpop.f32.mrf.mxu0
      %v1092 = vadd.f32 0.0, %v1091
      %1093 = vmatmul.f32.gmra.mxu0 %v1054
      %v1094 = vpop.f32.mrf.mxu0
      %v1095 = vadd.f32 0.0, %v1094
      %1096 = vmatmul.f32.gmra.mxu0 %v1057
      %v1097 = vpop.f32.mrf.mxu0
      %v1098 = vadd.f32 0.0, %v1097
      %1099 = vmatmul.f32.gmra.mxu0 %v1060
      %v1100 = vpop.f32.mrf.mxu0
      %v1101 = vadd.f32 0.0, %v1100
      %1102 = vmatmul.f32.gmra.mxu0 %v1063
      %v1103 = vpop.f32.mrf.mxu0
      %v1104 = vadd.f32 0.0, %v1103
      %1105 = vdwg.mxu0
      %v1106 = vadd.f32 %v1020, %v1083
      %v1107 = vadd.f32 %v1021, %v1086
      %v1108 = vadd.f32 %v1022, %v1089
      %v1109 = vadd.f32 %v1023, %v1092
      %v1110 = vadd.f32 %v1024, %v1095
      %v1111 = vadd.f32 %v1025, %v1098
      %v1112 = vadd.f32 %v1026, %v1101
      %v1113 = vadd.f32 %v1027, %v1104
      %s1114 = scalar_lea.vmem [#allocation2], 32
      %v1115 = vld [vmem:[%s1114] sm:$0xff]
      %v1116 = vld [vmem:[%s1114 + $0x10] sm:$0xff]
      %v1117 = vld [vmem:[%s1114 + $0x20] sm:$0xff]
      %v1118 = vld [vmem:[%s1114 + $0x30] sm:$0xff]
      %v1119 = vld [vmem:[%s1114 + $0x40] sm:$0xff]
      %v1120 = vld [vmem:[%s1114 + $0x50] sm:$0xff]
      %v1121 = vld [vmem:[%s1114 + $0x60] sm:$0xff]
      %v1122 = vld [vmem:[%s1114 + $0x70] sm:$0xff]
      %s1123 = scalar_lea.vmem %s5, 192
      %v1124 = vld [vmem:[%s1123] sm:$0xff]
      %v1125 = vld [vmem:[%s1123 + $0x8] sm:$0xff]
      %v1126 = vld [vmem:[%s1123 + $0x10] sm:$0xff]
      %v1127 = vld [vmem:[%s1123 + $0x18] sm:$0xff]
      %v1129 = vsel %vm591, %v1115, 0
      %v1132 = vsel %vm591, %v1116, 0
      %v1135 = vsel %vm591, %v1117, 0
      %v1138 = vsel %vm591, %v1118, 0
      %v1141 = vsel %vm591, %v1119, 0
      %v1144 = vsel %vm591, %v1120, 0
      %v1147 = vsel %vm591, %v1121, 0
      %v1150 = vsel %vm591, %v1122, 0
      %1152 = vmatpush.msra.mxu0 0.0
      %1153 = vmatpush.msra.mxu0 0.0
      %1154 = vmatpush.msra.mxu0 0.0
      %1155 = vmatpush.msra.mxu0 0.0
      %1156 = vmatpush.msra.mxu0 0.0
      %1157 = vmatpush.msra.mxu0 0.0
      %1158 = vmatpush.msra.mxu0 0.0
      %1159 = vmatpush.msra.mxu0 0.0
      %1160 = vmatpush.msra.mxu0 0.0
      %1161 = vmatpush.msra.mxu0 0.0
      %1162 = vmatpush.msra.mxu0 0.0
      %1163 = vmatpush.msra.mxu0 0.0
      %1164 = vmatpush.msra.mxu0 %v1127
      %1165 = vmatpush.msra.mxu0 %v1126
      %1166 = vmatpush.msra.mxu0 %v1125
      %1167 = vmatpush.msra.mxu0 %v1124
      %1168 = vmatmul.f32.gmra.mxu0 %v1129
      %v1169 = vpop.f32.mrf.mxu0
      %v1170 = vadd.f32 0.0, %v1169
      %1171 = vmatmul.f32.gmra.mxu0 %v1132
      %v1172 = vpop.f32.mrf.mxu0
      %v1173 = vadd.f32 0.0, %v1172
      %1174 = vmatmul.f32.gmra.mxu0 %v1135
      %v1175 = vpop.f32.mrf.mxu0
      %v1176 = vadd.f32 0.0, %v1175
      %1177 = vmatmul.f32.gmra.mxu0 %v1138
      %v1178 = vpop.f32.mrf.mxu0
      %v1179 = vadd.f32 0.0, %v1178
      %1180 = vmatmul.f32.gmra.mxu0 %v1141
      %v1181 = vpop.f32.mrf.mxu0
      %v1182 = vadd.f32 0.0, %v1181
      %1183 = vmatmul.f32.gmra.mxu0 %v1144
      %v1184 = vpop.f32.mrf.mxu0
      %v1185 = vadd.f32 0.0, %v1184
      %1186 = vmatmul.f32.gmra.mxu0 %v1147
      %v1187 = vpop.f32.mrf.mxu0
      %v1188 = vadd.f32 0.0, %v1187
      %1189 = vmatmul.f32.gmra.mxu0 %v1150
      %v1190 = vpop.f32.mrf.mxu0
      %v1191 = vadd.f32 0.0, %v1190
      %1192 = vdwg.mxu0
      %v1193 = vadd.f32 %v1106, %v1170
      %v1194 = vadd.f32 %v1107, %v1173
      %v1195 = vadd.f32 %v1108, %v1176
      %v1196 = vadd.f32 %v1109, %v1179
      %v1197 = vadd.f32 %v1110, %v1182
      %v1198 = vadd.f32 %v1111, %v1185
      %v1199 = vadd.f32 %v1112, %v1188
      %v1200 = vadd.f32 %v1113, %v1191
      %v1201 = vld [vmem:[%s1114 + $0x1] sm:$0xff]
      %v1202 = vld [vmem:[%s1114 + $0x11] sm:$0xff]
      %v1203 = vld [vmem:[%s1114 + $0x21] sm:$0xff]
      %v1204 = vld [vmem:[%s1114 + $0x31] sm:$0xff]
      %v1205 = vld [vmem:[%s1114 + $0x41] sm:$0xff]
      %v1206 = vld [vmem:[%s1114 + $0x51] sm:$0xff]
      %v1207 = vld [vmem:[%s1114 + $0x61] sm:$0xff]
      %v1208 = vld [vmem:[%s1114 + $0x71] sm:$0xff]
      %s1209 = scalar_lea.vmem %s5, 224
      %v1210 = vld [vmem:[%s1209] sm:$0xff]
      %v1211 = vld [vmem:[%s1209 + $0x8] sm:$0xff]
      %v1212 = vld [vmem:[%s1209 + $0x10] sm:$0xff]
      %v1213 = vld [vmem:[%s1209 + $0x18] sm:$0xff]
      %v1215 = vsel %vm591, %v1201, 0
      %v1218 = vsel %vm591, %v1202, 0
      %v1221 = vsel %vm591, %v1203, 0
      %v1224 = vsel %vm591, %v1204, 0
      %v1227 = vsel %vm591, %v1205, 0
      %v1230 = vsel %vm591, %v1206, 0
      %v1233 = vsel %vm591, %v1207, 0
      %v1236 = vsel %vm591, %v1208, 0
      %1238 = vmatpush.msra.mxu0 0.0
      %1239 = vmatpush.msra.mxu0 0.0
      %1240 = vmatpush.msra.mxu0 0.0
      %1241 = vmatpush.msra.mxu0 0.0
      %1242 = vmatpush.msra.mxu0 0.0
      %1243 = vmatpush.msra.mxu0 0.0
      %1244 = vmatpush.msra.mxu0 0.0
      %1245 = vmatpush.msra.mxu0 0.0
      %1246 = vmatpush.msra.mxu0 0.0
      %1247 = vmatpush.msra.mxu0 0.0
      %1248 = vmatpush.msra.mxu0 0.0
      %1249 = vmatpush.msra.mxu0 0.0
      %1250 = vmatpush.msra.mxu0 %v1213
      %1251 = vmatpush.msra.mxu0 %v1212
      %1252 = vmatpush.msra.mxu0 %v1211
      %1253 = vmatpush.msra.mxu0 %v1210
      %1254 = vmatmul.f32.gmra.mxu0 %v1215
      %v1255 = vpop.f32.mrf.mxu0
      %v1256 = vadd.f32 0.0, %v1255
      %1257 = vmatmul.f32.gmra.mxu0 %v1218
      %v1258 = vpop.f32.mrf.mxu0
      %v1259 = vadd.f32 0.0, %v1258
      %1260 = vmatmul.f32.gmra.mxu0 %v1221
      %v1261 = vpop.f32.mrf.mxu0
      %v1262 = vadd.f32 0.0, %v1261
      %1263 = vmatmul.f32.gmra.mxu0 %v1224
      %v1264 = vpop.f32.mrf.mxu0
      %v1265 = vadd.f32 0.0, %v1264
      %1266 = vmatmul.f32.gmra.mxu0 %v1227
      %v1267 = vpop.f32.mrf.mxu0
      %v1268 = vadd.f32 0.0, %v1267
      %1269 = vmatmul.f32.gmra.mxu0 %v1230
      %v1270 = vpop.f32.mrf.mxu0
      %v1271 = vadd.f32 0.0, %v1270
      %1272 = vmatmul.f32.gmra.mxu0 %v1233
      %v1273 = vpop.f32.mrf.mxu0
      %v1274 = vadd.f32 0.0, %v1273
      %1275 = vmatmul.f32.gmra.mxu0 %v1236
      %v1276 = vpop.f32.mrf.mxu0
      %v1277 = vadd.f32 0.0, %v1276
      %1278 = vdwg.mxu0
      %v1279 = vadd.f32 %v1193, %v1256
      %v1280 = vadd.f32 %v1194, %v1259
      %v1281 = vadd.f32 %v1195, %v1262
      %v1282 = vadd.f32 %v1196, %v1265
      %v1283 = vadd.f32 %v1197, %v1268
      %v1284 = vadd.f32 %v1198, %v1271
      %v1285 = vadd.f32 %v1199, %v1274
      %v1286 = vadd.f32 %v1200, %v1277
      %v1287 = vld [vmem:[%s1114 + $0x2] sm:$0xff]
      %v1288 = vld [vmem:[%s1114 + $0x12] sm:$0xff]
      %v1289 = vld [vmem:[%s1114 + $0x22] sm:$0xff]
      %v1290 = vld [vmem:[%s1114 + $0x32] sm:$0xff]
      %v1291 = vld [vmem:[%s1114 + $0x42] sm:$0xff]
      %v1292 = vld [vmem:[%s1114 + $0x52] sm:$0xff]
      %v1293 = vld [vmem:[%s1114 + $0x62] sm:$0xff]
      %v1294 = vld [vmem:[%s1114 + $0x72] sm:$0xff]
      %s1295 = scalar_lea.vmem %s5, 256
      %v1296 = vld [vmem:[%s1295] sm:$0xff]
      %v1297 = vld [vmem:[%s1295 + $0x8] sm:$0xff]
      %v1298 = vld [vmem:[%s1295 + $0x10] sm:$0xff]
      %v1299 = vld [vmem:[%s1295 + $0x18] sm:$0xff]
      %v1301 = vsel %vm591, %v1287, 0
      %v1304 = vsel %vm591, %v1288, 0
      %v1307 = vsel %vm591, %v1289, 0
      %v1310 = vsel %vm591, %v1290, 0
      %v1313 = vsel %vm591, %v1291, 0
      %v1316 = vsel %vm591, %v1292, 0
      %v1319 = vsel %vm591, %v1293, 0
      %v1322 = vsel %vm591, %v1294, 0
      %1324 = vmatpush.msra.mxu0 0.0
      %1325 = vmatpush.msra.mxu0 0.0
      %1326 = vmatpush.msra.mxu0 0.0
      %1327 = vmatpush.msra.mxu0 0.0
      %1328 = vmatpush.msra.mxu0 0.0
      %1329 = vmatpush.msra.mxu0 0.0
      %1330 = vmatpush.msra.mxu0 0.0
      %1331 = vmatpush.msra.mxu0 0.0
      %1332 = vmatpush.msra.mxu0 0.0
      %1333 = vmatpush.msra.mxu0 0.0
      %1334 = vmatpush.msra.mxu0 0.0
      %1335 = vmatpush.msra.mxu0 0.0
      %1336 = vmatpush.msra.mxu0 %v1299
      %1337 = vmatpush.msra.mxu0 %v1298
      %1338 = vmatpush.msra.mxu0 %v1297
      %1339 = vmatpush.msra.mxu0 %v1296
      %1340 = vmatmul.f32.gmra.mxu0 %v1301
      %v1341 = vpop.f32.mrf.mxu0
      %v1342 = vadd.f32 0.0, %v1341
      %1343 = vmatmul.f32.gmra.mxu0 %v1304
      %v1344 = vpop.f32.mrf.mxu0
      %v1345 = vadd.f32 0.0, %v1344
      %1346 = vmatmul.f32.gmra.mxu0 %v1307
      %v1347 = vpop.f32.mrf.mxu0
      %v1348 = vadd.f32 0.0, %v1347
      %1349 = vmatmul.f32.gmra.mxu0 %v1310
      %v1350 = vpop.f32.mrf.mxu0
      %v1351 = vadd.f32 0.0, %v1350
      %1352 = vmatmul.f32.gmra.mxu0 %v1313
      %v1353 = vpop.f32.mrf.mxu0
      %v1354 = vadd.f32 0.0, %v1353
      %1355 = vmatmul.f32.gmra.mxu0 %v1316
      %v1356 = vpop.f32.mrf.mxu0
      %v1357 = vadd.f32 0.0, %v1356
      %1358 = vmatmul.f32.gmra.mxu0 %v1319
      %v1359 = vpop.f32.mrf.mxu0
      %v1360 = vadd.f32 0.0, %v1359
      %1361 = vmatmul.f32.gmra.mxu0 %v1322
      %v1362 = vpop.f32.mrf.mxu0
      %v1363 = vadd.f32 0.0, %v1362
      %1364 = vdwg.mxu0
      %v1365 = vadd.f32 %v1279, %v1342
      %v1366 = vadd.f32 %v1280, %v1345
      %v1367 = vadd.f32 %v1281, %v1348
      %v1368 = vadd.f32 %v1282, %v1351
      %v1369 = vadd.f32 %v1283, %v1354
      %v1370 = vadd.f32 %v1284, %v1357
      %v1371 = vadd.f32 %v1285, %v1360
      %v1372 = vadd.f32 %v1286, %v1363
      %v1373 = vld [vmem:[%s6] sm:$0x1]
      %v1375 = vperm.slane %v1373, 0
      %v1377 = vadd.f32 %v1365, %v1375
      %v1378 = vadd.f32 %v1366, %v1375
      %v1379 = vadd.f32 %v1367, %v1375
      %v1380 = vadd.f32 %v1368, %v1375
      %v1381 = vadd.f32 %v1369, %v1375
      %v1382 = vadd.f32 %v1370, %v1375
      %v1383 = vadd.f32 %v1371, %v1375
      %v1384 = vadd.f32 %v1372, %v1375
      %vm1385 = vcmask 523264
      %1386 = vst.msk [vmem:[%s528] sm:$0xff] %vm1385, %v1377
      %1387 = vst.msk [vmem:[%s528 + $0x8] sm:$0xff] %vm1385, %v1378
      %1388 = vst.msk [vmem:[%s528 + $0x10] sm:$0xff] %vm1385, %v1379
      %1389 = vst.msk [vmem:[%s528 + $0x18] sm:$0xff] %vm1385, %v1380
      %1390 = vst.msk [vmem:[%s528 + $0x20] sm:$0xff] %vm1385, %v1381
      %1391 = vst.msk [vmem:[%s528 + $0x28] sm:$0xff] %vm1385, %v1382
      %1392 = vst.msk [vmem:[%s528 + $0x30] sm:$0xff] %vm1385, %v1383
      %1393 = vst.msk [vmem:[%s528 + $0x38] sm:$0xff] %vm1385, %v1384
      %v1394 = vsel %vm1385, %v1377, 0.0
      %v1395 = vsel %vm1385, %v1378, 0.0
      %v1396 = vadd.f32 %v1394, %v1395
      %v1397 = vsel %vm1385, %v1379, 0.0
      %v1398 = vadd.f32 %v1396, %v1397
      %v1399 = vsel %vm1385, %v1380, 0.0
      %v1400 = vadd.f32 %v1398, %v1399
      %v1401 = vsel %vm1385, %v1381, 0.0
      %v1402 = vadd.f32 %v1400, %v1401
      %v1403 = vsel %vm1385, %v1382, 0.0
      %v1404 = vadd.f32 %v1402, %v1403
      %v1405 = vsel %vm1385, %v1383, 0.0
      %v1406 = vadd.f32 %v1404, %v1405
      %v1407 = vsel %vm1385, %v1384, 0.0
      %v1408 = vadd.f32 %v1406, %v1407
      %v1409 = vrot.slane %v1408, 4
      %v1410 = vadd.f32 %v1408, %v1409
      %v1411 = vrot.slane %v1410, 2
      %v1412 = vadd.f32 %v1410, %v1411
      %v1413 = vrot.slane %v1412, 1
      %v1414 = vadd.f32 %v1412, %v1413
      %v1415 = vld [vmem:[%s7] sm:$0xff]
      %v1416 = vld [vmem:[%s7 + $0x8] sm:$0xff]
      %v1417 = vld [vmem:[%s7 + $0x10] sm:$0xff]
      %v1418 = vld [vmem:[%s7 + $0x18] sm:$0xff]
      %v1419 = vld [vmem:[%s7 + $0x20] sm:$0xff]
      %v1420 = vld [vmem:[%s7 + $0x28] sm:$0xff]
      %v1421 = vld [vmem:[%s7 + $0x30] sm:$0xff]
      %v1422 = vld [vmem:[%s7 + $0x38] sm:$0xff]
      %v1424 = vsel %vm1385, %v1414, 0
      %1426 = vmatpush.msra.mxu0 0.0
      %1427 = vmatpush.msra.mxu0 0.0
      %1428 = vmatpush.msra.mxu0 0.0
      %1429 = vmatpush.msra.mxu0 0.0
      %1430 = vmatpush.msra.mxu0 0.0
      %1431 = vmatpush.msra.mxu0 0.0
      %1432 = vmatpush.msra.mxu0 0.0
      %1433 = vmatpush.msra.mxu0 0.0
      %1434 = vmatpush.msra.mxu0 %v1422
      %1435 = vmatpush.msra.mxu0 %v1421
      %1436 = vmatpush.msra.mxu0 %v1420
      %1437 = vmatpush.msra.mxu0 %v1419
      %1438 = vmatpush.msra.mxu0 %v1418
      %1439 = vmatpush.msra.mxu0 %v1417
      %1440 = vmatpush.msra.mxu0 %v1416
      %1441 = vmatpush.msra.mxu0 %v1415
      %1442 = vmatmul.f32.gmra.mxu0 %v1424
      %v1443 = vpop.f32.mrf.mxu0
      %v1444 = vadd.f32 0.0, %v1443
      %1445 = vdwg.mxu0
      %v1446 = vmul.f32 %v1377, %v1377
      %v1447 = vmul.f32 %v1378, %v1378
      %v1448 = vmul.f32 %v1379, %v1379
      %v1449 = vmul.f32 %v1380, %v1380
      %v1450 = vmul.f32 %v1381, %v1381
      %v1451 = vmul.f32 %v1382, %v1382
      %v1452 = vmul.f32 %v1383, %v1383
      %v1453 = vmul.f32 %v1384, %v1384
      %v1454 = vsel %vm1385, %v1446, 0.0
      %v1455 = vsel %vm1385, %v1447, 0.0
      %v1456 = vadd.f32 %v1454, %v1455
      %v1457 = vsel %vm1385, %v1448, 0.0
      %v1458 = vadd.f32 %v1456, %v1457
      %v1459 = vsel %vm1385, %v1449, 0.0
      %v1460 = vadd.f32 %v1458, %v1459
      %v1461 = vsel %vm1385, %v1450, 0.0
      %v1462 = vadd.f32 %v1460, %v1461
      %v1463 = vsel %vm1385, %v1451, 0.0
      %v1464 = vadd.f32 %v1462, %v1463
      %v1465 = vsel %vm1385, %v1452, 0.0
      %v1466 = vadd.f32 %v1464, %v1465
      %v1467 = vsel %vm1385, %v1453, 0.0
      %v1468 = vadd.f32 %v1466, %v1467
      %v1469 = vrot.slane %v1468, 4
      %v1470 = vadd.f32 %v1468, %v1469
      %v1471 = vrot.slane %v1470, 2
      %v1472 = vadd.f32 %v1470, %v1471
      %v1473 = vrot.slane %v1472, 1
      %v1474 = vadd.f32 %v1472, %v1473
      %v1476 = vsel %vm1385, %v1474, 0
      %1478 = vmatpush.msra.mxu0 0.0
      %1479 = vmatpush.msra.mxu0 0.0
      %1480 = vmatpush.msra.mxu0 0.0
      %1481 = vmatpush.msra.mxu0 0.0
      %1482 = vmatpush.msra.mxu0 0.0
      %1483 = vmatpush.msra.mxu0 0.0
      %1484 = vmatpush.msra.mxu0 0.0
      %1485 = vmatpush.msra.mxu0 0.0
      %1486 = vmatpush.msra.mxu0 %v1422
      %1487 = vmatpush.msra.mxu0 %v1421
      %1488 = vmatpush.msra.mxu0 %v1420
      %1489 = vmatpush.msra.mxu0 %v1419
      %1490 = vmatpush.msra.mxu0 %v1418
      %1491 = vmatpush.msra.mxu0 %v1417
      %1492 = vmatpush.msra.mxu0 %v1416
      %1493 = vmatpush.msra.mxu0 %v1415
      %1494 = vmatmul.f32.gmra.mxu0 %v1476
      %v1495 = vpop.f32.mrf.mxu0
      %v1496 = vadd.f32 0.0, %v1495
      %1497 = vdwg.mxu0
      %vm1498 = vcmask 57344
      %1499 = vst.msk [vmem:[%s536] sm:$0x1] %vm1498, %v1444
      %1500 = vst.msk [vmem:[%s536 + $0x1] sm:$0x1] %vm1498, %v1496
      %s1501 = smul.u32 8, %s26
      %p1502 = scmp.lt.s32.totalorder %s25, 1
      %s1503 = scalar_select %p1502, %s25, 1
      %p1504 = scmp.lt.s32.totalorder %s1501, 7
      %s1505 = scalar_select %p1504, %s1501, 7
      %s1506 = smul.addr %s1503, 8
      %s1507 = sadd.s32 %s1505, %s1506
      %s1508 = smul.addr %s1507, 8
      %s1509 = scalar_lea.vmem %s8, %s1508
      %p1510 = scmp.lt.s32.totalorder %s25, 1
      %s1511 = scalar_select %p1510, %s25, 1
      %p1512 = scmp.lt.s32.totalorder %s26, 0
      %s1513 = scalar_select %p1512, %s26, 0
      %s1514 = sadd.s32 %s1513, %s1511
      %s1515 = smul.addr %s1514, 2
      %s1516 = scalar_lea.vmem %s9, %s1515
      // Predicated region
      $region53: #{stacked_conv_layers_with_style.3} parent=51 // pred_check
        %p1517 = pneg %p268
      $region54: #{stacked_conv_layers_with_style.3} parent=51 // pred_check_branch
        %1519 = sbr.rel (%p1517) target = $region56
      $region55: #{stacked_conv_layers_with_style.3} parent=51 // pred_region
        %s1520 = smul.u32 8, %s26
      $region56: #{stacked_conv_layers_with_style.3} parent=51 // pred_fallthru
        _
      // Predicated region
      $region57: #{stacked_conv_layers_with_style.3} parent=51 // pred_check
        %p1521 = pneg %p296
      $region58: #{stacked_conv_layers_with_style.3} parent=51 // pred_check_branch
        %1523 = sbr.rel (%p1521) target = $region60
      $region59: #{stacked_conv_layers_with_style.3} parent=51 // pred_region
        _
      $region60: #{stacked_conv_layers_with_style.3} parent=51 // pred_fallthru
        _
    $region52: #{stacked_conv_layers_with_style.3} parent=5 // pred_fallthru
      _
    %p1524 = scmp.le.s32.totalorder 2, %s16
    // Predicated region
    $region61: #{stacked_conv_layers_with_style.3} parent=5 // pred_check
      %p1525 = pneg %p1524
    $region62: #{stacked_conv_layers_with_style.3} parent=5 // pred_check_branch
      %1527 = sbr.rel (%p1525) target = $region64
    $region63: #{stacked_conv_layers_with_style.3} parent=5 // pred_region
      %s1528 = ssub.s32 %s16, 2
      // Predicated region
      $region65: #{stacked_conv_layers_with_style.3} parent=63 // pred_check
        %p1529 = pneg %p274
      $region66: #{stacked_conv_layers_with_style.3} parent=63 // pred_check_branch
        %1531 = sbr.rel (%p1529) target = $region68
      $region67: #{stacked_conv_layers_with_style.3} parent=63 // pred_region
        %s1532 = smul.u32 8, %s28
        %p1533 = scmp.lt.s32.totalorder %s27, 1
        %s1534 = scalar_select %p1533, %s27, 1
        %p1535 = scmp.lt.s32.totalorder %s1532, 7
        %s1536 = scalar_select %p1535, %s1532, 7
        %s1537 = smul.addr %s1534, 8
        %s1538 = sadd.s32 %s1536, %s1537
        %s1539 = smul.addr %s1538, 8
        %s1540 = scalar_lea.vmem %s8, %s1539
      $region68: #{stacked_conv_layers_with_style.3} parent=63 // pred_fallthru
        _
      // Predicated region
      $region69: #{stacked_conv_layers_with_style.3} parent=63 // pred_check
        %p1541 = pneg %p302
      $region70: #{stacked_conv_layers_with_style.3} parent=63 // pred_check_branch
        %1543 = sbr.rel (%p1541) target = $region72
      $region71: #{stacked_conv_layers_with_style.3} parent=63 // pred_region
        %p1544 = scmp.lt.s32.totalorder %s27, 1
        %s1545 = scalar_select %p1544, %s27, 1
        %p1546 = scmp.lt.s32.totalorder %s28, 0
        %s1547 = scalar_select %p1546, %s28, 0
        %s1548 = sadd.s32 %s1547, %s1545
        %s1549 = smul.addr %s1548, 2
        %s1550 = scalar_lea.vmem %s9, %s1549
      $region72: #{stacked_conv_layers_with_style.3} parent=63 // pred_fallthru
        _
    $region64: #{stacked_conv_layers_with_style.3} parent=5 // pred_fallthru
      _
  $region6: #{stacked_conv_layers_with_style.3} parent=0 // loop_footer
    %s20 = sadd.s32 1, %s16
  $region7: #{stacked_conv_layers_with_style.3} parent=0 // loop_footer_branch
    %15 = sbr.rel target = $region3
  $region8: #{stacked_conv_layers_with_style.3} parent=0 // loop_exit
    _

// kernel: stacked_conv_layers_with_style.4
$region0: #{stacked_conv_layers_with_style.4}
  #allocation0 [shape = 'u32[]', space=smem, size = 0x4, offset = 0x4, fixed_abs, tag = 'smem constant byte address 0x4 - core index']
  #allocation1 [shape = 'u32[72,128]{1,0:T(1,128)}', space=vmem, size = 0x9000, scoped, tag = 'internal scratch']
  #allocation2 [shape = 'f32[10,10,64]{2,1,0:T(8,128)}', space=vmem, size = 0x14000, scoped, tag = 'scratch operand']
  %s0 = inlined_call_operand.vmem [shape: f32[2,8,8,64], index: 0, kind: input, shape index: {}, may-alias: {0,1,2}]
  %s1 = inlined_call_operand.vmem [shape: f32[2,8,8,64], index: 1, kind: input, shape index: {}, may-alias: {0,1,2}]
  %s2 = inlined_call_operand.vmem [shape: f32[2,8,8,64], index: 2, kind: input, shape index: {}, may-alias: {0,1,2}]
  %s3 = inlined_call_operand.vmem [shape: f32[2,1,64], index: 3, kind: input, shape index: {}]
  %s4 = inlined_call_operand.vmem [shape: f32[2,1,64], index: 4, kind: input, shape index: {}]
  %s5 = inlined_call_operand.vmem [shape: f32[9,64,64], index: 5, kind: input, shape index: {}]
  %s6 = inlined_call_operand.vmem [shape: f32[1,64], index: 6, kind: input, shape index: {}]
  %s7 = inlined_call_operand.vmem [shape: f32[64,8], index: 7, kind: input, shape index: {}]
  %s8 = inlined_call_operand.vmem [shape: f32[2,8,8,64], index: 8, kind: output, shape index: {0}]
  %s9 = inlined_call_operand.vmem [shape: f32[2,1,2,8], index: 9, kind: output, shape index: {1}]
  %10 = xla_tuple %s8, %s9
  %s11 = sld [smem:[#allocation0]]
  $region73: #{stacked_conv_layers_with_style.4} parent=0
    _
  %s13 = ssub.s32 1, %s11
  %s14 = scalar_select 0, %s13, %s11
  loop: start=0, step=1, limit=4
  $region2: #{stacked_conv_layers_with_style.4} parent=0 // loop_pre_header
    _
  $region3: #{stacked_conv_layers_with_style.4} parent=0 // loop_header
    %s16 = sphi 0, %s20
    %p17 = scmp.ge.s32.totalorder %s16, 4
    %s23 = sphi 0, %s35
    %s24 = sphi 0, %s31
    %s25 = sphi 0, %s23
    %s26 = sphi 0, %s24
    %s27 = sphi 0, %s25
    %s28 = sphi 0, %s26
    %s40 = sphi 0, %s42
    %s43 = sphi 0, %s40
    %s44 = sphi 0, %s43
    %s60 = sphi 0, %s44
    %s76 = sphi 0, %s78
    %s79 = sphi 0, %s76
    %s80 = sphi 0, %s79
    %s96 = sphi 0, %s80
    %s112 = sphi 0, %s114
    %s115 = sphi 0, %s112
    %s116 = sphi 0, %s115
    %s132 = sphi 0, %s116
    %s138 = sphi 0, %s140
    %s141 = sphi 0, %s138
    %s142 = sphi 0, %s141
    %s158 = sphi 0, %s142
    %s164 = sphi 0, %s166
    %s167 = sphi 0, %s164
    %s168 = sphi 0, %s167
    %s184 = sphi 0, %s168
    %s188 = sphi 0, %s188
    %s190 = sphi 0, %s188
    %s191 = sphi 0, %s190
    %s205 = sphi 0, %s191
    %s209 = sphi 0, %s209
    %s211 = sphi 0, %s209
    %s212 = sphi 0, %s211
    %s226 = sphi 0, %s212
    %s230 = sphi 0, %s230
    %s232 = sphi 0, %s230
    %s233 = sphi 0, %s232
    %s247 = sphi 0, %s233
    %s255 = sphi 0, %s257
    %s258 = sphi 0, %s255
    %s259 = sphi 0, %s258
    %s275 = sphi 0, %s259
    %s283 = sphi 0, %s285
    %s286 = sphi 0, %s283
    %s287 = sphi 0, %s286
    %s303 = sphi 0, %s287
  $region4: #{stacked_conv_layers_with_style.4} parent=0 // loop_header_branch
    %19 = sbr.rel (%p17) target = $region8
  $region5: #{stacked_conv_layers_with_style.4} parent=0 // loop_body
    %s21 = ssub.s32 %s16, 1
    %s22 = ssub.s32 %s16, 2
    %s29 = sadd.s32 1, %s24
    %p30 = scmp.ge.s32.totalorder %s29, 1
    %s31 = scalar_select %p30, 0, %s29
    %s32 = sadd.s32 1, %s23
    %s33 = scalar_select %p30, %s32, %s23
    %p34 = scmp.ge.s32.totalorder %s33, 2
    %s35 = scalar_select %p34, 0, %s33
    %s36 = ssub.s32 %s23, %s35
    %s37 = ssub.s32 %s24, %s31
    %s38 = sor.u32 %s36, %s37
    %p39 = scmp.eq.s32.totalorder %s38, 0
    %s41 = sadd.s32 %s40, 1
    %s42 = scalar_select %p39, %s40, %s41
    %p45 = pneg %p39
    %p46 = scmp.eq.s32.totalorder %s16, 1
    %p47 = por %p45, %p46
    %p48 = scmp.ne.s32.totalorder %s40, %s43
    %p49 = scmp.eq.s32.totalorder %s16, 0
    %p50 = por %p48, %p49
    %p51 = scmp.ne.s32.totalorder %s40, %s43
    %p52 = scmp.eq.s32.totalorder %s21, 1
    %p53 = por %p51, %p52
    %p54 = scmp.ne.s32.totalorder %s43, %s44
    %p55 = scmp.eq.s32.totalorder %s21, 0
    %p56 = por %p54, %p55
    %p57 = scmp.ne.s32.totalorder %s43, %s44
    %p58 = scmp.eq.s32.totalorder %s22, 1
    %p59 = por %p57, %p58
    %p61 = scmp.ne.s32.totalorder %s44, %s60
    %p62 = scmp.eq.s32.totalorder %s22, 0
    %p63 = por %p61, %p62
    %s64 = smul.u32 %s24, 8
    %s65 = ssub.s32 %s64, 1
    %p66 = scmp.gt.s32.totalorder %s65, 0
    %s67 = scalar_select %p66, %s65, 0
    %s68 = smul.u32 %s31, 8
    %s69 = ssub.s32 %s68, 1
    %p70 = scmp.gt.s32.totalorder %s69, 0
    %s71 = scalar_select %p70, %s69, 0
    %s72 = ssub.s32 %s23, %s35
    %s73 = ssub.s32 %s67, %s71
    %s74 = sor.u32 %s72, %s73
    %p75 = scmp.eq.s32.totalorder %s74, 0
    %s77 = sadd.s32 %s76, 1
    %s78 = scalar_select %p75, %s76, %s77
    %p81 = pneg %p75
    %p82 = scmp.eq.s32.totalorder %s16, 1
    %p83 = por %p81, %p82
    %p84 = scmp.ne.s32.totalorder %s76, %s79
    %p85 = scmp.eq.s32.totalorder %s16, 0
    %p86 = por %p84, %p85
    %p87 = scmp.ne.s32.totalorder %s76, %s79
    %p88 = scmp.eq.s32.totalorder %s21, 1
    %p89 = por %p87, %p88
    %p90 = scmp.ne.s32.totalorder %s79, %s80
    %p91 = scmp.eq.s32.totalorder %s21, 0
    %p92 = por %p90, %p91
    %p93 = scmp.ne.s32.totalorder %s79, %s80
    %p94 = scmp.eq.s32.totalorder %s22, 1
    %p95 = por %p93, %p94
    %p97 = scmp.ne.s32.totalorder %s80, %s96
    %p98 = scmp.eq.s32.totalorder %s22, 0
    %p99 = por %p97, %p98
    %s100 = smul.u32 %s24, 8
    %s101 = sadd.s32 %s100, 8
    %p102 = scmp.lt.s32.totalorder %s101, 7
    %s103 = scalar_select %p102, %s101, 7
    %s104 = smul.u32 %s31, 8
    %s105 = sadd.s32 %s104, 8
    %p106 = scmp.lt.s32.totalorder %s105, 7
    %s107 = scalar_select %p106, %s105, 7
    %s108 = ssub.s32 %s23, %s35
    %s109 = ssub.s32 %s103, %s107
    %s110 = sor.u32 %s108, %s109
    %p111 = scmp.eq.s32.totalorder %s110, 0
    %s113 = sadd.s32 %s112, 1
    %s114 = scalar_select %p111, %s112, %s113
    %p117 = pneg %p111
    %p118 = scmp.eq.s32.totalorder %s16, 1
    %p119 = por %p117, %p118
    %p120 = scmp.ne.s32.totalorder %s112, %s115
    %p121 = scmp.eq.s32.totalorder %s16, 0
    %p122 = por %p120, %p121
    %p123 = scmp.ne.s32.totalorder %s112, %s115
    %p124 = scmp.eq.s32.totalorder %s21, 1
    %p125 = por %p123, %p124
    %p126 = scmp.ne.s32.totalorder %s115, %s116
    %p127 = scmp.eq.s32.totalorder %s21, 0
    %p128 = por %p126, %p127
    %p129 = scmp.ne.s32.totalorder %s115, %s116
    %p130 = scmp.eq.s32.totalorder %s22, 1
    %p131 = por %p129, %p130
    %p133 = scmp.ne.s32.totalorder %s116, %s132
    %p134 = scmp.eq.s32.totalorder %s22, 0
    %p135 = por %p133, %p134
    %s136 = ssub.s32 %s23, %s35
    %p137 = scmp.eq.s32.totalorder %s136, 0
    %s139 = sadd.s32 %s138, 1
    %s140 = scalar_select %p137, %s138, %s139
    %p143 = pneg %p137
    %p144 = scmp.eq.s32.totalorder %s16, 1
    %p145 = por %p143, %p144
    %p146 = scmp.ne.s32.totalorder %s138, %s141
    %p147 = scmp.eq.s32.totalorder %s16, 0
    %p148 = por %p146, %p147
    %p149 = scmp.ne.s32.totalorder %s138, %s141
    %p150 = scmp.eq.s32.totalorder %s21, 1
    %p151 = por %p149, %p150
    %p152 = scmp.ne.s32.totalorder %s141, %s142
    %p153 = scmp.eq.s32.totalorder %s21, 0
    %p154 = por %p152, %p153
    %p155 = scmp.ne.s32.totalorder %s141, %s142
    %p156 = scmp.eq.s32.totalorder %s22, 1
    %p157 = por %p155, %p156
    %p159 = scmp.ne.s32.totalorder %s142, %s158
    %p160 = scmp.eq.s32.totalorder %s22, 0
    %p161 = por %p159, %p160
    %s162 = ssub.s32 %s23, %s35
    %p163 = scmp.eq.s32.totalorder %s162, 0
    %s165 = sadd.s32 %s164, 1
    %s166 = scalar_select %p163, %s164, %s165
    %p169 = pneg %p163
    %p170 = scmp.eq.s32.totalorder %s16, 1
    %p171 = por %p169, %p170
    %p172 = scmp.ne.s32.totalorder %s164, %s167
    %p173 = scmp.eq.s32.totalorder %s16, 0
    %p174 = por %p172, %p173
    %p175 = scmp.ne.s32.totalorder %s164, %s167
    %p176 = scmp.eq.s32.totalorder %s21, 1
    %p177 = por %p175, %p176
    %p178 = scmp.ne.s32.totalorder %s167, %s168
    %p179 = scmp.eq.s32.totalorder %s21, 0
    %p180 = por %p178, %p179
    %p181 = scmp.ne.s32.totalorder %s167, %s168
    %p182 = scmp.eq.s32.totalorder %s22, 1
    %p183 = por %p181, %p182
    %p185 = scmp.ne.s32.totalorder %s168, %s184
    %p186 = scmp.eq.s32.totalorder %s22, 0
    %p187 = por %p185, %p186
    %s189 = sadd.s32 %s188, 1
    %p192 = scmp.eq.s32.totalorder %s16, 1
    %p193 = scmp.ne.s32.totalorder %s188, %s190
    %p194 = scmp.eq.s32.totalorder %s16, 0
    %p195 = por %p193, %p194
    %p196 = scmp.ne.s32.totalorder %s188, %s190
    %p197 = scmp.eq.s32.totalorder %s21, 1
    %p198 = por %p196, %p197
    %p199 = scmp.ne.s32.totalorder %s190, %s191
    %p200 = scmp.eq.s32.totalorder %s21, 0
    %p201 = por %p199, %p200
    %p202 = scmp.ne.s32.totalorder %s190, %s191
    %p203 = scmp.eq.s32.totalorder %s22, 1
    %p204 = por %p202, %p203
    %p206 = scmp.ne.s32.totalorder %s191, %s205
    %p207 = scmp.eq.s32.totalorder %s22, 0
    %p208 = por %p206, %p207
    %s210 = sadd.s32 %s209, 1
    %p213 = scmp.eq.s32.totalorder %s16, 1
    %p214 = scmp.ne.s32.totalorder %s209, %s211
    %p215 = scmp.eq.s32.totalorder %s16, 0
    %p216 = por %p214, %p215
    %p217 = scmp.ne.s32.totalorder %s209, %s211
    %p218 = scmp.eq.s32.totalorder %s21, 1
    %p219 = por %p217, %p218
    %p220 = scmp.ne.s32.totalorder %s211, %s212
    %p221 = scmp.eq.s32.totalorder %s21, 0
    %p222 = por %p220, %p221
    %p223 = scmp.ne.s32.totalorder %s211, %s212
    %p224 = scmp.eq.s32.totalorder %s22, 1
    %p225 = por %p223, %p224
    %p227 = scmp.ne.s32.totalorder %s212, %s226
    %p228 = scmp.eq.s32.totalorder %s22, 0
    %p229 = por %p227, %p228
    %s231 = sadd.s32 %s230, 1
    %p234 = scmp.eq.s32.totalorder %s16, 1
    %p235 = scmp.ne.s32.totalorder %s230, %s232
    %p236 = scmp.eq.s32.totalorder %s16, 0
    %p237 = por %p235, %p236
    %p238 = scmp.ne.s32.totalorder %s230, %s232
    %p239 = scmp.eq.s32.totalorder %s21, 1
    %p240 = por %p238, %p239
    %p241 = scmp.ne.s32.totalorder %s232, %s233
    %p242 = scmp.eq.s32.totalorder %s21, 0
    %p243 = por %p241, %p242
    %p244 = scmp.ne.s32.totalorder %s232, %s233
    %p245 = scmp.eq.s32.totalorder %s22, 1
    %p246 = por %p244, %p245
    %p248 = scmp.ne.s32.totalorder %s233, %s247
    %p249 = scmp.eq.s32.totalorder %s22, 0
    %p250 = por %p248, %p249
    %s251 = ssub.s32 %s23, %s35
    %s252 = ssub.s32 %s24, %s31
    %s253 = sor.u32 %s251, %s252
    %p254 = scmp.eq.s32.totalorder %s253, 0
    %s256 = sadd.s32 %s255, 1
    %s257 = scalar_select %p254, %s255, %s256
    %p260 = pneg %p254
    %p261 = scmp.eq.s32.totalorder %s16, 1
    %p262 = por %p260, %p261
    %p263 = scmp.ne.s32.totalorder %s255, %s258
    %p264 = scmp.eq.s32.totalorder %s16, 0
    %p265 = por %p263, %p264
    %p266 = scmp.ne.s32.totalorder %s255, %s258
    %p267 = scmp.eq.s32.totalorder %s21, 1
    %p268 = por %p266, %p267
    %p269 = scmp.ne.s32.totalorder %s258, %s259
    %p270 = scmp.eq.s32.totalorder %s21, 0
    %p271 = por %p269, %p270
    %p272 = scmp.ne.s32.totalorder %s258, %s259
    %p273 = scmp.eq.s32.totalorder %s22, 1
    %p274 = por %p272, %p273
    %p276 = scmp.ne.s32.totalorder %s259, %s275
    %p277 = scmp.eq.s32.totalorder %s22, 0
    %p278 = por %p276, %p277
    %s279 = ssub.s32 %s23, %s35
    %s280 = ssub.s32 %s24, %s31
    %s281 = sor.u32 %s279, %s280
    %p282 = scmp.eq.s32.totalorder %s281, 0
    %s284 = sadd.s32 %s283, 1
    %s285 = scalar_select %p282, %s283, %s284
    %p288 = pneg %p282
    %p289 = scmp.eq.s32.totalorder %s16, 1
    %p290 = por %p288, %p289
    %p291 = scmp.ne.s32.totalorder %s283, %s286
    %p292 = scmp.eq.s32.totalorder %s16, 0
    %p293 = por %p291, %p292
    %p294 = scmp.ne.s32.totalorder %s283, %s286
    %p295 = scmp.eq.s32.totalorder %s21, 1
    %p296 = por %p294, %p295
    %p297 = scmp.ne.s32.totalorder %s286, %s287
    %p298 = scmp.eq.s32.totalorder %s21, 0
    %p299 = por %p297, %p298
    %p300 = scmp.ne.s32.totalorder %s286, %s287
    %p301 = scmp.eq.s32.totalorder %s22, 1
    %p302 = por %p300, %p301
    %p304 = scmp.ne.s32.totalorder %s287, %s303
    %p305 = scmp.eq.s32.totalorder %s22, 0
    %p306 = por %p304, %p305
    %p307 = scmp.le.s32.totalorder 1, %s16
    %p308 = scmp.lt.s32.totalorder %s16, 3
    %p309 = pnand %p307, %p308
    %p310 = pneg %p309
    // Predicated region
    $region9: #{stacked_conv_layers_with_style.4} parent=5 // pred_check
      _
    $region10: #{stacked_conv_layers_with_style.4} parent=5 // pred_check_branch
      %312 = sbr.rel (%p309) target = $region12
    $region11: #{stacked_conv_layers_with_style.4} parent=5 // pred_region
      %s313 = ssub.s32 %s16, 1
      // Predicated region
      $region13: #{stacked_conv_layers_with_style.4} parent=11 // pred_check
        %p314 = pneg %p201
      $region14: #{stacked_conv_layers_with_style.4} parent=11 // pred_check_branch
        %316 = sbr.rel (%p314) target = $region16
      $region15: #{stacked_conv_layers_with_style.4} parent=11 // pred_region
        _
      $region16: #{stacked_conv_layers_with_style.4} parent=11 // pred_fallthru
        _
      // Predicated region
      $region17: #{stacked_conv_layers_with_style.4} parent=11 // pred_check
        %p317 = pneg %p222
      $region18: #{stacked_conv_layers_with_style.4} parent=11 // pred_check_branch
        %319 = sbr.rel (%p317) target = $region20
      $region19: #{stacked_conv_layers_with_style.4} parent=11 // pred_region
        _
      $region20: #{stacked_conv_layers_with_style.4} parent=11 // pred_fallthru
        _
      // Predicated region
      $region21: #{stacked_conv_layers_with_style.4} parent=11 // pred_check
        %p320 = pneg %p243
      $region22: #{stacked_conv_layers_with_style.4} parent=11 // pred_check_branch
        %322 = sbr.rel (%p320) target = $region24
      $region23: #{stacked_conv_layers_with_style.4} parent=11 // pred_region
        _
      $region24: #{stacked_conv_layers_with_style.4} parent=11 // pred_fallthru
        _
    $region12: #{stacked_conv_layers_with_style.4} parent=5 // pred_fallthru
      _
    %p323 = scmp.lt.s32.totalorder %s16, 2
    // Predicated region
    $region25: #{stacked_conv_layers_with_style.4} parent=5 // pred_check
      %p324 = pneg %p323
    $region26: #{stacked_conv_layers_with_style.4} parent=5 // pred_check_branch
      %326 = sbr.rel (%p324) target = $region28
    $region27: #{stacked_conv_layers_with_style.4} parent=5 // pred_region
      // Predicated region
      $region29: #{stacked_conv_layers_with_style.4} parent=27 // pred_check
        %p327 = pneg %p50
      $region30: #{stacked_conv_layers_with_style.4} parent=27 // pred_check_branch
        %329 = sbr.rel (%p327) target = $region32
      $region31: #{stacked_conv_layers_with_style.4} parent=27 // pred_region
        %s330 = smul.u32 8, %s24
        %p331 = scmp.lt.s32.totalorder %s23, 1
        %s332 = scalar_select %p331, %s23, 1
        %p333 = scmp.lt.s32.totalorder %s330, 7
        %s334 = scalar_select %p333, %s330, 7
        %s335 = smul.addr %s332, 8
        %s336 = sadd.s32 %s334, %s335
        %s337 = smul.addr %s336, 8
        %s338 = scalar_lea.vmem %s0, %s337
        %s339 = smul.u32 8, %s24
      $region32: #{stacked_conv_layers_with_style.4} parent=27 // pred_fallthru
        _
      // Predicated region
      $region33: #{stacked_conv_layers_with_style.4} parent=27 // pred_check
        %p340 = pneg %p86
      $region34: #{stacked_conv_layers_with_style.4} parent=27 // pred_check_branch
        %342 = sbr.rel (%p340) target = $region36
      $region35: #{stacked_conv_layers_with_style.4} parent=27 // pred_region
        %s343 = smul.u32 %s24, 8
        %s344 = ssub.s32 %s343, 1
        %p345 = scmp.gt.s32.totalorder %s344, 0
        %s346 = scalar_select %p345, %s344, 0
        %p347 = scmp.lt.s32.totalorder %s23, 1
        %s348 = scalar_select %p347, %s23, 1
        %p349 = scmp.lt.s32.totalorder %s346, 7
        %s350 = scalar_select %p349, %s346, 7
        %s351 = smul.addr %s348, 8
        %s352 = sadd.s32 %s350, %s351
        %s353 = smul.addr %s352, 8
        %s354 = scalar_lea.vmem %s1, %s353
        %s355 = smul.u32 %s24, 8
        %s356 = ssub.s32 %s355, 1
        %p357 = scmp.gt.s32.totalorder %s356, 0
        %s358 = scalar_select %p357, %s356, 0
      $region36: #{stacked_conv_layers_with_style.4} parent=27 // pred_fallthru
        _
      // Predicated region
      $region37: #{stacked_conv_layers_with_style.4} parent=27 // pred_check
        %p359 = pneg %p122
      $region38: #{stacked_conv_layers_with_style.4} parent=27 // pred_check_branch
        %361 = sbr.rel (%p359) target = $region40
      $region39: #{stacked_conv_layers_with_style.4} parent=27 // pred_region
        %s362 = smul.u32 %s24, 8
        %s363 = sadd.s32 %s362, 8
        %p364 = scmp.lt.s32.totalorder %s363, 7
        %s365 = scalar_select %p364, %s363, 7
        %p366 = scmp.lt.s32.totalorder %s23, 1
        %s367 = scalar_select %p366, %s23, 1
        %p368 = scmp.lt.s32.totalorder %s365, 7
        %s369 = scalar_select %p368, %s365, 7
        %s370 = smul.addr %s367, 8
        %s371 = sadd.s32 %s369, %s370
        %s372 = smul.addr %s371, 8
        %s373 = scalar_lea.vmem %s2, %s372
        %s374 = smul.u32 %s24, 8
        %s375 = sadd.s32 %s374, 8
        %p376 = scmp.lt.s32.totalorder %s375, 7
        %s377 = scalar_select %p376, %s375, 7
      $region40: #{stacked_conv_layers_with_style.4} parent=27 // pred_fallthru
        _
      // Predicated region
      $region41: #{stacked_conv_layers_with_style.4} parent=27 // pred_check
        %p378 = pneg %p148
      $region42: #{stacked_conv_layers_with_style.4} parent=27 // pred_check_branch
        %380 = sbr.rel (%p378) target = $region44
      $region43: #{stacked_conv_layers_with_style.4} parent=27 // pred_region
        %p381 = scmp.lt.s32.totalorder %s23, 1
        %s382 = scalar_select %p381, %s23, 1
        %s383 = scalar_lea.vmem %s3, %s382
      $region44: #{stacked_conv_layers_with_style.4} parent=27 // pred_fallthru
        _
      // Predicated region
      $region45: #{stacked_conv_layers_with_style.4} parent=27 // pred_check
        %p384 = pneg %p174
      $region46: #{stacked_conv_layers_with_style.4} parent=27 // pred_check_branch
        %386 = sbr.rel (%p384) target = $region48
      $region47: #{stacked_conv_layers_with_style.4} parent=27 // pred_region
        %p387 = scmp.lt.s32.totalorder %s23, 1
        %s388 = scalar_select %p387, %s23, 1
        %s389 = scalar_lea.vmem %s4, %s388
      $region48: #{stacked_conv_layers_with_style.4} parent=27 // pred_fallthru
        _
    $region28: #{stacked_conv_layers_with_style.4} parent=5 // pred_fallthru
      _
    %p390 = scmp.le.s32.totalorder 1, %s16
    %p391 = scmp.lt.s32.totalorder %s16, 3
    %p392 = pnand %p390, %p391
    %p393 = pneg %p392
    // Predicated region
    $region49: #{stacked_conv_layers_with_style.4} parent=5 // pred_check
      _
    $region50: #{stacked_conv_layers_with_style.4} parent=5 // pred_check_branch
      %395 = sbr.rel (%p392) target = $region52
    $region51: #{stacked_conv_layers_with_style.4} parent=5 // pred_region
      %s396 = ssub.s32 %s16, 1
      %s397 = smul.u32 8, %s26
      %p398 = scmp.lt.s32.totalorder %s25, 1
      %s399 = scalar_select %p398, %s25, 1
      %p400 = scmp.lt.s32.totalorder %s397, 7
      %s401 = scalar_select %p400, %s397, 7
      %s402 = smul.addr %s399, 8
      %s403 = sadd.s32 %s401, %s402
      %s404 = smul.addr %s403, 8
      %s405 = scalar_lea.vmem %s0, %s404
      %p406 = pneg %p56
      %p407 = pneg %p53
      %s408 = smul.u32 %s26, 8
      %s409 = ssub.s32 %s408, 1
      %p410 = scmp.gt.s32.totalorder %s409, 0
      %s411 = scalar_select %p410, %s409, 0
      %p412 = scmp.lt.s32.totalorder %s25, 1
      %s413 = scalar_select %p412, %s25, 1
      %p414 = scmp.lt.s32.totalorder %s411, 7
      %s415 = scalar_select %p414, %s411, 7
      %s416 = smul.addr %s413, 8
      %s417 = sadd.s32 %s415, %s416
      %s418 = smul.addr %s417, 8
      %s419 = scalar_lea.vmem %s1, %s418
      %p420 = pneg %p92
      %p421 = pneg %p89
      %s422 = smul.u32 %s26, 8
      %s423 = sadd.s32 %s422, 8
      %p424 = scmp.lt.s32.totalorder %s423, 7
      %s425 = scalar_select %p424, %s423, 7
      %p426 = scmp.lt.s32.totalorder %s25, 1
      %s427 = scalar_select %p426, %s25, 1
      %p428 = scmp.lt.s32.totalorder %s425, 7
      %s429 = scalar_select %p428, %s425, 7
      %s430 = smul.addr %s427, 8
      %s431 = sadd.s32 %s429, %s430
      %s432 = smul.addr %s431, 8
      %s433 = scalar_lea.vmem %s2, %s432
      %p434 = pneg %p128
      %p435 = pneg %p125
      %p436 = scmp.lt.s32.totalorder %s25, 1
      %s437 = scalar_select %p436, %s25, 1
      %s438 = scalar_lea.vmem %s3, %s437
      %p439 = pneg %p154
      %p440 = pneg %p151
      %p441 = scmp.lt.s32.totalorder %s25, 1
      %s442 = scalar_select %p441, %s25, 1
      %s443 = scalar_lea.vmem %s4, %s442
      %p444 = pneg %p180
      %p445 = pneg %p177
      %p446 = pneg %p201
      %p447 = pneg %p198
      %p448 = pneg %p222
      %p449 = pneg %p219
      %p450 = pneg %p243
      %p451 = pneg %p240
      %p452 = pneg %p271
      %p453 = pneg %p268
      %s454 = smul.u32 8, %s26
      %p455 = scmp.lt.s32.totalorder %s25, 1
      %s456 = scalar_select %p455, %s25, 1
      %p457 = scmp.lt.s32.totalorder %s454, 7
      %s458 = scalar_select %p457, %s454, 7
      %s459 = smul.addr %s456, 8
      %s460 = sadd.s32 %s458, %s459
      %s461 = smul.addr %s460, 8
      %s462 = scalar_lea.vmem %s8, %s461
      %p463 = pneg %p299
      %p464 = pneg %p296
      %p465 = scmp.lt.s32.totalorder %s25, 1
      %s466 = scalar_select %p465, %s25, 1
      %p467 = scmp.lt.s32.totalorder %s26, 0
      %s468 = scalar_select %p467, %s26, 0
      %s469 = sadd.s32 %s468, %s466
      %s470 = smul.addr %s469, 2
      %s471 = scalar_lea.vmem %s9, %s470
      %s472 = smul.u32 8, %s26
      %p473 = scmp.lt.s32.totalorder %s25, 1
      %s474 = scalar_select %p473, %s25, 1
      %p475 = scmp.lt.s32.totalorder %s472, 7
      %s476 = scalar_select %p475, %s472, 7
      %s477 = smul.addr %s474, 8
      %s478 = sadd.s32 %s476, %s477
      %s479 = smul.addr %s478, 8
      %s480 = scalar_lea.vmem %s0, %s479
      %s481 = smul.u32 8, %s26
      %s482 = smul.u32 %s26, 8
      %s483 = ssub.s32 %s482, 1
      %p484 = scmp.gt.s32.totalorder %s483, 0
      %s485 = scalar_select %p484, %s483, 0
      %p486 = scmp.lt.s32.totalorder %s25, 1
      %s487 = scalar_select %p486, %s25, 1
      %p488 = scmp.lt.s32.totalorder %s485, 7
      %s489 = scalar_select %p488, %s485, 7
      %s490 = smul.addr %s487, 8
      %s491 = sadd.s32 %s489, %s490
      %s492 = smul.addr %s491, 8
      %s493 = scalar_lea.vmem %s1, %s492
      %s494 = smul.u32 %s26, 8
      %s495 = ssub.s32 %s494, 1
      %p496 = scmp.gt.s32.totalorder %s495, 0
      %s497 = scalar_select %p496, %s495, 0
      %s498 = smul.u32 %s26, 8
      %s499 = sadd.s32 %s498, 8
      %p500 = scmp.lt.s32.totalorder %s499, 7
      %s501 = scalar_select %p500, %s499, 7
      %p502 = scmp.lt.s32.totalorder %s25, 1
      %s503 = scalar_select %p502, %s25, 1
      %p504 = scmp.lt.s32.totalorder %s501, 7
      %s505 = scalar_select %p504, %s501, 7
      %s506 = smul.addr %s503, 8
      %s507 = sadd.s32 %s505, %s506
      %s508 = smul.addr %s507, 8
      %s509 = scalar_lea.vmem %s2, %s508
      %s510 = smul.u32 %s26, 8
      %s511 = sadd.s32 %s510, 8
      %p512 = scmp.lt.s32.totalorder %s511, 7
      %s513 = scalar_select %p512, %s511, 7
      %p514 = scmp.lt.s32.totalorder %s25, 1
      %s515 = scalar_select %p514, %s25, 1
      %s516 = scalar_lea.vmem %s3, %s515
      %p517 = scmp.lt.s32.totalorder %s25, 1
      %s518 = scalar_select %p517, %s25, 1
      %s519 = scalar_lea.vmem %s4, %s518
      %s520 = smul.u32 8, %s26
      %p521 = scmp.lt.s32.totalorder %s25, 1
      %s522 = scalar_select %p521, %s25, 1
      %p523 = scmp.lt.s32.totalorder %s520, 7
      %s524 = scalar_select %p523, %s520, 7
      %s525 = smul.addr %s522, 8
      %s526 = sadd.s32 %s524, %s525
      %s527 = smul.addr %s526, 8
      %s528 = scalar_lea.vmem %s8, %s527
      %s529 = smul.u32 8, %s26
      %p530 = scmp.lt.s32.totalorder %s25, 1
      %s531 = scalar_select %p530, %s25, 1
      %p532 = scmp.lt.s32.totalorder %s26, 0
      %s533 = scalar_select %p532, %s26, 0
      %s534 = sadd.s32 %s533, %s531
      %s535 = smul.addr %s534, 2
      %s536 = scalar_lea.vmem %s9, %s535
      %v537 = vld [vmem:[%s516] sm:$0x1]
      %v538 = vld [vmem:[%s519] sm:$0x1]
      %vm539 = vcmask 516096
      %540 = vst.msk [vmem:[#allocation2] sm:$0x1] %vm539, 0.0
      %541 = vst.msk [vmem:[#allocation2 + $0x10] sm:$0x1] %vm539, 0.0
      %542 = vst.msk [vmem:[#allocation2 + $0x20] sm:$0x1] %vm539, 0.0
      %543 = vst.msk [vmem:[#allocation2 + $0x30] sm:$0x1] %vm539, 0.0
      %544 = vst.msk [vmem:[#allocation2 + $0x40] sm:$0x1] %vm539, 0.0
      %545 = vst.msk [vmem:[#allocation2 + $0x50] sm:$0x1] %vm539, 0.0
      %546 = vst.msk [vmem:[#allocation2 + $0x60] sm:$0x1] %vm539, 0.0
      %547 = vst.msk [vmem:[#allocation2 + $0x70] sm:$0x1] %vm539, 0.0
      %548 = vst.msk [vmem:[#allocation2 + $0x80] sm:$0x1] %vm539, 0.0
      %549 = vst.msk [vmem:[#allocation2 + $0x90] sm:$0x1] %vm539, 0.0
      %550 = vst.msk [vmem:[#allocation2 + $0x9] sm:$0x1] %vm539, 0.0
      %551 = vst.msk [vmem:[#allocation2 + $0x19] sm:$0x1] %vm539, 0.0
      %552 = vst.msk [vmem:[#allocation2 + $0x29] sm:$0x1] %vm539, 0.0
      %553 = vst.msk [vmem:[#allocation2 + $0x39] sm:$0x1] %vm539, 0.0
      %554 = vst.msk [vmem:[#allocation2 + $0x49] sm:$0x1] %vm539, 0.0
      %555 = vst.msk [vmem:[#allocation2 + $0x59] sm:$0x1] %vm539, 0.0
      %556 = vst.msk [vmem:[#allocation2 + $0x69] sm:$0x1] %vm539, 0.0
      %557 = vst.msk [vmem:[#allocation2 + $0x79] sm:$0x1] %vm539, 0.0
      %558 = vst.msk [vmem:[#allocation2 + $0x89] sm:$0x1] %vm539, 0.0
      %559 = vst.msk [vmem:[#allocation2 + $0x99] sm:$0x1] %vm539, 0.0
      %v560 = vld [vmem:[%s480] sm:$0xff]
      %v561 = vld [vmem:[%s480 + $0x8] sm:$0xff]
      %v562 = vld [vmem:[%s480 + $0x10] sm:$0xff]
      %v563 = vld [vmem:[%s480 + $0x18] sm:$0xff]
      %v564 = vld [vmem:[%s480 + $0x20] sm:$0xff]
      %v565 = vld [vmem:[%s480 + $0x28] sm:$0xff]
      %v566 = vld [vmem:[%s480 + $0x30] sm:$0xff]
      %v567 = vld [vmem:[%s480 + $0x38] sm:$0xff]
      %v569 = vperm.slane %v537, 0
      %v571 = vmul.f32 %v560, %v569
      %v572 = vmul.f32 %v561, %v569
      %v573 = vmul.f32 %v562, %v569
      %v574 = vmul.f32 %v563, %v569
      %v575 = vmul.f32 %v564, %v569
      %v576 = vmul.f32 %v565, %v569
      %v577 = vmul.f32 %v566, %v569
      %v578 = vmul.f32 %v567, %v569
      %v580 = vperm.slane %v538, 0
      %v582 = vadd.f32 %v571, %v580
      %v583 = vadd.f32 %v572, %v580
      %v584 = vadd.f32 %v573, %v580
      %v585 = vadd.f32 %v574, %v580
      %v586 = vadd.f32 %v575, %v580
      %v587 = vadd.f32 %v576, %v580
      %v588 = vadd.f32 %v577, %v580
      %v589 = vadd.f32 %v578, %v580
      %vm590 = vcmp.ge.f32.partialorder %v582, 0.0
      %vm591 = vcmp.ge.f32.partialorder %v583, 0.0
      %vm592 = vcmp.ge.f32.partialorder %v584, 0.0
      %vm593 = vcmp.ge.f32.partialorder %v585, 0.0
      %vm594 = vcmp.ge.f32.partialorder %v586, 0.0
      %vm595 = vcmp.ge.f32.partialorder %v587, 0.0
      %vm596 = vcmp.ge.f32.partialorder %v588, 0.0
      %vm597 = vcmp.ge.f32.partialorder %v589, 0.0
      %v598 = vmul.f32 %v582, 0.01
      %v599 = vmul.f32 %v583, 0.01
      %v600 = vmul.f32 %v584, 0.01
      %v601 = vmul.f32 %v585, 0.01
      %v602 = vmul.f32 %v586, 0.01
      %v603 = vmul.f32 %v587, 0.01
      %v604 = vmul.f32 %v588, 0.01
      %v605 = vmul.f32 %v589, 0.01
      %v606 = vsel %vm590, %v582, %v598
      %v607 = vsel %vm591, %v583, %v599
      %v608 = vsel %vm592, %v584, %v600
      %v609 = vsel %vm593, %v585, %v601
      %v610 = vsel %vm594, %v586, %v602
      %v611 = vsel %vm595, %v587, %v603
      %v612 = vsel %vm596, %v588, %v604
      %v613 = vsel %vm597, %v589, %v605
      %s614 = scalar_lea.vmem [#allocation2], 16
      %vm615 = vcmask 523264
      %616 = vst.msk [vmem:[%s614 + $0x1] sm:$0xff] %vm615, %v606
      %617 = vst.msk [vmem:[%s614 + $0x11] sm:$0xff] %vm615, %v607
      %618 = vst.msk [vmem:[%s614 + $0x21] sm:$0xff] %vm615, %v608
      %619 = vst.msk [vmem:[%s614 + $0x31] sm:$0xff] %vm615, %v609
      %620 = vst.msk [vmem:[%s614 + $0x41] sm:$0xff] %vm615, %v610
      %621 = vst.msk [vmem:[%s614 + $0x51] sm:$0xff] %vm615, %v611
      %622 = vst.msk [vmem:[%s614 + $0x61] sm:$0xff] %vm615, %v612
      %623 = vst.msk [vmem:[%s614 + $0x71] sm:$0xff] %vm615, %v613
      %p624 = scmp.eq.s32.totalorder %s26, 0
      %v625 = vld [vmem:[%s493] sm:$0xff]
      %v626 = vmul.f32 %v625, %v569
      %v627 = vadd.f32 %v626, %v580
      %vm628 = vcmp.ge.f32.partialorder %v627, 0.0
      %v629 = vmul.f32 %v627, 0.01
      %v630 = vsel %vm628, %v627, %v629
      %s631 = scalar_select %p624, 1, 0
      %v632 = vstv %s631
      %vm633 = vcmp.eq.s32.totalorder %v632, 1
      %v634 = vsel %vm633, 0.0, %v630
      %v635 = vld [vmem:[%s509] sm:$0xff]
      %v636 = vmul.f32 %v635, %v569
      %v637 = vadd.f32 %v636, %v580
      %vm638 = vcmp.ge.f32.partialorder %v637, 0.0
      %v639 = vmul.f32 %v637, 0.01
      %v640 = vsel %vm638, %v637, %v639
      %v641 = vsel %vm633, 0.0, %v640
      %642 = vst.msk [vmem:[#allocation2 + $0x1] sm:$0xff] %vm615, %v634
      %s643 = scalar_lea.vmem [#allocation2], 144
      %644 = vst.msk [vmem:[%s643 + $0x1] sm:$0xff] %vm615, %v641
      %v645 = vld [vmem:[#allocation2] sm:$0xff]
      %v646 = vld [vmem:[#allocation2 + $0x10] sm:$0xff]
      %v647 = vld [vmem:[#allocation2 + $0x20] sm:$0xff]
      %v648 = vld [vmem:[#allocation2 + $0x30] sm:$0xff]
      %v649 = vld [vmem:[#allocation2 + $0x40] sm:$0xff]
      %v650 = vld [vmem:[#allocation2 + $0x50] sm:$0xff]
      %v651 = vld [vmem:[#allocation2 + $0x60] sm:$0xff]
      %v652 = vld [vmem:[#allocation2 + $0x70] sm:$0xff]
      %v653 = vld [vmem:[%s5] sm:$0xff]
      %v654 = vld [vmem:[%s5 + $0x8] sm:$0xff]
      %v655 = vld [vmem:[%s5 + $0x10] sm:$0xff]
      %v656 = vld [vmem:[%s5 + $0x18] sm:$0xff]
      %v657 = vld [vmem:[%s5 + $0x20] sm:$0xff]
      %v658 = vld [vmem:[%s5 + $0x28] sm:$0xff]
      %v659 = vld [vmem:[%s5 + $0x30] sm:$0xff]
      %v660 = vld [vmem:[%s5 + $0x38] sm:$0xff]
      %v661 = vld [vmem:[#allocation2 + $0x1] sm:$0xff]
      %v662 = vld [vmem:[#allocation2 + $0x11] sm:$0xff]
      %v663 = vld [vmem:[#allocation2 + $0x21] sm:$0xff]
      %v664 = vld [vmem:[#allocation2 + $0x31] sm:$0xff]
      %v665 = vld [vmem:[#allocation2 + $0x41] sm:$0xff]
      %v666 = vld [vmem:[#allocation2 + $0x51] sm:$0xff]
      %v667 = vld [vmem:[#allocation2 + $0x61] sm:$0xff]
      %v668 = vld [vmem:[#allocation2 + $0x71] sm:$0xff]
      %s669 = scalar_lea.vmem %s5, 64
      %v670 = vld [vmem:[%s669] sm:$0xff]
      %v671 = vld [vmem:[%s669 + $0x8] sm:$0xff]
      %v672 = vld [vmem:[%s669 + $0x10] sm:$0xff]
      %v673 = vld [vmem:[%s669 + $0x18] sm:$0xff]
      %v674 = vld [vmem:[%s669 + $0x20] sm:$0xff]
      %v675 = vld [vmem:[%s669 + $0x28] sm:$0xff]
      %v676 = vld [vmem:[%s669 + $0x30] sm:$0xff]
      %v677 = vld [vmem:[%s669 + $0x38] sm:$0xff]
      %v679 = vsel %vm615, %v661, 0
      %v682 = vsel %vm615, %v662, 0
      %v685 = vsel %vm615, %v663, 0
      %v688 = vsel %vm615, %v664, 0
      %v691 = vsel %vm615, %v665, 0
      %v694 = vsel %vm615, %v666, 0
      %v697 = vsel %vm615, %v667, 0
      %v700 = vsel %vm615, %v668, 0
      %702 = vmatpush.msra.mxu0 0.0
      %703 = vmatpush.msra.mxu0 0.0
      %704 = vmatpush.msra.mxu0 0.0
      %705 = vmatpush.msra.mxu0 0.0
      %706 = vmatpush.msra.mxu0 0.0
      %707 = vmatpush.msra.mxu0 0.0
      %708 = vmatpush.msra.mxu0 0.0
      %709 = vmatpush.msra.mxu0 0.0
      %710 = vmatpush.msra.mxu0 %v677
      %711 = vmatpush.msra.mxu0 %v676
      %712 = vmatpush.msra.mxu0 %v675
      %713 = vmatpush.msra.mxu0 %v674
      %714 = vmatpush.msra.mxu0 %v673
      %715 = vmatpush.msra.mxu0 %v672
      %716 = vmatpush.msra.mxu0 %v671
      %717 = vmatpush.msra.mxu0 %v670
      %718 = vmatmul.f32.gmra.mxu0 %v679
      %v719 = vpop.f32.mrf.mxu0
      %v720 = vadd.f32 0.0, %v719
      %721 = vmatmul.f32.gmra.mxu0 %v682
      %v722 = vpop.f32.mrf.mxu0
      %v723 = vadd.f32 0.0, %v722
      %724 = vmatmul.f32.gmra.mxu0 %v685
      %v725 = vpop.f32.mrf.mxu0
      %v726 = vadd.f32 0.0, %v725
      %727 = vmatmul.f32.gmra.mxu0 %v688
      %v728 = vpop.f32.mrf.mxu0
      %v729 = vadd.f32 0.0, %v728
      %730 = vmatmul.f32.gmra.mxu0 %v691
      %v731 = vpop.f32.mrf.mxu0
      %v732 = vadd.f32 0.0, %v731
      %733 = vmatmul.f32.gmra.mxu0 %v694
      %v734 = vpop.f32.mrf.mxu0
      %v735 = vadd.f32 0.0, %v734
      %736 = vmatmul.f32.gmra.mxu0 %v697
      %v737 = vpop.f32.mrf.mxu0
      %v738 = vadd.f32 0.0, %v737
      %739 = vmatmul.f32.gmra.mxu0 %v700
      %v740 = vpop.f32.mrf.mxu0
      %v741 = vadd.f32 0.0, %v740
      %742 = vdwg.mxu0
      %v744 = vsel %vm615, %v645, 0
      %v747 = vsel %vm615, %v646, 0
      %v750 = vsel %vm615, %v647, 0
      %v753 = vsel %vm615, %v648, 0
      %v756 = vsel %vm615, %v649, 0
      %v759 = vsel %vm615, %v650, 0
      %v762 = vsel %vm615, %v651, 0
      %v765 = vsel %vm615, %v652, 0
      %767 = vmatpush.msra.mxu0 0.0
      %768 = vmatpush.msra.mxu0 0.0
      %769 = vmatpush.msra.mxu0 0.0
      %770 = vmatpush.msra.mxu0 0.0
      %771 = vmatpush.msra.mxu0 0.0
      %772 = vmatpush.msra.mxu0 0.0
      %773 = vmatpush.msra.mxu0 0.0
      %774 = vmatpush.msra.mxu0 0.0
      %775 = vmatpush.msra.mxu0 %v660
      %776 = vmatpush.msra.mxu0 %v659
      %777 = vmatpush.msra.mxu0 %v658
      %778 = vmatpush.msra.mxu0 %v657
      %779 = vmatpush.msra.mxu0 %v656
      %780 = vmatpush.msra.mxu0 %v655
      %781 = vmatpush.msra.mxu0 %v654
      %782 = vmatpush.msra.mxu0 %v653
      %783 = vmatmul.f32.gmra.mxu0 %v744
      %v784 = vpop.f32.mrf.mxu0
      %v785 = vadd.f32 %v720, %v784
      %786 = vmatmul.f32.gmra.mxu0 %v747
      %v787 = vpop.f32.mrf.mxu0
      %v788 = vadd.f32 %v723, %v787
      %789 = vmatmul.f32.gmra.mxu0 %v750
      %v790 = vpop.f32.mrf.mxu0
      %v791 = vadd.f32 %v726, %v790
      %792 = vmatmul.f32.gmra.mxu0 %v753
      %v793 = vpop.f32.mrf.mxu0
      %v794 = vadd.f32 %v729, %v793
      %795 = vmatmul.f32.gmra.mxu0 %v756
      %v796 = vpop.f32.mrf.mxu0
      %v797 = vadd.f32 %v732, %v796
      %798 = vmatmul.f32.gmra.mxu0 %v759
      %v799 = vpop.f32.mrf.mxu0
      %v800 = vadd.f32 %v735, %v799
      %801 = vmatmul.f32.gmra.mxu0 %v762
      %v802 = vpop.f32.mrf.mxu0
      %v803 = vadd.f32 %v738, %v802
      %804 = vmatmul.f32.gmra.mxu0 %v765
      %v805 = vpop.f32.mrf.mxu0
      %v806 = vadd.f32 %v741, %v805
      %807 = vdwg.mxu0
      %v808 = vld [vmem:[#allocation2 + $0x2] sm:$0xff]
      %v809 = vld [vmem:[#allocation2 + $0x12] sm:$0xff]
      %v810 = vld [vmem:[#allocation2 + $0x22] sm:$0xff]
      %v811 = vld [vmem:[#allocation2 + $0x32] sm:$0xff]
      %v812 = vld [vmem:[#allocation2 + $0x42] sm:$0xff]
      %v813 = vld [vmem:[#allocation2 + $0x52] sm:$0xff]
      %v814 = vld [vmem:[#allocation2 + $0x62] sm:$0xff]
      %v815 = vld [vmem:[#allocation2 + $0x72] sm:$0xff]
      %s816 = scalar_lea.vmem %s5, 128
      %v817 = vld [vmem:[%s816] sm:$0xff]
      %v818 = vld [vmem:[%s816 + $0x8] sm:$0xff]
      %v819 = vld [vmem:[%s816 + $0x10] sm:$0xff]
      %v820 = vld [vmem:[%s816 + $0x18] sm:$0xff]
      %v821 = vld [vmem:[%s816 + $0x20] sm:$0xff]
      %v822 = vld [vmem:[%s816 + $0x28] sm:$0xff]
      %v823 = vld [vmem:[%s816 + $0x30] sm:$0xff]
      %v824 = vld [vmem:[%s816 + $0x38] sm:$0xff]
      %v826 = vsel %vm615, %v808, 0
      %v829 = vsel %vm615, %v809, 0
      %v832 = vsel %vm615, %v810, 0
      %v835 = vsel %vm615, %v811, 0
      %v838 = vsel %vm615, %v812, 0
      %v841 = vsel %vm615, %v813, 0
      %v844 = vsel %vm615, %v814, 0
      %v847 = vsel %vm615, %v815, 0
      %849 = vmatpush.msra.mxu0 0.0
      %850 = vmatpush.msra.mxu0 0.0
      %851 = vmatpush.msra.mxu0 0.0
      %852 = vmatpush.msra.mxu0 0.0
      %853 = vmatpush.msra.mxu0 0.0
      %854 = vmatpush.msra.mxu0 0.0
      %855 = vmatpush.msra.mxu0 0.0
      %856 = vmatpush.msra.mxu0 0.0
      %857 = vmatpush.msra.mxu0 %v824
      %858 = vmatpush.msra.mxu0 %v823
      %859 = vmatpush.msra.mxu0 %v822
      %860 = vmatpush.msra.mxu0 %v821
      %861 = vmatpush.msra.mxu0 %v820
      %862 = vmatpush.msra.mxu0 %v819
      %863 = vmatpush.msra.mxu0 %v818
      %864 = vmatpush.msra.mxu0 %v817
      %865 = vmatmul.f32.gmra.mxu0 %v826
      %v866 = vpop.f32.mrf.mxu0
      %v867 = vadd.f32 0.0, %v866
      %868 = vmatmul.f32.gmra.mxu0 %v829
      %v869 = vpop.f32.mrf.mxu0
      %v870 = vadd.f32 0.0, %v869
      %871 = vmatmul.f32.gmra.mxu0 %v832
      %v872 = vpop.f32.mrf.mxu0
      %v873 = vadd.f32 0.0, %v872
      %874 = vmatmul.f32.gmra.mxu0 %v835
      %v875 = vpop.f32.mrf.mxu0
      %v876 = vadd.f32 0.0, %v875
      %877 = vmatmul.f32.gmra.mxu0 %v838
      %v878 = vpop.f32.mrf.mxu0
      %v879 = vadd.f32 0.0, %v878
      %880 = vmatmul.f32.gmra.mxu0 %v841
      %v881 = vpop.f32.mrf.mxu0
      %v882 = vadd.f32 0.0, %v881
      %883 = vmatmul.f32.gmra.mxu0 %v844
      %v884 = vpop.f32.mrf.mxu0
      %v885 = vadd.f32 0.0, %v884
      %886 = vmatmul.f32.gmra.mxu0 %v847
      %v887 = vpop.f32.mrf.mxu0
      %v888 = vadd.f32 0.0, %v887
      %889 = vdwg.mxu0
      %v890 = vadd.f32 %v785, %v867
      %v891 = vadd.f32 %v788, %v870
      %v892 = vadd.f32 %v791, %v873
      %v893 = vadd.f32 %v794, %v876
      %v894 = vadd.f32 %v797, %v879
      %v895 = vadd.f32 %v800, %v882
      %v896 = vadd.f32 %v803, %v885
      %v897 = vadd.f32 %v806, %v888
      %v898 = vld [vmem:[%s614] sm:$0xff]
      %v899 = vld [vmem:[%s614 + $0x10] sm:$0xff]
      %v900 = vld [vmem:[%s614 + $0x20] sm:$0xff]
      %v901 = vld [vmem:[%s614 + $0x30] sm:$0xff]
      %v902 = vld [vmem:[%s614 + $0x40] sm:$0xff]
      %v903 = vld [vmem:[%s614 + $0x50] sm:$0xff]
      %v904 = vld [vmem:[%s614 + $0x60] sm:$0xff]
      %v905 = vld [vmem:[%s614 + $0x70] sm:$0xff]
      %s906 = scalar_lea.vmem %s5, 192
      %v907 = vld [vmem:[%s906] sm:$0xff]
      %v908 = vld [vmem:[%s906 + $0x8] sm:$0xff]
      %v909 = vld [vmem:[%s906 + $0x10] sm:$0xff]
      %v910 = vld [vmem:[%s906 + $0x18] sm:$0xff]
      %v911 = vld [vmem:[%s906 + $0x20] sm:$0xff]
      %v912 = vld [vmem:[%s906 + $0x28] sm:$0xff]
      %v913 = vld [vmem:[%s906 + $0x30] sm:$0xff]
      %v914 = vld [vmem:[%s906 + $0x38] sm:$0xff]
      %v916 = vsel %vm615, %v898, 0
      %v919 = vsel %vm615, %v899, 0
      %v922 = vsel %vm615, %v900, 0
      %v925 = vsel %vm615, %v901, 0
      %v928 = vsel %vm615, %v902, 0
      %v931 = vsel %vm615, %v903, 0
      %v934 = vsel %vm615, %v904, 0
      %v937 = vsel %vm615, %v905, 0
      %939 = vmatpush.msra.mxu0 0.0
      %940 = vmatpush.msra.mxu0 0.0
      %941 = vmatpush.msra.mxu0 0.0
      %942 = vmatpush.msra.mxu0 0.0
      %943 = vmatpush.msra.mxu0 0.0
      %944 = vmatpush.msra.mxu0 0.0
      %945 = vmatpush.msra.mxu0 0.0
      %946 = vmatpush.msra.mxu0 0.0
      %947 = vmatpush.msra.mxu0 %v914
      %948 = vmatpush.msra.mxu0 %v913
      %949 = vmatpush.msra.mxu0 %v912
      %950 = vmatpush.msra.mxu0 %v911
      %951 = vmatpush.msra.mxu0 %v910
      %952 = vmatpush.msra.mxu0 %v909
      %953 = vmatpush.msra.mxu0 %v908
      %954 = vmatpush.msra.mxu0 %v907
      %955 = vmatmul.f32.gmra.mxu0 %v916
      %v956 = vpop.f32.mrf.mxu0
      %v957 = vadd.f32 0.0, %v956
      %958 = vmatmul.f32.gmra.mxu0 %v919
      %v959 = vpop.f32.mrf.mxu0
      %v960 = vadd.f32 0.0, %v959
      %961 = vmatmul.f32.gmra.mxu0 %v922
      %v962 = vpop.f32.mrf.mxu0
      %v963 = vadd.f32 0.0, %v962
      %964 = vmatmul.f32.gmra.mxu0 %v925
      %v965 = vpop.f32.mrf.mxu0
      %v966 = vadd.f32 0.0, %v965
      %967 = vmatmul.f32.gmra.mxu0 %v928
      %v968 = vpop.f32.mrf.mxu0
      %v969 = vadd.f32 0.0, %v968
      %970 = vmatmul.f32.gmra.mxu0 %v931
      %v971 = vpop.f32.mrf.mxu0
      %v972 = vadd.f32 0.0, %v971
      %973 = vmatmul.f32.gmra.mxu0 %v934
      %v974 = vpop.f32.mrf.mxu0
      %v975 = vadd.f32 0.0, %v974
      %976 = vmatmul.f32.gmra.mxu0 %v937
      %v977 = vpop.f32.mrf.mxu0
      %v978 = vadd.f32 0.0, %v977
      %979 = vdwg.mxu0
      %v980 = vadd.f32 %v890, %v957
      %v981 = vadd.f32 %v891, %v960
      %v982 = vadd.f32 %v892, %v963
      %v983 = vadd.f32 %v893, %v966
      %v984 = vadd.f32 %v894, %v969
      %v985 = vadd.f32 %v895, %v972
      %v986 = vadd.f32 %v896, %v975
      %v987 = vadd.f32 %v897, %v978
      %v988 = vld [vmem:[%s614 + $0x1] sm:$0xff]
      %v989 = vld [vmem:[%s614 + $0x11] sm:$0xff]
      %v990 = vld [vmem:[%s614 + $0x21] sm:$0xff]
      %v991 = vld [vmem:[%s614 + $0x31] sm:$0xff]
      %v992 = vld [vmem:[%s614 + $0x41] sm:$0xff]
      %v993 = vld [vmem:[%s614 + $0x51] sm:$0xff]
      %v994 = vld [vmem:[%s614 + $0x61] sm:$0xff]
      %v995 = vld [vmem:[%s614 + $0x71] sm:$0xff]
      %s996 = scalar_lea.vmem %s5, 256
      %v997 = vld [vmem:[%s996] sm:$0xff]
      %v998 = vld [vmem:[%s996 + $0x8] sm:$0xff]
      %v999 = vld [vmem:[%s996 + $0x10] sm:$0xff]
      %v1000 = vld [vmem:[%s996 + $0x18] sm:$0xff]
      %v1001 = vld [vmem:[%s996 + $0x20] sm:$0xff]
      %v1002 = vld [vmem:[%s996 + $0x28] sm:$0xff]
      %v1003 = vld [vmem:[%s996 + $0x30] sm:$0xff]
      %v1004 = vld [vmem:[%s996 + $0x38] sm:$0xff]
      %v1006 = vsel %vm615, %v988, 0
      %v1009 = vsel %vm615, %v989, 0
      %v1012 = vsel %vm615, %v990, 0
      %v1015 = vsel %vm615, %v991, 0
      %v1018 = vsel %vm615, %v992, 0
      %v1021 = vsel %vm615, %v993, 0
      %v1024 = vsel %vm615, %v994, 0
      %v1027 = vsel %vm615, %v995, 0
      %1029 = vmatpush.msra.mxu0 0.0
      %1030 = vmatpush.msra.mxu0 0.0
      %1031 = vmatpush.msra.mxu0 0.0
      %1032 = vmatpush.msra.mxu0 0.0
      %1033 = vmatpush.msra.mxu0 0.0
      %1034 = vmatpush.msra.mxu0 0.0
      %1035 = vmatpush.msra.mxu0 0.0
      %1036 = vmatpush.msra.mxu0 0.0
      %1037 = vmatpush.msra.mxu0 %v1004
      %1038 = vmatpush.msra.mxu0 %v1003
      %1039 = vmatpush.msra.mxu0 %v1002
      %1040 = vmatpush.msra.mxu0 %v1001
      %1041 = vmatpush.msra.mxu0 %v1000
      %1042 = vmatpush.msra.mxu0 %v999
      %1043 = vmatpush.msra.mxu0 %v998
      %1044 = vmatpush.msra.mxu0 %v997
      %1045 = vmatmul.f32.gmra.mxu0 %v1006
      %v1046 = vpop.f32.mrf.mxu0
      %v1047 = vadd.f32 0.0, %v1046
      %1048 = vmatmul.f32.gmra.mxu0 %v1009
      %v1049 = vpop.f32.mrf.mxu0
      %v1050 = vadd.f32 0.0, %v1049
      %1051 = vmatmul.f32.gmra.mxu0 %v1012
      %v1052 = vpop.f32.mrf.mxu0
      %v1053 = vadd.f32 0.0, %v1052
      %1054 = vmatmul.f32.gmra.mxu0 %v1015
      %v1055 = vpop.f32.mrf.mxu0
      %v1056 = vadd.f32 0.0, %v1055
      %1057 = vmatmul.f32.gmra.mxu0 %v1018
      %v1058 = vpop.f32.mrf.mxu0
      %v1059 = vadd.f32 0.0, %v1058
      %1060 = vmatmul.f32.gmra.mxu0 %v1021
      %v1061 = vpop.f32.mrf.mxu0
      %v1062 = vadd.f32 0.0, %v1061
      %1063 = vmatmul.f32.gmra.mxu0 %v1024
      %v1064 = vpop.f32.mrf.mxu0
      %v1065 = vadd.f32 0.0, %v1064
      %1066 = vmatmul.f32.gmra.mxu0 %v1027
      %v1067 = vpop.f32.mrf.mxu0
      %v1068 = vadd.f32 0.0, %v1067
      %1069 = vdwg.mxu0
      %v1070 = vadd.f32 %v980, %v1047
      %v1071 = vadd.f32 %v981, %v1050
      %v1072 = vadd.f32 %v982, %v1053
      %v1073 = vadd.f32 %v983, %v1056
      %v1074 = vadd.f32 %v984, %v1059
      %v1075 = vadd.f32 %v985, %v1062
      %v1076 = vadd.f32 %v986, %v1065
      %v1077 = vadd.f32 %v987, %v1068
      %v1078 = vld [vmem:[%s614 + $0x2] sm:$0xff]
      %v1079 = vld [vmem:[%s614 + $0x12] sm:$0xff]
      %v1080 = vld [vmem:[%s614 + $0x22] sm:$0xff]
      %v1081 = vld [vmem:[%s614 + $0x32] sm:$0xff]
      %v1082 = vld [vmem:[%s614 + $0x42] sm:$0xff]
      %v1083 = vld [vmem:[%s614 + $0x52] sm:$0xff]
      %v1084 = vld [vmem:[%s614 + $0x62] sm:$0xff]
      %v1085 = vld [vmem:[%s614 + $0x72] sm:$0xff]
      %s1086 = scalar_lea.vmem %s5, 320
      %v1087 = vld [vmem:[%s1086] sm:$0xff]
      %v1088 = vld [vmem:[%s1086 + $0x8] sm:$0xff]
      %v1089 = vld [vmem:[%s1086 + $0x10] sm:$0xff]
      %v1090 = vld [vmem:[%s1086 + $0x18] sm:$0xff]
      %v1091 = vld [vmem:[%s1086 + $0x20] sm:$0xff]
      %v1092 = vld [vmem:[%s1086 + $0x28] sm:$0xff]
      %v1093 = vld [vmem:[%s1086 + $0x30] sm:$0xff]
      %v1094 = vld [vmem:[%s1086 + $0x38] sm:$0xff]
      %v1096 = vsel %vm615, %v1078, 0
      %v1099 = vsel %vm615, %v1079, 0
      %v1102 = vsel %vm615, %v1080, 0
      %v1105 = vsel %vm615, %v1081, 0
      %v1108 = vsel %vm615, %v1082, 0
      %v1111 = vsel %vm615, %v1083, 0
      %v1114 = vsel %vm615, %v1084, 0
      %v1117 = vsel %vm615, %v1085, 0
      %1119 = vmatpush.msra.mxu0 0.0
      %1120 = vmatpush.msra.mxu0 0.0
      %1121 = vmatpush.msra.mxu0 0.0
      %1122 = vmatpush.msra.mxu0 0.0
      %1123 = vmatpush.msra.mxu0 0.0
      %1124 = vmatpush.msra.mxu0 0.0
      %1125 = vmatpush.msra.mxu0 0.0
      %1126 = vmatpush.msra.mxu0 0.0
      %1127 = vmatpush.msra.mxu0 %v1094
      %1128 = vmatpush.msra.mxu0 %v1093
      %1129 = vmatpush.msra.mxu0 %v1092
      %1130 = vmatpush.msra.mxu0 %v1091
      %1131 = vmatpush.msra.mxu0 %v1090
      %1132 = vmatpush.msra.mxu0 %v1089
      %1133 = vmatpush.msra.mxu0 %v1088
      %1134 = vmatpush.msra.mxu0 %v1087
      %1135 = vmatmul.f32.gmra.mxu0 %v1096
      %v1136 = vpop.f32.mrf.mxu0
      %v1137 = vadd.f32 0.0, %v1136
      %1138 = vmatmul.f32.gmra.mxu0 %v1099
      %v1139 = vpop.f32.mrf.mxu0
      %v1140 = vadd.f32 0.0, %v1139
      %1141 = vmatmul.f32.gmra.mxu0 %v1102
      %v1142 = vpop.f32.mrf.mxu0
      %v1143 = vadd.f32 0.0, %v1142
      %1144 = vmatmul.f32.gmra.mxu0 %v1105
      %v1145 = vpop.f32.mrf.mxu0
      %v1146 = vadd.f32 0.0, %v1145
      %1147 = vmatmul.f32.gmra.mxu0 %v1108
      %v1148 = vpop.f32.mrf.mxu0
      %v1149 = vadd.f32 0.0, %v1148
      %1150 = vmatmul.f32.gmra.mxu0 %v1111
      %v1151 = vpop.f32.mrf.mxu0
      %v1152 = vadd.f32 0.0, %v1151
      %1153 = vmatmul.f32.gmra.mxu0 %v1114
      %v1154 = vpop.f32.mrf.mxu0
      %v1155 = vadd.f32 0.0, %v1154
      %1156 = vmatmul.f32.gmra.mxu0 %v1117
      %v1157 = vpop.f32.mrf.mxu0
      %v1158 = vadd.f32 0.0, %v1157
      %1159 = vdwg.mxu0
      %v1160 = vadd.f32 %v1070, %v1137
      %v1161 = vadd.f32 %v1071, %v1140
      %v1162 = vadd.f32 %v1072, %v1143
      %v1163 = vadd.f32 %v1073, %v1146
      %v1164 = vadd.f32 %v1074, %v1149
      %v1165 = vadd.f32 %v1075, %v1152
      %v1166 = vadd.f32 %v1076, %v1155
      %v1167 = vadd.f32 %v1077, %v1158
      %s1168 = scalar_lea.vmem [#allocation2], 32
      %v1169 = vld [vmem:[%s1168] sm:$0xff]
      %v1170 = vld [vmem:[%s1168 + $0x10] sm:$0xff]
      %v1171 = vld [vmem:[%s1168 + $0x20] sm:$0xff]
      %v1172 = vld [vmem:[%s1168 + $0x30] sm:$0xff]
      %v1173 = vld [vmem:[%s1168 + $0x40] sm:$0xff]
      %v1174 = vld [vmem:[%s1168 + $0x50] sm:$0xff]
      %v1175 = vld [vmem:[%s1168 + $0x60] sm:$0xff]
      %v1176 = vld [vmem:[%s1168 + $0x70] sm:$0xff]
      %s1177 = scalar_lea.vmem %s5, 384
      %v1178 = vld [vmem:[%s1177] sm:$0xff]
      %v1179 = vld [vmem:[%s1177 + $0x8] sm:$0xff]
      %v1180 = vld [vmem:[%s1177 + $0x10] sm:$0xff]
      %v1181 = vld [vmem:[%s1177 + $0x18] sm:$0xff]
      %v1182 = vld [vmem:[%s1177 + $0x20] sm:$0xff]
      %v1183 = vld [vmem:[%s1177 + $0x28] sm:$0xff]
      %v1184 = vld [vmem:[%s1177 + $0x30] sm:$0xff]
      %v1185 = vld [vmem:[%s1177 + $0x38] sm:$0xff]
      %v1187 = vsel %vm615, %v1169, 0
      %v1190 = vsel %vm615, %v1170, 0
      %v1193 = vsel %vm615, %v1171, 0
      %v1196 = vsel %vm615, %v1172, 0
      %v1199 = vsel %vm615, %v1173, 0
      %v1202 = vsel %vm615, %v1174, 0
      %v1205 = vsel %vm615, %v1175, 0
      %v1208 = vsel %vm615, %v1176, 0
      %1210 = vmatpush.msra.mxu0 0.0
      %1211 = vmatpush.msra.mxu0 0.0
      %1212 = vmatpush.msra.mxu0 0.0
      %1213 = vmatpush.msra.mxu0 0.0
      %1214 = vmatpush.msra.mxu0 0.0
      %1215 = vmatpush.msra.mxu0 0.0
      %1216 = vmatpush.msra.mxu0 0.0
      %1217 = vmatpush.msra.mxu0 0.0
      %1218 = vmatpush.msra.mxu0 %v1185
      %1219 = vmatpush.msra.mxu0 %v1184
      %1220 = vmatpush.msra.mxu0 %v1183
      %1221 = vmatpush.msra.mxu0 %v1182
      %1222 = vmatpush.msra.mxu0 %v1181
      %1223 = vmatpush.msra.mxu0 %v1180
      %1224 = vmatpush.msra.mxu0 %v1179
      %1225 = vmatpush.msra.mxu0 %v1178
      %1226 = vmatmul.f32.gmra.mxu0 %v1187
      %v1227 = vpop.f32.mrf.mxu0
      %v1228 = vadd.f32 0.0, %v1227
      %1229 = vmatmul.f32.gmra.mxu0 %v1190
      %v1230 = vpop.f32.mrf.mxu0
      %v1231 = vadd.f32 0.0, %v1230
      %1232 = vmatmul.f32.gmra.mxu0 %v1193
      %v1233 = vpop.f32.mrf.mxu0
      %v1234 = vadd.f32 0.0, %v1233
      %1235 = vmatmul.f32.gmra.mxu0 %v1196
      %v1236 = vpop.f32.mrf.mxu0
      %v1237 = vadd.f32 0.0, %v1236
      %1238 = vmatmul.f32.gmra.mxu0 %v1199
      %v1239 = vpop.f32.mrf.mxu0
      %v1240 = vadd.f32 0.0, %v1239
      %1241 = vmatmul.f32.gmra.mxu0 %v1202
      %v1242 = vpop.f32.mrf.mxu0
      %v1243 = vadd.f32 0.0, %v1242
      %1244 = vmatmul.f32.gmra.mxu0 %v1205
      %v1245 = vpop.f32.mrf.mxu0
      %v1246 = vadd.f32 0.0, %v1245
      %1247 = vmatmul.f32.gmra.mxu0 %v1208
      %v1248 = vpop.f32.mrf.mxu0
      %v1249 = vadd.f32 0.0, %v1248
      %1250 = vdwg.mxu0
      %v1251 = vadd.f32 %v1160, %v1228
      %v1252 = vadd.f32 %v1161, %v1231
      %v1253 = vadd.f32 %v1162, %v1234
      %v1254 = vadd.f32 %v1163, %v1237
      %v1255 = vadd.f32 %v1164, %v1240
      %v1256 = vadd.f32 %v1165, %v1243
      %v1257 = vadd.f32 %v1166, %v1246
      %v1258 = vadd.f32 %v1167, %v1249
      %v1259 = vld [vmem:[%s1168 + $0x1] sm:$0xff]
      %v1260 = vld [vmem:[%s1168 + $0x11] sm:$0xff]
      %v1261 = vld [vmem:[%s1168 + $0x21] sm:$0xff]
      %v1262 = vld [vmem:[%s1168 + $0x31] sm:$0xff]
      %v1263 = vld [vmem:[%s1168 + $0x41] sm:$0xff]
      %v1264 = vld [vmem:[%s1168 + $0x51] sm:$0xff]
      %v1265 = vld [vmem:[%s1168 + $0x61] sm:$0xff]
      %v1266 = vld [vmem:[%s1168 + $0x71] sm:$0xff]
      %s1267 = scalar_lea.vmem %s5, 448
      %v1268 = vld [vmem:[%s1267] sm:$0xff]
      %v1269 = vld [vmem:[%s1267 + $0x8] sm:$0xff]
      %v1270 = vld [vmem:[%s1267 + $0x10] sm:$0xff]
      %v1271 = vld [vmem:[%s1267 + $0x18] sm:$0xff]
      %v1272 = vld [vmem:[%s1267 + $0x20] sm:$0xff]
      %v1273 = vld [vmem:[%s1267 + $0x28] sm:$0xff]
      %v1274 = vld [vmem:[%s1267 + $0x30] sm:$0xff]
      %v1275 = vld [vmem:[%s1267 + $0x38] sm:$0xff]
      %v1277 = vsel %vm615, %v1259, 0
      %v1280 = vsel %vm615, %v1260, 0
      %v1283 = vsel %vm615, %v1261, 0
      %v1286 = vsel %vm615, %v1262, 0
      %v1289 = vsel %vm615, %v1263, 0
      %v1292 = vsel %vm615, %v1264, 0
      %v1295 = vsel %vm615, %v1265, 0
      %v1298 = vsel %vm615, %v1266, 0
      %1300 = vmatpush.msra.mxu0 0.0
      %1301 = vmatpush.msra.mxu0 0.0
      %1302 = vmatpush.msra.mxu0 0.0
      %1303 = vmatpush.msra.mxu0 0.0
      %1304 = vmatpush.msra.mxu0 0.0
      %1305 = vmatpush.msra.mxu0 0.0
      %1306 = vmatpush.msra.mxu0 0.0
      %1307 = vmatpush.msra.mxu0 0.0
      %1308 = vmatpush.msra.mxu0 %v1275
      %1309 = vmatpush.msra.mxu0 %v1274
      %1310 = vmatpush.msra.mxu0 %v1273
      %1311 = vmatpush.msra.mxu0 %v1272
      %1312 = vmatpush.msra.mxu0 %v1271
      %1313 = vmatpush.msra.mxu0 %v1270
      %1314 = vmatpush.msra.mxu0 %v1269
      %1315 = vmatpush.msra.mxu0 %v1268
      %1316 = vmatmul.f32.gmra.mxu0 %v1277
      %v1317 = vpop.f32.mrf.mxu0
      %v1318 = vadd.f32 0.0, %v1317
      %1319 = vmatmul.f32.gmra.mxu0 %v1280
      %v1320 = vpop.f32.mrf.mxu0
      %v1321 = vadd.f32 0.0, %v1320
      %1322 = vmatmul.f32.gmra.mxu0 %v1283
      %v1323 = vpop.f32.mrf.mxu0
      %v1324 = vadd.f32 0.0, %v1323
      %1325 = vmatmul.f32.gmra.mxu0 %v1286
      %v1326 = vpop.f32.mrf.mxu0
      %v1327 = vadd.f32 0.0, %v1326
      %1328 = vmatmul.f32.gmra.mxu0 %v1289
      %v1329 = vpop.f32.mrf.mxu0
      %v1330 = vadd.f32 0.0, %v1329
      %1331 = vmatmul.f32.gmra.mxu0 %v1292
      %v1332 = vpop.f32.mrf.mxu0
      %v1333 = vadd.f32 0.0, %v1332
      %1334 = vmatmul.f32.gmra.mxu0 %v1295
      %v1335 = vpop.f32.mrf.mxu0
      %v1336 = vadd.f32 0.0, %v1335
      %1337 = vmatmul.f32.gmra.mxu0 %v1298
      %v1338 = vpop.f32.mrf.mxu0
      %v1339 = vadd.f32 0.0, %v1338
      %1340 = vdwg.mxu0
      %v1341 = vadd.f32 %v1251, %v1318
      %v1342 = vadd.f32 %v1252, %v1321
      %v1343 = vadd.f32 %v1253, %v1324
      %v1344 = vadd.f32 %v1254, %v1327
      %v1345 = vadd.f32 %v1255, %v1330
      %v1346 = vadd.f32 %v1256, %v1333
      %v1347 = vadd.f32 %v1257, %v1336
      %v1348 = vadd.f32 %v1258, %v1339
      %v1349 = vld [vmem:[%s1168 + $0x2] sm:$0xff]
      %v1350 = vld [vmem:[%s1168 + $0x12] sm:$0xff]
      %v1351 = vld [vmem:[%s1168 + $0x22] sm:$0xff]
      %v1352 = vld [vmem:[%s1168 + $0x32] sm:$0xff]
      %v1353 = vld [vmem:[%s1168 + $0x42] sm:$0xff]
      %v1354 = vld [vmem:[%s1168 + $0x52] sm:$0xff]
      %v1355 = vld [vmem:[%s1168 + $0x62] sm:$0xff]
      %v1356 = vld [vmem:[%s1168 + $0x72] sm:$0xff]
      %s1357 = scalar_lea.vmem %s5, 512
      %v1358 = vld [vmem:[%s1357] sm:$0xff]
      %v1359 = vld [vmem:[%s1357 + $0x8] sm:$0xff]
      %v1360 = vld [vmem:[%s1357 + $0x10] sm:$0xff]
      %v1361 = vld [vmem:[%s1357 + $0x18] sm:$0xff]
      %v1362 = vld [vmem:[%s1357 + $0x20] sm:$0xff]
      %v1363 = vld [vmem:[%s1357 + $0x28] sm:$0xff]
      %v1364 = vld [vmem:[%s1357 + $0x30] sm:$0xff]
      %v1365 = vld [vmem:[%s1357 + $0x38] sm:$0xff]
      %v1367 = vsel %vm615, %v1349, 0
      %v1370 = vsel %vm615, %v1350, 0
      %v1373 = vsel %vm615, %v1351, 0
      %v1376 = vsel %vm615, %v1352, 0
      %v1379 = vsel %vm615, %v1353, 0
      %v1382 = vsel %vm615, %v1354, 0
      %v1385 = vsel %vm615, %v1355, 0
      %v1388 = vsel %vm615, %v1356, 0
      %1390 = vmatpush.msra.mxu0 0.0
      %1391 = vmatpush.msra.mxu0 0.0
      %1392 = vmatpush.msra.mxu0 0.0
      %1393 = vmatpush.msra.mxu0 0.0
      %1394 = vmatpush.msra.mxu0 0.0
      %1395 = vmatpush.msra.mxu0 0.0
      %1396 = vmatpush.msra.mxu0 0.0
      %1397 = vmatpush.msra.mxu0 0.0
      %1398 = vmatpush.msra.mxu0 %v1365
      %1399 = vmatpush.msra.mxu0 %v1364
      %1400 = vmatpush.msra.mxu0 %v1363
      %1401 = vmatpush.msra.mxu0 %v1362
      %1402 = vmatpush.msra.mxu0 %v1361
      %1403 = vmatpush.msra.mxu0 %v1360
      %1404 = vmatpush.msra.mxu0 %v1359
      %1405 = vmatpush.msra.mxu0 %v1358
      %1406 = vmatmul.f32.gmra.mxu0 %v1367
      %v1407 = vpop.f32.mrf.mxu0
      %v1408 = vadd.f32 0.0, %v1407
      %1409 = vmatmul.f32.gmra.mxu0 %v1370
      %v1410 = vpop.f32.mrf.mxu0
      %v1411 = vadd.f32 0.0, %v1410
      %1412 = vmatmul.f32.gmra.mxu0 %v1373
      %v1413 = vpop.f32.mrf.mxu0
      %v1414 = vadd.f32 0.0, %v1413
      %1415 = vmatmul.f32.gmra.mxu0 %v1376
      %v1416 = vpop.f32.mrf.mxu0
      %v1417 = vadd.f32 0.0, %v1416
      %1418 = vmatmul.f32.gmra.mxu0 %v1379
      %v1419 = vpop.f32.mrf.mxu0
      %v1420 = vadd.f32 0.0, %v1419
      %1421 = vmatmul.f32.gmra.mxu0 %v1382
      %v1422 = vpop.f32.mrf.mxu0
      %v1423 = vadd.f32 0.0, %v1422
      %1424 = vmatmul.f32.gmra.mxu0 %v1385
      %v1425 = vpop.f32.mrf.mxu0
      %v1426 = vadd.f32 0.0, %v1425
      %1427 = vmatmul.f32.gmra.mxu0 %v1388
      %v1428 = vpop.f32.mrf.mxu0
      %v1429 = vadd.f32 0.0, %v1428
      %1430 = vdwg.mxu0
      %v1431 = vadd.f32 %v1341, %v1408
      %v1432 = vadd.f32 %v1342, %v1411
      %v1433 = vadd.f32 %v1343, %v1414
      %v1434 = vadd.f32 %v1344, %v1417
      %v1435 = vadd.f32 %v1345, %v1420
      %v1436 = vadd.f32 %v1346, %v1423
      %v1437 = vadd.f32 %v1347, %v1426
      %v1438 = vadd.f32 %v1348, %v1429
      %v1439 = vld [vmem:[%s6] sm:$0x1]
      %v1441 = vperm.slane %v1439, 0
      %v1443 = vadd.f32 %v1431, %v1441
      %v1444 = vadd.f32 %v1432, %v1441
      %v1445 = vadd.f32 %v1433, %v1441
      %v1446 = vadd.f32 %v1434, %v1441
      %v1447 = vadd.f32 %v1435, %v1441
      %v1448 = vadd.f32 %v1436, %v1441
      %v1449 = vadd.f32 %v1437, %v1441
      %v1450 = vadd.f32 %v1438, %v1441
      %1451 = vst.msk [vmem:[%s528] sm:$0xff] %vm615, %v1443
      %1452 = vst.msk [vmem:[%s528 + $0x8] sm:$0xff] %vm615, %v1444
      %1453 = vst.msk [vmem:[%s528 + $0x10] sm:$0xff] %vm615, %v1445
      %1454 = vst.msk [vmem:[%s528 + $0x18] sm:$0xff] %vm615, %v1446
      %1455 = vst.msk [vmem:[%s528 + $0x20] sm:$0xff] %vm615, %v1447
      %1456 = vst.msk [vmem:[%s528 + $0x28] sm:$0xff] %vm615, %v1448
      %1457 = vst.msk [vmem:[%s528 + $0x30] sm:$0xff] %vm615, %v1449
      %1458 = vst.msk [vmem:[%s528 + $0x38] sm:$0xff] %vm615, %v1450
      %v1459 = vsel %vm615, %v1443, 0.0
      %v1460 = vsel %vm615, %v1444, 0.0
      %v1461 = vadd.f32 %v1459, %v1460
      %v1462 = vsel %vm615, %v1445, 0.0
      %v1463 = vadd.f32 %v1461, %v1462
      %v1464 = vsel %vm615, %v1446, 0.0
      %v1465 = vadd.f32 %v1463, %v1464
      %v1466 = vsel %vm615, %v1447, 0.0
      %v1467 = vadd.f32 %v1465, %v1466
      %v1468 = vsel %vm615, %v1448, 0.0
      %v1469 = vadd.f32 %v1467, %v1468
      %v1470 = vsel %vm615, %v1449, 0.0
      %v1471 = vadd.f32 %v1469, %v1470
      %v1472 = vsel %vm615, %v1450, 0.0
      %v1473 = vadd.f32 %v1471, %v1472
      %v1474 = vrot.slane %v1473, 4
      %v1475 = vadd.f32 %v1473, %v1474
      %v1476 = vrot.slane %v1475, 2
      %v1477 = vadd.f32 %v1475, %v1476
      %v1478 = vrot.slane %v1477, 1
      %v1479 = vadd.f32 %v1477, %v1478
      %v1480 = vld [vmem:[%s7] sm:$0xff]
      %v1481 = vld [vmem:[%s7 + $0x8] sm:$0xff]
      %v1482 = vld [vmem:[%s7 + $0x10] sm:$0xff]
      %v1483 = vld [vmem:[%s7 + $0x18] sm:$0xff]
      %v1484 = vld [vmem:[%s7 + $0x20] sm:$0xff]
      %v1485 = vld [vmem:[%s7 + $0x28] sm:$0xff]
      %v1486 = vld [vmem:[%s7 + $0x30] sm:$0xff]
      %v1487 = vld [vmem:[%s7 + $0x38] sm:$0xff]
      %v1489 = vsel %vm615, %v1479, 0
      %1491 = vmatpush.msra.mxu0 0.0
      %1492 = vmatpush.msra.mxu0 0.0
      %1493 = vmatpush.msra.mxu0 0.0
      %1494 = vmatpush.msra.mxu0 0.0
      %1495 = vmatpush.msra.mxu0 0.0
      %1496 = vmatpush.msra.mxu0 0.0
      %1497 = vmatpush.msra.mxu0 0.0
      %1498 = vmatpush.msra.mxu0 0.0
      %1499 = vmatpush.msra.mxu0 %v1487
      %1500 = vmatpush.msra.mxu0 %v1486
      %1501 = vmatpush.msra.mxu0 %v1485
      %1502 = vmatpush.msra.mxu0 %v1484
      %1503 = vmatpush.msra.mxu0 %v1483
      %1504 = vmatpush.msra.mxu0 %v1482
      %1505 = vmatpush.msra.mxu0 %v1481
      %1506 = vmatpush.msra.mxu0 %v1480
      %1507 = vmatmul.f32.gmra.mxu0 %v1489
      %v1508 = vpop.f32.mrf.mxu0
      %v1509 = vadd.f32 0.0, %v1508
      %1510 = vdwg.mxu0
      %v1511 = vmul.f32 %v1443, %v1443
      %v1512 = vmul.f32 %v1444, %v1444
      %v1513 = vmul.f32 %v1445, %v1445
      %v1514 = vmul.f32 %v1446, %v1446
      %v1515 = vmul.f32 %v1447, %v1447
      %v1516 = vmul.f32 %v1448, %v1448
      %v1517 = vmul.f32 %v1449, %v1449
      %v1518 = vmul.f32 %v1450, %v1450
      %v1519 = vsel %vm615, %v1511, 0.0
      %v1520 = vsel %vm615, %v1512, 0.0
      %v1521 = vadd.f32 %v1519, %v1520
      %v1522 = vsel %vm615, %v1513, 0.0
      %v1523 = vadd.f32 %v1521, %v1522
      %v1524 = vsel %vm615, %v1514, 0.0
      %v1525 = vadd.f32 %v1523, %v1524
      %v1526 = vsel %vm615, %v1515, 0.0
      %v1527 = vadd.f32 %v1525, %v1526
      %v1528 = vsel %vm615, %v1516, 0.0
      %v1529 = vadd.f32 %v1527, %v1528
      %v1530 = vsel %vm615, %v1517, 0.0
      %v1531 = vadd.f32 %v1529, %v1530
      %v1532 = vsel %vm615, %v1518, 0.0
      %v1533 = vadd.f32 %v1531, %v1532
      %v1534 = vrot.slane %v1533, 4
      %v1535 = vadd.f32 %v1533, %v1534
      %v1536 = vrot.slane %v1535, 2
      %v1537 = vadd.f32 %v1535, %v1536
      %v1538 = vrot.slane %v1537, 1
      %v1539 = vadd.f32 %v1537, %v1538
      %v1541 = vsel %vm615, %v1539, 0
      %1543 = vmatpush.msra.mxu0 0.0
      %1544 = vmatpush.msra.mxu0 0.0
      %1545 = vmatpush.msra.mxu0 0.0
      %1546 = vmatpush.msra.mxu0 0.0
      %1547 = vmatpush.msra.mxu0 0.0
      %1548 = vmatpush.msra.mxu0 0.0
      %1549 = vmatpush.msra.mxu0 0.0
      %1550 = vmatpush.msra.mxu0 0.0
      %1551 = vmatpush.msra.mxu0 %v1487
      %1552 = vmatpush.msra.mxu0 %v1486
      %1553 = vmatpush.msra.mxu0 %v1485
      %1554 = vmatpush.msra.mxu0 %v1484
      %1555 = vmatpush.msra.mxu0 %v1483
      %1556 = vmatpush.msra.mxu0 %v1482
      %1557 = vmatpush.msra.mxu0 %v1481
      %1558 = vmatpush.msra.mxu0 %v1480
      %1559 = vmatmul.f32.gmra.mxu0 %v1541
      %v1560 = vpop.f32.mrf.mxu0
      %v1561 = vadd.f32 0.0, %v1560
      %1562 = vdwg.mxu0
      %vm1563 = vcmask 57344
      %1564 = vst.msk [vmem:[%s536] sm:$0x1] %vm1563, %v1509
      %1565 = vst.msk [vmem:[%s536 + $0x1] sm:$0x1] %vm1563, %v1561
      %s1566 = smul.u32 8, %s26
      %p1567 = scmp.lt.s32.totalorder %s25, 1
      %s1568 = scalar_select %p1567, %s25, 1
      %p1569 = scmp.lt.s32.totalorder %s1566, 7
      %s1570 = scalar_select %p1569, %s1566, 7
      %s1571 = smul.addr %s1568, 8
      %s1572 = sadd.s32 %s1570, %s1571
      %s1573 = smul.addr %s1572, 8
      %s1574 = scalar_lea.vmem %s8, %s1573
      %p1575 = scmp.lt.s32.totalorder %s25, 1
      %s1576 = scalar_select %p1575, %s25, 1
      %p1577 = scmp.lt.s32.totalorder %s26, 0
      %s1578 = scalar_select %p1577, %s26, 0
      %s1579 = sadd.s32 %s1578, %s1576
      %s1580 = smul.addr %s1579, 2
      %s1581 = scalar_lea.vmem %s9, %s1580
      // Predicated region
      $region53: #{stacked_conv_layers_with_style.4} parent=51 // pred_check
        %p1582 = pneg %p268
      $region54: #{stacked_conv_layers_with_style.4} parent=51 // pred_check_branch
        %1584 = sbr.rel (%p1582) target = $region56
      $region55: #{stacked_conv_layers_with_style.4} parent=51 // pred_region
        %s1585 = smul.u32 8, %s26
      $region56: #{stacked_conv_layers_with_style.4} parent=51 // pred_fallthru
        _
      // Predicated region
      $region57: #{stacked_conv_layers_with_style.4} parent=51 // pred_check
        %p1586 = pneg %p296
      $region58: #{stacked_conv_layers_with_style.4} parent=51 // pred_check_branch
        %1588 = sbr.rel (%p1586) target = $region60
      $region59: #{stacked_conv_layers_with_style.4} parent=51 // pred_region
        _
      $region60: #{stacked_conv_layers_with_style.4} parent=51 // pred_fallthru
        _
    $region52: #{stacked_conv_layers_with_style.4} parent=5 // pred_fallthru
      _
    %p1589 = scmp.le.s32.totalorder 2, %s16
    // Predicated region
    $region61: #{stacked_conv_layers_with_style.4} parent=5 // pred_check
      %p1590 = pneg %p1589
    $region62: #{stacked_conv_layers_with_style.4} parent=5 // pred_check_branch
      %1592 = sbr.rel (%p1590) target = $region64
    $region63: #{stacked_conv_layers_with_style.4} parent=5 // pred_region
      %s1593 = ssub.s32 %s16, 2
      // Predicated region
      $region65: #{stacked_conv_layers_with_style.4} parent=63 // pred_check
        %p1594 = pneg %p274
      $region66: #{stacked_conv_layers_with_style.4} parent=63 // pred_check_branch
        %1596 = sbr.rel (%p1594) target = $region68
      $region67: #{stacked_conv_layers_with_style.4} parent=63 // pred_region
        %s1597 = smul.u32 8, %s28
        %p1598 = scmp.lt.s32.totalorder %s27, 1
        %s1599 = scalar_select %p1598, %s27, 1
        %p1600 = scmp.lt.s32.totalorder %s1597, 7
        %s1601 = scalar_select %p1600, %s1597, 7
        %s1602 = smul.addr %s1599, 8
        %s1603 = sadd.s32 %s1601, %s1602
        %s1604 = smul.addr %s1603, 8
        %s1605 = scalar_lea.vmem %s8, %s1604
      $region68: #{stacked_conv_layers_with_style.4} parent=63 // pred_fallthru
        _
      // Predicated region
      $region69: #{stacked_conv_layers_with_style.4} parent=63 // pred_check
        %p1606 = pneg %p302
      $region70: #{stacked_conv_layers_with_style.4} parent=63 // pred_check_branch
        %1608 = sbr.rel (%p1606) target = $region72
      $region71: #{stacked_conv_layers_with_style.4} parent=63 // pred_region
        %p1609 = scmp.lt.s32.totalorder %s27, 1
        %s1610 = scalar_select %p1609, %s27, 1
        %p1611 = scmp.lt.s32.totalorder %s28, 0
        %s1612 = scalar_select %p1611, %s28, 0
        %s1613 = sadd.s32 %s1612, %s1610
        %s1614 = smul.addr %s1613, 2
        %s1615 = scalar_lea.vmem %s9, %s1614
      $region72: #{stacked_conv_layers_with_style.4} parent=63 // pred_fallthru
        _
    $region64: #{stacked_conv_layers_with_style.4} parent=5 // pred_fallthru
      _
  $region6: #{stacked_conv_layers_with_style.4} parent=0 // loop_footer
    %s20 = sadd.s32 1, %s16
  $region7: #{stacked_conv_layers_with_style.4} parent=0 // loop_footer_branch
    %15 = sbr.rel target = $region3
  $region8: #{stacked_conv_layers_with_style.4} parent=0 // loop_exit
    _

</llo_original>
